<compile_context>
chip_gen: v6e
topology: v6e:2x2x1
jax: 0.10.0
libtpu: 0.0.40
codegen_flags: <defaults>
</compile_context>

<pallas_src>
import functools

import numpy as np
import jax
import jax.numpy as jnp
from jax import lax
from jax.experimental import pallas as pl
from jax.experimental.pallas import tpu as pltpu


# ----------------------------------------------------------------------------
# Pallas kernel: Bw windows (Bw*N tokens) per grid step.
# ----------------------------------------------------------------------------
def window_attention_kernel(q_ref, kv_ref, qw_ref, qb_ref, kw_ref, kb_ref,
                            wvv_ref, bout_ref, bias_ref, o_ref,
                            q_scr, k_scr, vv_scr, *, chunk_windows):
    # Shapes (static):
    #   q_ref/kv_ref/o_ref : (M, C)        M = Bw*N tokens of Bw windows
    #   qw_ref/kw_ref      : (C, C)  bf16  (softmax scale folded into qw/qb)
    #   qb_ref/kb_ref      : (1, C)  f32
    #   wvv_ref            : (C, H*C) bf16 v-proj composed with out-proj, per head
    #   bout_ref           : (1, C)  f32   pb + vb @ pw
    #   bias_ref           : (H, N, N) f32 relative position bias
    M, C = q_ref.shape
    H, N, _ = bias_ref.shape
    D = C // H
    cw = chunk_windows
    R = cw * N                       # rows per attention chunk
    n_chunks = M // R

    # ---- Phase 1: fused projections at full M (well-shaped MXU matmuls) ----
    x_q = q_ref[...].astype(jnp.bfloat16)        # (M, C)
    x_kv = kv_ref[...].astype(jnp.bfloat16)      # (M, C)

    q_all = jnp.dot(x_q, qw_ref[...], preferred_element_type=jnp.float32) + qb_ref[...]
    k_all = jnp.dot(x_kv, kw_ref[...], preferred_element_type=jnp.float32) + kb_ref[...]
    vv_all = jnp.dot(x_kv, wvv_ref[...], preferred_element_type=jnp.float32)  # (M, H*C)

    q_scr[...] = q_all.astype(jnp.bfloat16)
    k_scr[...] = k_all.astype(jnp.bfloat16)
    vv_scr[...] = vv_all.astype(jnp.bfloat16)

    # ---- Phase 2: attention, chunked over windows to bound the vreg set ----
    @pl.loop(0, n_chunks)
    def _attend(c):
        row0 = pl.multiple_of(c * R, R)
        qc = q_scr[pl.ds(row0, R), :]            # (R, C)    bf16
        kc = k_scr[pl.ds(row0, R), :]            # (R, C)    bf16
        vvc = vv_scr[pl.ds(row0, R), :]          # (R, H*C)  bf16

        acc = jnp.zeros((cw, N, C), jnp.float32)
        for h in range(H):                       # H small & static -> unrolled
            q_h = qc[:, h * D:(h + 1) * D].reshape(cw, N, D)
            k_h = kc[:, h * D:(h + 1) * D].reshape(cw, N, D)
            # Scores: contract D of both operands (no materialized transpose).
            s = lax.dot_general(
                q_h, k_h,
                dimension_numbers=(((2,), (2,)), ((0,), (0,))),
                preferred_element_type=jnp.float32)          # (cw, N, N)
            s = s + bias_ref[h]                               # broadcast over cw
            # TODO(synk): optional per-window attention `mask` would be added
            # to `s` here (before the softmax) when implemented.
            s = s - jnp.max(s, axis=-1, keepdims=True)
            e = jnp.exp(s)
            p = (e * pl.reciprocal(jnp.sum(e, axis=-1, keepdims=True),
                                   approx=True)).astype(jnp.bfloat16)
            # Context already in output space (v composed with out-proj).
            vv_h = vvc[:, h * C:(h + 1) * C].reshape(cw, N, C)
            acc = acc + lax.dot_general(
                p, vv_h,
                dimension_numbers=(((2,), (1,)), ((0,), (0,))),
                preferred_element_type=jnp.float32)           # (cw, N, C)

        out_c = acc + bout_ref[...]                           # + (pb + vb @ pw)
        o_ref[pl.ds(row0, R), :] = out_c.reshape(R, C).astype(o_ref.dtype)


# ----------------------------------------------------------------------------
# One-time host-side parameter preparation (fusion + scale fold + bf16 cast).
# ----------------------------------------------------------------------------
def prepare_params(params, num_heads):
    qw, qb, kvw, kvb, pw, pb = params            # weights stored as (in, out)
    C = qw.shape[0]
    H = num_heads
    D = C // H
    scale = float(D) ** (-0.5)

    kw = kvw[:, :C]
    vw = kvw[:, C:]
    kb = kvb[:C]
    vb = kvb[C:]

    # Compose the v projection with the out projection per head:
    #   Wvv[:, h*C:(h+1)*C] = vw[:, h*D:(h+1)*D] @ pw[h*D:(h+1)*D, :]
    wvv = jnp.einsum('chd,hdk->chk', vw.reshape(C, H, D), pw.reshape(H, D, C))
    wvv = wvv.reshape(C, H * C)                               # (C, H*C)

    # Out-proj bias plus v-bias routed through the out projection (softmax
    # rows sum to 1, so the v-bias contribution is constant per row).
    b_out = (pb + vb @ pw).reshape(1, C)

    return (
        (qw * scale).astype(jnp.bfloat16),                    # qw_s (C, C)
        (qb * scale).reshape(1, C).astype(jnp.float32),       # qb_s (1, C)
        kw.astype(jnp.bfloat16),                              # kw   (C, C)
        kb.reshape(1, C).astype(jnp.float32),                 # kb   (1, C)
        wvv.astype(jnp.bfloat16),                             # Wvv  (C, H*C)
        b_out.astype(jnp.float32),                            # b_out(1, C)
    )


# ----------------------------------------------------------------------------
# Wrapper
# ----------------------------------------------------------------------------
def window_attention(q, kv, prepped, rel_pos_bias,
                     block_windows=8, chunk_windows=2):
    """q, kv: (B_, N, C) float32.  rel_pos_bias: (H, N, N) float32."""
    B_, N, C = q.shape

    # Windows per grid step (keep grid >= 2-4 steps for pipelining / megacore).
    bw = max(1, min(block_windows, B_))
    while B_ % bw:
        bw -= 1
    # Windows per in-kernel attention chunk (bounds the score working set).
    cw = max(1, min(chunk_windows, bw))
    while bw % cw:
        cw -= 1
    n_blocks = B_ // bw
    M = bw * N

    q2 = q.reshape(B_ * N, C)
    kv2 = kv.reshape(B_ * N, C)
    qw_s, qb_s, kw, kb, wvv, b_out = prepped

    def rep(shape):   # weight/bias replicated across all grid steps
        nd = len(shape)
        return pl.BlockSpec(shape, lambda i, nd=nd: (0,) * nd)

    tok_spec = pl.BlockSpec((M, C), lambda i: (i, 0))

    kernel = functools.partial(window_attention_kernel, chunk_windows=cw)

    out2 = pl.pallas_call(
        kernel,
        out_shape=jax.ShapeDtypeStruct((B_ * N, C), q.dtype),
        grid=(n_blocks,),
        in_specs=[
            tok_spec,                       # q tokens
            tok_spec,                       # kv tokens
            rep(qw_s.shape), rep(qb_s.shape),
            rep(kw.shape), rep(kb.shape),
            rep(wvv.shape), rep(b_out.shape),
            rep(rel_pos_bias.shape),        # relative position bias (H, N, N)
        ],
        out_specs=tok_spec,
        scratch_shapes=[
            pltpu.VMEM((M, C), jnp.bfloat16),               # q_scr
            pltpu.VMEM((M, C), jnp.bfloat16),               # k_scr
            pltpu.VMEM((M, wvv.shape[1]), jnp.bfloat16),    # vv_scr
        ],
        compiler_params=pltpu.CompilerParams(
            dimension_semantics=("parallel",)),
    )(q2, kv2, qw_s, qb_s, kw, kb, wvv, b_out, rel_pos_bias)

    return out2.reshape(B_, N, C)


# ----------------------------------------------------------------------------
# Relative position index construction (glue, pure numpy)
# ----------------------------------------------------------------------------
def make_relative_position_index(window_size):
    Wh, Ww = window_size
    coords_h = np.arange(Wh)
    coords_w = np.arange(Ww)
    coords = np.stack(np.meshgrid(coords_h, coords_w, indexing="ij"))   # (2, Wh, Ww)
    coords_flatten = coords.reshape(2, -1)                              # (2, N)
    rel = coords_flatten[:, :, None] - coords_flatten[:, None, :]       # (2, N, N)
    rel = rel.transpose(1, 2, 0).astype(np.int64)                       # (N, N, 2)
    rel[:, :, 0] += Wh - 1
    rel[:, :, 1] += Ww - 1
    rel[:, :, 0] *= 2 * Ww - 1
    return rel.sum(-1)                                                  # (N, N)


# ----------------------------------------------------------------------------
# Pure-JAX reference (mirrors the PyTorch forward) for verification
# ----------------------------------------------------------------------------
def reference(q, kv, params, rel_pos_bias, num_heads):
    qw, qb, kvw, kvb, pw, pb = params
    B_, N, C = q.shape
    H, D = num_heads, C // num_heads
    scale = D ** (-0.5)
    qp = (q @ qw + qb).reshape(B_, N, 1, H, D).transpose(2, 0, 3, 1, 4)[0]   # (B_,H,N,D)
    kvp = (kv @ kvw + kvb).reshape(B_, N, 2, H, D).transpose(2, 0, 3, 1, 4)
    k, v = kvp[0], kvp[1]
    attn = (qp * scale) @ jnp.swapaxes(k, -2, -1)                            # (B_,H,N,N)
    attn = attn + rel_pos_bias[None]
    attn = jax.nn.softmax(attn, axis=-1)
    x = jnp.swapaxes(attn @ v, 1, 2).reshape(B_, N, C)
    return x @ pw + pb


if __name__ == "__main__":
    # Module-consistent small shapes.
    dim = 32                  # C
    window_size = (8, 8)      # -> N = 64
    num_heads = 4             # -> head_dim = 8
    B_ = 32                   # windows; bw=8 -> grid = (4,)
    N = window_size[0] * window_size[1]

    key = jax.random.PRNGKey(0)
    keys = jax.random.split(key, 10)

    # Deterministic synthetic parameters (weights stored as (in, out)).
    table = 0.02 * jax.random.normal(
        keys[0], ((2 * window_size[0] - 1) * (2 * window_size[1] - 1), num_heads),
        dtype=jnp.float32)
    qw = 0.05 * jax.random.normal(keys[1], (dim, dim), dtype=jnp.float32)
    qb = 0.05 * jax.random.normal(keys[2], (dim,), dtype=jnp.float32)
    kvw = 0.05 * jax.random.normal(keys[3], (dim, 2 * dim), dtype=jnp.float32)
    kvb = 0.05 * jax.random.normal(keys[4], (2 * dim,), dtype=jnp.float32)
    pw = 0.05 * jax.random.normal(keys[5], (dim, dim), dtype=jnp.float32)
    pb = 0.05 * jax.random.normal(keys[6], (dim,), dtype=jnp.float32)
    params = (qw, qb, kvw, kvb, pw, pb)

    # Relative position bias (H, N, N) gathered from the table (glue in JAX).
    rp_index = jnp.asarray(make_relative_position_index(window_size))       # (N, N)
    rel_pos_bias = table[rp_index.reshape(-1)].reshape(N, N, num_heads)
    rel_pos_bias = jnp.transpose(rel_pos_bias, (2, 0, 1)).astype(jnp.float32)  # (H,N,N)

    # Inputs.
    q_in = jax.random.normal(keys[7], (B_, N, dim), dtype=jnp.float32)
    kv_in = jax.random.normal(keys[8], (B_, N, dim), dtype=jnp.float32)

    # One-time host-side weight transform (fusion, scale fold, bf16 cast).
    prepped = prepare_params(params, num_heads)

    out = window_attention(q_in, kv_in, prepped, rel_pos_bias,
                           block_windows=8, chunk_windows=2)
    out = jax.block_until_ready(out)

    ref = reference(q_in, kv_in, params, rel_pos_bias, num_heads)
    ref = jax.block_until_ready(ref)

    assert out.shape == (B_, N, dim)
    # bf16 MXU operands + approx reciprocal -> 1e-2 tolerances.
    np.testing.assert_allclose(np.asarray(out), np.asarray(ref), rtol=1e-2, atol=1e-2)
    print("KERNEL_OK")
</pallas_src>

<mosaic_0001>
module attributes {stable_mosaic.version = 11 : i64} {
  func.func @window_attention_kernel(%arg0: i32, %arg1: memref<512x32xf32, #tpu.memory_space<vmem>>, %arg2: memref<512x32xf32, #tpu.memory_space<vmem>>, %arg3: memref<32x32xbf16, #tpu.memory_space<vmem>>, %arg4: memref<1x32xf32, #tpu.memory_space<vmem>>, %arg5: memref<32x32xbf16, #tpu.memory_space<vmem>>, %arg6: memref<1x32xf32, #tpu.memory_space<vmem>>, %arg7: memref<32x128xbf16, #tpu.memory_space<vmem>>, %arg8: memref<1x32xf32, #tpu.memory_space<vmem>>, %arg9: memref<4x64x64xf32, #tpu.memory_space<vmem>>, %arg10: memref<512x32xf32, #tpu.memory_space<vmem>>, %arg11: memref<512x32xbf16, #tpu.memory_space<vmem>>, %arg12: memref<512x32xbf16, #tpu.memory_space<vmem>>, %arg13: memref<512x128xbf16, #tpu.memory_space<vmem>>) attributes {dimension_semantics = [#tpu.dimension_semantics<parallel>], iteration_bounds = array<i64: 4>, scalar_prefetch = 0 : i64, scratch_operands = 3 : i64, tpu.core_type = #tpu.core_type<tc>, window_params = [{transform_indices = @transform_0, window_bounds = array<i64: 512, 32>}, {transform_indices = @transform_1, window_bounds = array<i64: 512, 32>}, {pipeline_mode = #tpu.pipeline_mode<synchronous>, transform_indices = @transform_2, window_bounds = array<i64: 32, 32>}, {pipeline_mode = #tpu.pipeline_mode<synchronous>, transform_indices = @transform_3, window_bounds = array<i64: 1, 32>}, {pipeline_mode = #tpu.pipeline_mode<synchronous>, transform_indices = @transform_4, window_bounds = array<i64: 32, 32>}, {pipeline_mode = #tpu.pipeline_mode<synchronous>, transform_indices = @transform_5, window_bounds = array<i64: 1, 32>}, {pipeline_mode = #tpu.pipeline_mode<synchronous>, transform_indices = @transform_6, window_bounds = array<i64: 32, 128>}, {pipeline_mode = #tpu.pipeline_mode<synchronous>, transform_indices = @transform_7, window_bounds = array<i64: 1, 32>}, {pipeline_mode = #tpu.pipeline_mode<synchronous>, transform_indices = @transform_8, window_bounds = array<i64: 4, 64, 64>}, {transform_indices = @transform_9, window_bounds = array<i64: 512, 32>}]} {
    %c0 = arith.constant 0 : index
    %c0_0 = arith.constant 0 : index
    %0 = vector.load %arg1[%c0, %c0_0] : memref<512x32xf32, #tpu.memory_space<vmem>>, vector<512x32xf32>
    %1 = arith.truncf %0 : vector<512x32xf32> to vector<512x32xbf16>
    %c0_1 = arith.constant 0 : index
    %c0_2 = arith.constant 0 : index
    %2 = vector.load %arg2[%c0_1, %c0_2] : memref<512x32xf32, #tpu.memory_space<vmem>>, vector<512x32xf32>
    %3 = arith.truncf %2 : vector<512x32xf32> to vector<512x32xbf16>
    %c0_3 = arith.constant 0 : index
    %c0_4 = arith.constant 0 : index
    %4 = vector.load %arg3[%c0_3, %c0_4] : memref<32x32xbf16, #tpu.memory_space<vmem>>, vector<32x32xbf16>
    %cst = arith.constant dense<0.000000e+00> : vector<512x32xf32>
    %5 = tpu.matmul %1, %4, %cst {dimension_numbers = #tpu.dot_dimension_numbers<[1], [0], [0], [1], [0, 0, 1, 1], [], []>} : vector<512x32xbf16>, vector<32x32xbf16>, vector<512x32xf32> -> vector<512x32xf32>
    %c0_5 = arith.constant 0 : index
    %c0_6 = arith.constant 0 : index
    %6 = vector.load %arg4[%c0_5, %c0_6] : memref<1x32xf32, #tpu.memory_space<vmem>>, vector<1x32xf32>
    %7 = vector.broadcast %6 : vector<1x32xf32> to vector<512x32xf32>
    %8 = arith.addf %5, %7 : vector<512x32xf32>
    %c0_7 = arith.constant 0 : index
    %c0_8 = arith.constant 0 : index
    %9 = vector.load %arg5[%c0_7, %c0_8] : memref<32x32xbf16, #tpu.memory_space<vmem>>, vector<32x32xbf16>
    %cst_9 = arith.constant dense<0.000000e+00> : vector<512x32xf32>
    %10 = tpu.matmul %3, %9, %cst_9 {dimension_numbers = #tpu.dot_dimension_numbers<[1], [0], [0], [1], [0, 0, 1, 1], [], []>} : vector<512x32xbf16>, vector<32x32xbf16>, vector<512x32xf32> -> vector<512x32xf32>
    %c0_10 = arith.constant 0 : index
    %c0_11 = arith.constant 0 : index
    %11 = vector.load %arg6[%c0_10, %c0_11] : memref<1x32xf32, #tpu.memory_space<vmem>>, vector<1x32xf32>
    %12 = vector.broadcast %11 : vector<1x32xf32> to vector<512x32xf32>
    %13 = arith.addf %10, %12 : vector<512x32xf32>
    %c0_12 = arith.constant 0 : index
    %c0_13 = arith.constant 0 : index
    %14 = vector.load %arg7[%c0_12, %c0_13] : memref<32x128xbf16, #tpu.memory_space<vmem>>, vector<32x128xbf16>
    %cst_14 = arith.constant dense<0.000000e+00> : vector<512x128xf32>
    %15 = tpu.matmul %3, %14, %cst_14 {dimension_numbers = #tpu.dot_dimension_numbers<[1], [0], [0], [1], [0, 0, 1, 1], [], []>} : vector<512x32xbf16>, vector<32x128xbf16>, vector<512x128xf32> -> vector<512x128xf32>
    %16 = arith.truncf %8 : vector<512x32xf32> to vector<512x32xbf16>
    %c0_15 = arith.constant 0 : index
    %c0_16 = arith.constant 0 : index
    %17 = vector.load %arg11[%c0_15, %c0_16] : memref<512x32xbf16, #tpu.memory_space<vmem>>, vector<512x32xbf16>
    tpu.vector_store %arg11[%c0_15, %c0_16], %16 {strides = array<i32>} : memref<512x32xbf16, #tpu.memory_space<vmem>>, vector<512x32xbf16>,
    %18 = arith.truncf %13 : vector<512x32xf32> to vector<512x32xbf16>
    %c0_17 = arith.constant 0 : index
    %c0_18 = arith.constant 0 : index
    %19 = vector.load %arg12[%c0_17, %c0_18] : memref<512x32xbf16, #tpu.memory_space<vmem>>, vector<512x32xbf16>
    tpu.vector_store %arg12[%c0_17, %c0_18], %18 {strides = array<i32>} : memref<512x32xbf16, #tpu.memory_space<vmem>>, vector<512x32xbf16>,
    %20 = arith.truncf %15 : vector<512x128xf32> to vector<512x128xbf16>
    %c0_19 = arith.constant 0 : index
    %c0_20 = arith.constant 0 : index
    %21 = vector.load %arg13[%c0_19, %c0_20] : memref<512x128xbf16, #tpu.memory_space<vmem>>, vector<512x128xbf16>
    tpu.vector_store %arg13[%c0_19, %c0_20], %20 {strides = array<i32>} : memref<512x128xbf16, #tpu.memory_space<vmem>>, vector<512x128xbf16>,
    %c0_i32 = arith.constant 0 : i32
    %c4_i32 = arith.constant 4 : i32
    %22 = arith.addi %c0_i32, %c4_i32 : i32
    %c1_i32 = arith.constant 1 : i32
    scf.for %arg14 = %c0_i32 to %22 step %c1_i32  : i32 {
      %c1_i32_22 = arith.constant 1 : i32
      %23 = arith.muli %arg14, %c1_i32_22 : i32
      %c0_i32_23 = arith.constant 0 : i32
      %24 = arith.addi %c0_i32_23, %23 : i32
      %c128_i32 = arith.constant 128 : i32
      %25 = arith.muli %24, %c128_i32 : i32
      %26 = tpu.assume_multiple %25, 128 : i32
      %27 = arith.index_cast %26 : i32 to index
      %c0_24 = arith.constant 0 : index
      %28 = vector.load %arg11[%27, %c0_24] : memref<512x32xbf16, #tpu.memory_space<vmem>>, vector<128x32xbf16>
      %29 = arith.index_cast %26 : i32 to index
      %c0_25 = arith.constant 0 : index
      %30 = vector.load %arg12[%29, %c0_25] : memref<512x32xbf16, #tpu.memory_space<vmem>>, vector<128x32xbf16>
      %31 = arith.index_cast %26 : i32 to index
      %c0_26 = arith.constant 0 : index
      %32 = vector.load %arg13[%31, %c0_26] : memref<512x128xbf16, #tpu.memory_space<vmem>>, vector<128x128xbf16>
      %cst_27 = arith.constant 0.000000e+00 : f32
      %33 = vector.broadcast %cst_27 : f32 to vector<2x64x32xf32>
      %34 = vector.extract_strided_slice %28 {offsets = [0, 0], sizes = [128, 8], strides = [1, 1]} : vector<128x32xbf16> to vector<128x8xbf16>
      %35 = vector.shape_cast %34 : vector<128x8xbf16> to vector<2x64x8xbf16>
      %36 = vector.extract_strided_slice %30 {offsets = [0, 0], sizes = [128, 8], strides = [1, 1]} : vector<128x32xbf16> to vector<128x8xbf16>
      %37 = vector.shape_cast %36 : vector<128x8xbf16> to vector<2x64x8xbf16>
      %cst_28 = arith.constant dense<0.000000e+00> : vector<2x64x64xf32>
      %38 = tpu.matmul %35, %37, %cst_28 {dimension_numbers = #tpu.dot_dimension_numbers<[2], [2], [1], [1], [0, 0, 0, 1, 1, 1], [0], [0]>} : vector<2x64x8xbf16>, vector<2x64x8xbf16>, vector<2x64x64xf32> -> vector<2x64x64xf32>
      %c0_29 = arith.constant 0 : index
      %c0_30 = arith.constant 0 : index
      %c0_31 = arith.constant 0 : index
      %39 = vector.load %arg9[%c0_29, %c0_30, %c0_31] : memref<4x64x64xf32, #tpu.memory_space<vmem>>, vector<1x64x64xf32>
      %40 = vector.shape_cast %39 : vector<1x64x64xf32> to vector<64x64xf32>
      %41 = vector.shape_cast %40 : vector<64x64xf32> to vector<1x64x64xf32>
      %42 = vector.broadcast %41 : vector<1x64x64xf32> to vector<2x64x64xf32>
      %43 = arith.addf %38, %42 : vector<2x64x64xf32>
      %cst_32 = arith.constant dense<0xFF800000> : vector<2x64xf32>
      %44 = vector.multi_reduction <maximumf>, %43, %cst_32 [2] : vector<2x64x64xf32> to vector<2x64xf32>
      %45 = vector.shape_cast %44 : vector<2x64xf32> to vector<2x64x1xf32>
      %46 = vector.broadcast %45 : vector<2x64x1xf32> to vector<2x64x64xf32>
      %47 = arith.subf %43, %46 : vector<2x64x64xf32>
      %48 = math.exp %47 : vector<2x64x64xf32>
      %cst_33 = arith.constant dense<0.000000e+00> : vector<2x64xf32>
      %49 = vector.multi_reduction <add>, %48, %cst_33 [2] : vector<2x64x64xf32> to vector<2x64xf32>
      %50 = vector.shape_cast %49 : vector<2x64xf32> to vector<2x64x1xf32>
      %51 = tpu.reciprocal %50 {approx = true} : vector<2x64x1xf32> -> vector<2x64x1xf32>
      %52 = vector.broadcast %51 : vector<2x64x1xf32> to vector<2x64x64xf32>
      %53 = arith.mulf %48, %52 : vector<2x64x64xf32>
      %54 = arith.truncf %53 : vector<2x64x64xf32> to vector<2x64x64xbf16>
      %55 = vector.extract_strided_slice %32 {offsets = [0, 0], sizes = [128, 32], strides = [1, 1]} : vector<128x128xbf16> to vector<128x32xbf16>
      %56 = vector.shape_cast %55 : vector<128x32xbf16> to vector<2x64x32xbf16>
      %cst_34 = arith.constant dense<0.000000e+00> : vector<2x64x32xf32>
      %57 = tpu.matmul %54, %56, %cst_34 {dimension_numbers = #tpu.dot_dimension_numbers<[2], [1], [1], [2], [0, 0, 0, 1, 1, 2], [0], [0]>} : vector<2x64x64xbf16>, vector<2x64x32xbf16>, vector<2x64x32xf32> -> vector<2x64x32xf32>
      %58 = arith.addf %33, %57 : vector<2x64x32xf32>
      %59 = vector.extract_strided_slice %28 {offsets = [0, 8], sizes = [128, 8], strides = [1, 1]} : vector<128x32xbf16> to vector<128x8xbf16>
      %60 = vector.shape_cast %59 : vector<128x8xbf16> to vector<2x64x8xbf16>
      %61 = vector.extract_strided_slice %30 {offsets = [0, 8], sizes = [128, 8], strides = [1, 1]} : vector<128x32xbf16> to vector<128x8xbf16>
      %62 = vector.shape_cast %61 : vector<128x8xbf16> to vector<2x64x8xbf16>
      %cst_35 = arith.constant dense<0.000000e+00> : vector<2x64x64xf32>
      %63 = tpu.matmul %60, %62, %cst_35 {dimension_numbers = #tpu.dot_dimension_numbers<[2], [2], [1], [1], [0, 0, 0, 1, 1, 1], [0], [0]>} : vector<2x64x8xbf16>, vector<2x64x8xbf16>, vector<2x64x64xf32> -> vector<2x64x64xf32>
      %c1 = arith.constant 1 : index
      %c0_36 = arith.constant 0 : index
      %c0_37 = arith.constant 0 : index
      %64 = vector.load %arg9[%c1, %c0_36, %c0_37] : memref<4x64x64xf32, #tpu.memory_space<vmem>>, vector<1x64x64xf32>
      %65 = vector.shape_cast %64 : vector<1x64x64xf32> to vector<64x64xf32>
      %66 = vector.shape_cast %65 : vector<64x64xf32> to vector<1x64x64xf32>
      %67 = vector.broadcast %66 : vector<1x64x64xf32> to vector<2x64x64xf32>
      %68 = arith.addf %63, %67 : vector<2x64x64xf32>
      %cst_38 = arith.constant dense<0xFF800000> : vector<2x64xf32>
      %69 = vector.multi_reduction <maximumf>, %68, %cst_38 [2] : vector<2x64x64xf32> to vector<2x64xf32>
      %70 = vector.shape_cast %69 : vector<2x64xf32> to vector<2x64x1xf32>
      %71 = vector.broadcast %70 : vector<2x64x1xf32> to vector<2x64x64xf32>
      %72 = arith.subf %68, %71 : vector<2x64x64xf32>
      %73 = math.exp %72 : vector<2x64x64xf32>
      %cst_39 = arith.constant dense<0.000000e+00> : vector<2x64xf32>
      %74 = vector.multi_reduction <add>, %73, %cst_39 [2] : vector<2x64x64xf32> to vector<2x64xf32>
      %75 = vector.shape_cast %74 : vector<2x64xf32> to vector<2x64x1xf32>
      %76 = tpu.reciprocal %75 {approx = true} : vector<2x64x1xf32> -> vector<2x64x1xf32>
      %77 = vector.broadcast %76 : vector<2x64x1xf32> to vector<2x64x64xf32>
      %78 = arith.mulf %73, %77 : vector<2x64x64xf32>
      %79 = arith.truncf %78 : vector<2x64x64xf32> to vector<2x64x64xbf16>
      %80 = vector.extract_strided_slice %32 {offsets = [0, 32], sizes = [128, 32], strides = [1, 1]} : vector<128x128xbf16> to vector<128x32xbf16>
      %81 = vector.shape_cast %80 : vector<128x32xbf16> to vector<2x64x32xbf16>
      %cst_40 = arith.constant dense<0.000000e+00> : vector<2x64x32xf32>
      %82 = tpu.matmul %79, %81, %cst_40 {dimension_numbers = #tpu.dot_dimension_numbers<[2], [1], [1], [2], [0, 0, 0, 1, 1, 2], [0], [0]>} : vector<2x64x64xbf16>, vector<2x64x32xbf16>, vector<2x64x32xf32> -> vector<2x64x32xf32>
      %83 = arith.addf %58, %82 : vector<2x64x32xf32>
      %84 = vector.extract_strided_slice %28 {offsets = [0, 16], sizes = [128, 8], strides = [1, 1]} : vector<128x32xbf16> to vector<128x8xbf16>
      %85 = vector.shape_cast %84 : vector<128x8xbf16> to vector<2x64x8xbf16>
      %86 = vector.extract_strided_slice %30 {offsets = [0, 16], sizes = [128, 8], strides = [1, 1]} : vector<128x32xbf16> to vector<128x8xbf16>
      %87 = vector.shape_cast %86 : vector<128x8xbf16> to vector<2x64x8xbf16>
      %cst_41 = arith.constant dense<0.000000e+00> : vector<2x64x64xf32>
      %88 = tpu.matmul %85, %87, %cst_41 {dimension_numbers = #tpu.dot_dimension_numbers<[2], [2], [1], [1], [0, 0, 0, 1, 1, 1], [0], [0]>} : vector<2x64x8xbf16>, vector<2x64x8xbf16>, vector<2x64x64xf32> -> vector<2x64x64xf32>
      %c2 = arith.constant 2 : index
      %c0_42 = arith.constant 0 : index
      %c0_43 = arith.constant 0 : index
      %89 = vector.load %arg9[%c2, %c0_42, %c0_43] : memref<4x64x64xf32, #tpu.memory_space<vmem>>, vector<1x64x64xf32>
      %90 = vector.shape_cast %89 : vector<1x64x64xf32> to vector<64x64xf32>
      %91 = vector.shape_cast %90 : vector<64x64xf32> to vector<1x64x64xf32>
      %92 = vector.broadcast %91 : vector<1x64x64xf32> to vector<2x64x64xf32>
      %93 = arith.addf %88, %92 : vector<2x64x64xf32>
      %cst_44 = arith.constant dense<0xFF800000> : vector<2x64xf32>
      %94 = vector.multi_reduction <maximumf>, %93, %cst_44 [2] : vector<2x64x64xf32> to vector<2x64xf32>
      %95 = vector.shape_cast %94 : vector<2x64xf32> to vector<2x64x1xf32>
      %96 = vector.broadcast %95 : vector<2x64x1xf32> to vector<2x64x64xf32>
      %97 = arith.subf %93, %96 : vector<2x64x64xf32>
      %98 = math.exp %97 : vector<2x64x64xf32>
      %cst_45 = arith.constant dense<0.000000e+00> : vector<2x64xf32>
      %99 = vector.multi_reduction <add>, %98, %cst_45 [2] : vector<2x64x64xf32> to vector<2x64xf32>
      %100 = vector.shape_cast %99 : vector<2x64xf32> to vector<2x64x1xf32>
      %101 = tpu.reciprocal %100 {approx = true} : vector<2x64x1xf32> -> vector<2x64x1xf32>
      %102 = vector.broadcast %101 : vector<2x64x1xf32> to vector<2x64x64xf32>
      %103 = arith.mulf %98, %102 : vector<2x64x64xf32>
      %104 = arith.truncf %103 : vector<2x64x64xf32> to vector<2x64x64xbf16>
      %105 = vector.extract_strided_slice %32 {offsets = [0, 64], sizes = [128, 32], strides = [1, 1]} : vector<128x128xbf16> to vector<128x32xbf16>
      %106 = vector.shape_cast %105 : vector<128x32xbf16> to vector<2x64x32xbf16>
      %cst_46 = arith.constant dense<0.000000e+00> : vector<2x64x32xf32>
      %107 = tpu.matmul %104, %106, %cst_46 {dimension_numbers = #tpu.dot_dimension_numbers<[2], [1], [1], [2], [0, 0, 0, 1, 1, 2], [0], [0]>} : vector<2x64x64xbf16>, vector<2x64x32xbf16>, vector<2x64x32xf32> -> vector<2x64x32xf32>
      %108 = arith.addf %83, %107 : vector<2x64x32xf32>
      %109 = vector.extract_strided_slice %28 {offsets = [0, 24], sizes = [128, 8], strides = [1, 1]} : vector<128x32xbf16> to vector<128x8xbf16>
      %110 = vector.shape_cast %109 : vector<128x8xbf16> to vector<2x64x8xbf16>
      %111 = vector.extract_strided_slice %30 {offsets = [0, 24], sizes = [128, 8], strides = [1, 1]} : vector<128x32xbf16> to vector<128x8xbf16>
      %112 = vector.shape_cast %111 : vector<128x8xbf16> to vector<2x64x8xbf16>
      %cst_47 = arith.constant dense<0.000000e+00> : vector<2x64x64xf32>
      %113 = tpu.matmul %110, %112, %cst_47 {dimension_numbers = #tpu.dot_dimension_numbers<[2], [2], [1], [1], [0, 0, 0, 1, 1, 1], [0], [0]>} : vector<2x64x8xbf16>, vector<2x64x8xbf16>, vector<2x64x64xf32> -> vector<2x64x64xf32>
      %c3 = arith.constant 3 : index
      %c0_48 = arith.constant 0 : index
      %c0_49 = arith.constant 0 : index
      %114 = vector.load %arg9[%c3, %c0_48, %c0_49] : memref<4x64x64xf32, #tpu.memory_space<vmem>>, vector<1x64x64xf32>
      %115 = vector.shape_cast %114 : vector<1x64x64xf32> to vector<64x64xf32>
      %116 = vector.shape_cast %115 : vector<64x64xf32> to vector<1x64x64xf32>
      %117 = vector.broadcast %116 : vector<1x64x64xf32> to vector<2x64x64xf32>
      %118 = arith.addf %113, %117 : vector<2x64x64xf32>
      %cst_50 = arith.constant dense<0xFF800000> : vector<2x64xf32>
      %119 = vector.multi_reduction <maximumf>, %118, %cst_50 [2] : vector<2x64x64xf32> to vector<2x64xf32>
      %120 = vector.shape_cast %119 : vector<2x64xf32> to vector<2x64x1xf32>
      %121 = vector.broadcast %120 : vector<2x64x1xf32> to vector<2x64x64xf32>
      %122 = arith.subf %118, %121 : vector<2x64x64xf32>
      %123 = math.exp %122 : vector<2x64x64xf32>
      %cst_51 = arith.constant dense<0.000000e+00> : vector<2x64xf32>
      %124 = vector.multi_reduction <add>, %123, %cst_51 [2] : vector<2x64x64xf32> to vector<2x64xf32>
      %125 = vector.shape_cast %124 : vector<2x64xf32> to vector<2x64x1xf32>
      %126 = tpu.reciprocal %125 {approx = true} : vector<2x64x1xf32> -> vector<2x64x1xf32>
      %127 = vector.broadcast %126 : vector<2x64x1xf32> to vector<2x64x64xf32>
      %128 = arith.mulf %123, %127 : vector<2x64x64xf32>
      %129 = arith.truncf %128 : vector<2x64x64xf32> to vector<2x64x64xbf16>
      %130 = vector.extract_strided_slice %32 {offsets = [0, 96], sizes = [128, 32], strides = [1, 1]} : vector<128x128xbf16> to vector<128x32xbf16>
      %131 = vector.shape_cast %130 : vector<128x32xbf16> to vector<2x64x32xbf16>
      %cst_52 = arith.constant dense<0.000000e+00> : vector<2x64x32xf32>
      %132 = tpu.matmul %129, %131, %cst_52 {dimension_numbers = #tpu.dot_dimension_numbers<[2], [1], [1], [2], [0, 0, 0, 1, 1, 2], [0], [0]>} : vector<2x64x64xbf16>, vector<2x64x32xbf16>, vector<2x64x32xf32> -> vector<2x64x32xf32>
      %133 = arith.addf %108, %132 : vector<2x64x32xf32>
      %c0_53 = arith.constant 0 : index
      %c0_54 = arith.constant 0 : index
      %134 = vector.load %arg8[%c0_53, %c0_54] : memref<1x32xf32, #tpu.memory_space<vmem>>, vector<1x32xf32>
      %135 = vector.shape_cast %134 : vector<1x32xf32> to vector<1x1x32xf32>
      %136 = vector.broadcast %135 : vector<1x1x32xf32> to vector<2x64x32xf32>
      %137 = arith.addf %133, %136 : vector<2x64x32xf32>
      %138 = vector.shape_cast %137 : vector<2x64x32xf32> to vector<128x32xf32>
      %139 = arith.index_cast %26 : i32 to index
      %c0_55 = arith.constant 0 : index
      %140 = vector.load %arg10[%139, %c0_55] : memref<512x32xf32, #tpu.memory_space<vmem>>, vector<128x32xf32>
      tpu.vector_store %arg10[%139, %c0_55], %138 {strides = array<i32>} : memref<512x32xf32, #tpu.memory_space<vmem>>, vector<128x32xf32>,
    }
    %c4_i32_21 = arith.constant 4 : i32
    return
  }
  func.func @transform_0(%arg0: i32) -> (i32, i32) {
    %c0_i32 = arith.constant 0 : i32
    %c0_i32_0 = arith.constant 0 : i32
    return %arg0, %c0_i32 : i32, i32
  }
  func.func @transform_1(%arg0: i32) -> (i32, i32) {
    %c0_i32 = arith.constant 0 : i32
    %c0_i32_0 = arith.constant 0 : i32
    return %arg0, %c0_i32 : i32, i32
  }
  func.func @transform_2(%arg0: i32) -> (i32, i32) {
    %c0_i32 = arith.constant 0 : i32
    %c0_i32_0 = arith.constant 0 : i32
    %c0_i32_1 = arith.constant 0 : i32
    return %c0_i32, %c0_i32_0 : i32, i32
  }
  func.func @transform_3(%arg0: i32) -> (i32, i32) {
    %c0_i32 = arith.constant 0 : i32
    %c0_i32_0 = arith.constant 0 : i32
    %c0_i32_1 = arith.constant 0 : i32
    return %c0_i32, %c0_i32_0 : i32, i32
  }
  func.func @transform_4(%arg0: i32) -> (i32, i32) {
    %c0_i32 = arith.constant 0 : i32
    %c0_i32_0 = arith.constant 0 : i32
    %c0_i32_1 = arith.constant 0 : i32
    return %c0_i32, %c0_i32_0 : i32, i32
  }
  func.func @transform_5(%arg0: i32) -> (i32, i32) {
    %c0_i32 = arith.constant 0 : i32
    %c0_i32_0 = arith.constant 0 : i32
    %c0_i32_1 = arith.constant 0 : i32
    return %c0_i32, %c0_i32_0 : i32, i32
  }
  func.func @transform_6(%arg0: i32) -> (i32, i32) {
    %c0_i32 = arith.constant 0 : i32
    %c0_i32_0 = arith.constant 0 : i32
    %c0_i32_1 = arith.constant 0 : i32
    return %c0_i32, %c0_i32_0 : i32, i32
  }
  func.func @transform_7(%arg0: i32) -> (i32, i32) {
    %c0_i32 = arith.constant 0 : i32
    %c0_i32_0 = arith.constant 0 : i32
    %c0_i32_1 = arith.constant 0 : i32
    return %c0_i32, %c0_i32_0 : i32, i32
  }
  func.func @transform_8(%arg0: i32) -> (i32, i32, i32) {
    %c0_i32 = arith.constant 0 : i32
    %c0_i32_0 = arith.constant 0 : i32
    %c0_i32_1 = arith.constant 0 : i32
    %c0_i32_2 = arith.constant 0 : i32
    return %c0_i32, %c0_i32_0, %c0_i32_1 : i32, i32, i32
  }
  func.func @transform_9(%arg0: i32) -> (i32, i32) {
    %c0_i32 = arith.constant 0 : i32
    %c0_i32_0 = arith.constant 0 : i32
    return %arg0, %c0_i32 : i32, i32
  }
}

</mosaic_0001>

<llo_original>
// kernel: tpu_custom_call.1
$region0: #{tpu_custom_call.1}
  #allocation0 [shape = 'u32[]', space=smem, size = 0x4, offset = 0x4, fixed_abs, tag = 'smem constant byte address 0x4 - core index']
  #allocation1 [shape = 'u32[144,128]{1,0:T(1,128)}', space=vmem, size = 0x12000, scoped, tag = 'internal scratch']
  #allocation2 [shape = 'bf16[512,32]{1,0:T(8,128)(2,1)}', space=vmem, size = 0x20000, scoped, tag = 'scratch operand']
  #allocation3 [shape = 'bf16[512,32]{1,0:T(8,128)(2,1)}', space=vmem, size = 0x20000, scoped, tag = 'scratch operand']
  #allocation4 [shape = 'bf16[512,128]{1,0:T(8,128)(2,1)}', space=vmem, size = 0x20000, scoped, tag = 'scratch operand']
  %s0 = inlined_call_operand.vmem [shape: f32[2048,32], index: 0, kind: input, shape index: {}]
  %s1 = inlined_call_operand.vmem [shape: f32[2048,32], index: 1, kind: input, shape index: {}]
  %s2 = inlined_call_operand.vmem [shape: bf16[32,32], index: 2, kind: input, shape index: {}]
  %s3 = inlined_call_operand.vmem [shape: f32[1,32], index: 3, kind: input, shape index: {}]
  %s4 = inlined_call_operand.vmem [shape: bf16[32,32], index: 4, kind: input, shape index: {}]
  %s5 = inlined_call_operand.vmem [shape: f32[1,32], index: 5, kind: input, shape index: {}]
  %s6 = inlined_call_operand.vmem [shape: bf16[32,128], index: 6, kind: input, shape index: {}]
  %s7 = inlined_call_operand.vmem [shape: f32[1,32], index: 7, kind: input, shape index: {}]
  %s8 = inlined_call_operand.vmem [shape: f32[4,64,64], index: 8, kind: input, shape index: {}]
  %s9 = inlined_call_operand.vmem [shape: f32[2048,32], index: 9, kind: output, shape index: {}]
  %s10 = sld [smem:[#allocation0]]
  $region76: #{tpu_custom_call.1} parent=0
    _
  %s12 = ssub.s32 1, %s10
  %s13 = scalar_select 0, %s12, %s10
  loop: start=0, step=1, limit=6
  $region2: #{tpu_custom_call.1} parent=0 // loop_pre_header
    _
  $region3: #{tpu_custom_call.1} parent=0 // loop_header
    %s15 = sphi 0, %s19
    %p16 = scmp.ge.s32.totalorder %s15, 6
    %s25 = sphi 0, %s27
    %s28 = sphi 0, %s25
    %s29 = sphi 0, %s28
    %s45 = sphi 0, %s29
    %s51 = sphi 0, %s53
    %s54 = sphi 0, %s51
    %s55 = sphi 0, %s54
    %s71 = sphi 0, %s55
    %s75 = sphi 0, %s75
    %s77 = sphi 0, %s75
    %s78 = sphi 0, %s77
    %s92 = sphi 0, %s78
    %s96 = sphi 0, %s96
    %s98 = sphi 0, %s96
    %s99 = sphi 0, %s98
    %s113 = sphi 0, %s99
    %s117 = sphi 0, %s117
    %s119 = sphi 0, %s117
    %s120 = sphi 0, %s119
    %s134 = sphi 0, %s120
    %s138 = sphi 0, %s138
    %s140 = sphi 0, %s138
    %s141 = sphi 0, %s140
    %s155 = sphi 0, %s141
    %s159 = sphi 0, %s159
    %s161 = sphi 0, %s159
    %s162 = sphi 0, %s161
    %s176 = sphi 0, %s162
    %s180 = sphi 0, %s180
    %s182 = sphi 0, %s180
    %s183 = sphi 0, %s182
    %s197 = sphi 0, %s183
    %s201 = sphi 0, %s201
    %s203 = sphi 0, %s201
    %s204 = sphi 0, %s203
    %s218 = sphi 0, %s204
    %s224 = sphi 0, %s226
    %s227 = sphi 0, %s224
    %s228 = sphi 0, %s227
    %s244 = sphi 0, %s228
  $region4: #{tpu_custom_call.1} parent=0 // loop_header_branch
    %18 = sbr.rel (%p16) target = $region8
  $region5: #{tpu_custom_call.1} parent=0 // loop_body
    %s20 = ssub.s32 %s15, 1
    %s21 = ssub.s32 %s15, 2
    %s22 = sadd.s32 %s15, 1
    %s23 = ssub.s32 %s15, %s22
    %p24 = scmp.eq.s32.totalorder %s23, 0
    %s26 = sadd.s32 %s25, 1
    %s27 = scalar_select %p24, %s25, %s26
    %p30 = pneg %p24
    %p31 = scmp.eq.s32.totalorder %s15, 3
    %p32 = por %p30, %p31
    %p33 = scmp.ne.s32.totalorder %s25, %s28
    %p34 = scmp.eq.s32.totalorder %s15, 0
    %p35 = por %p33, %p34
    %p36 = scmp.ne.s32.totalorder %s25, %s28
    %p37 = scmp.eq.s32.totalorder %s20, 3
    %p38 = por %p36, %p37
    %p39 = scmp.ne.s32.totalorder %s28, %s29
    %p40 = scmp.eq.s32.totalorder %s20, 0
    %p41 = por %p39, %p40
    %p42 = scmp.ne.s32.totalorder %s28, %s29
    %p43 = scmp.eq.s32.totalorder %s21, 3
    %p44 = por %p42, %p43
    %p46 = scmp.ne.s32.totalorder %s29, %s45
    %p47 = scmp.eq.s32.totalorder %s21, 0
    %p48 = por %p46, %p47
    %s49 = ssub.s32 %s15, %s22
    %p50 = scmp.eq.s32.totalorder %s49, 0
    %s52 = sadd.s32 %s51, 1
    %s53 = scalar_select %p50, %s51, %s52
    %p56 = pneg %p50
    %p57 = scmp.eq.s32.totalorder %s15, 3
    %p58 = por %p56, %p57
    %p59 = scmp.ne.s32.totalorder %s51, %s54
    %p60 = scmp.eq.s32.totalorder %s15, 0
    %p61 = por %p59, %p60
    %p62 = scmp.ne.s32.totalorder %s51, %s54
    %p63 = scmp.eq.s32.totalorder %s20, 3
    %p64 = por %p62, %p63
    %p65 = scmp.ne.s32.totalorder %s54, %s55
    %p66 = scmp.eq.s32.totalorder %s20, 0
    %p67 = por %p65, %p66
    %p68 = scmp.ne.s32.totalorder %s54, %s55
    %p69 = scmp.eq.s32.totalorder %s21, 3
    %p70 = por %p68, %p69
    %p72 = scmp.ne.s32.totalorder %s55, %s71
    %p73 = scmp.eq.s32.totalorder %s21, 0
    %p74 = por %p72, %p73
    %s76 = sadd.s32 %s75, 1
    %p79 = scmp.eq.s32.totalorder %s15, 3
    %p80 = scmp.ne.s32.totalorder %s75, %s77
    %p81 = scmp.eq.s32.totalorder %s15, 0
    %p82 = por %p80, %p81
    %p83 = scmp.ne.s32.totalorder %s75, %s77
    %p84 = scmp.eq.s32.totalorder %s20, 3
    %p85 = por %p83, %p84
    %p86 = scmp.ne.s32.totalorder %s77, %s78
    %p87 = scmp.eq.s32.totalorder %s20, 0
    %p88 = por %p86, %p87
    %p89 = scmp.ne.s32.totalorder %s77, %s78
    %p90 = scmp.eq.s32.totalorder %s21, 3
    %p91 = por %p89, %p90
    %p93 = scmp.ne.s32.totalorder %s78, %s92
    %p94 = scmp.eq.s32.totalorder %s21, 0
    %p95 = por %p93, %p94
    %s97 = sadd.s32 %s96, 1
    %p100 = scmp.eq.s32.totalorder %s15, 3
    %p101 = scmp.ne.s32.totalorder %s96, %s98
    %p102 = scmp.eq.s32.totalorder %s15, 0
    %p103 = por %p101, %p102
    %p104 = scmp.ne.s32.totalorder %s96, %s98
    %p105 = scmp.eq.s32.totalorder %s20, 3
    %p106 = por %p104, %p105
    %p107 = scmp.ne.s32.totalorder %s98, %s99
    %p108 = scmp.eq.s32.totalorder %s20, 0
    %p109 = por %p107, %p108
    %p110 = scmp.ne.s32.totalorder %s98, %s99
    %p111 = scmp.eq.s32.totalorder %s21, 3
    %p112 = por %p110, %p111
    %p114 = scmp.ne.s32.totalorder %s99, %s113
    %p115 = scmp.eq.s32.totalorder %s21, 0
    %p116 = por %p114, %p115
    %s118 = sadd.s32 %s117, 1
    %p121 = scmp.eq.s32.totalorder %s15, 3
    %p122 = scmp.ne.s32.totalorder %s117, %s119
    %p123 = scmp.eq.s32.totalorder %s15, 0
    %p124 = por %p122, %p123
    %p125 = scmp.ne.s32.totalorder %s117, %s119
    %p126 = scmp.eq.s32.totalorder %s20, 3
    %p127 = por %p125, %p126
    %p128 = scmp.ne.s32.totalorder %s119, %s120
    %p129 = scmp.eq.s32.totalorder %s20, 0
    %p130 = por %p128, %p129
    %p131 = scmp.ne.s32.totalorder %s119, %s120
    %p132 = scmp.eq.s32.totalorder %s21, 3
    %p133 = por %p131, %p132
    %p135 = scmp.ne.s32.totalorder %s120, %s134
    %p136 = scmp.eq.s32.totalorder %s21, 0
    %p137 = por %p135, %p136
    %s139 = sadd.s32 %s138, 1
    %p142 = scmp.eq.s32.totalorder %s15, 3
    %p143 = scmp.ne.s32.totalorder %s138, %s140
    %p144 = scmp.eq.s32.totalorder %s15, 0
    %p145 = por %p143, %p144
    %p146 = scmp.ne.s32.totalorder %s138, %s140
    %p147 = scmp.eq.s32.totalorder %s20, 3
    %p148 = por %p146, %p147
    %p149 = scmp.ne.s32.totalorder %s140, %s141
    %p150 = scmp.eq.s32.totalorder %s20, 0
    %p151 = por %p149, %p150
    %p152 = scmp.ne.s32.totalorder %s140, %s141
    %p153 = scmp.eq.s32.totalorder %s21, 3
    %p154 = por %p152, %p153
    %p156 = scmp.ne.s32.totalorder %s141, %s155
    %p157 = scmp.eq.s32.totalorder %s21, 0
    %p158 = por %p156, %p157
    %s160 = sadd.s32 %s159, 1
    %p163 = scmp.eq.s32.totalorder %s15, 3
    %p164 = scmp.ne.s32.totalorder %s159, %s161
    %p165 = scmp.eq.s32.totalorder %s15, 0
    %p166 = por %p164, %p165
    %p167 = scmp.ne.s32.totalorder %s159, %s161
    %p168 = scmp.eq.s32.totalorder %s20, 3
    %p169 = por %p167, %p168
    %p170 = scmp.ne.s32.totalorder %s161, %s162
    %p171 = scmp.eq.s32.totalorder %s20, 0
    %p172 = por %p170, %p171
    %p173 = scmp.ne.s32.totalorder %s161, %s162
    %p174 = scmp.eq.s32.totalorder %s21, 3
    %p175 = por %p173, %p174
    %p177 = scmp.ne.s32.totalorder %s162, %s176
    %p178 = scmp.eq.s32.totalorder %s21, 0
    %p179 = por %p177, %p178
    %s181 = sadd.s32 %s180, 1
    %p184 = scmp.eq.s32.totalorder %s15, 3
    %p185 = scmp.ne.s32.totalorder %s180, %s182
    %p186 = scmp.eq.s32.totalorder %s15, 0
    %p187 = por %p185, %p186
    %p188 = scmp.ne.s32.totalorder %s180, %s182
    %p189 = scmp.eq.s32.totalorder %s20, 3
    %p190 = por %p188, %p189
    %p191 = scmp.ne.s32.totalorder %s182, %s183
    %p192 = scmp.eq.s32.totalorder %s20, 0
    %p193 = por %p191, %p192
    %p194 = scmp.ne.s32.totalorder %s182, %s183
    %p195 = scmp.eq.s32.totalorder %s21, 3
    %p196 = por %p194, %p195
    %p198 = scmp.ne.s32.totalorder %s183, %s197
    %p199 = scmp.eq.s32.totalorder %s21, 0
    %p200 = por %p198, %p199
    %s202 = sadd.s32 %s201, 1
    %p205 = scmp.eq.s32.totalorder %s15, 3
    %p206 = scmp.ne.s32.totalorder %s201, %s203
    %p207 = scmp.eq.s32.totalorder %s15, 0
    %p208 = por %p206, %p207
    %p209 = scmp.ne.s32.totalorder %s201, %s203
    %p210 = scmp.eq.s32.totalorder %s20, 3
    %p211 = por %p209, %p210
    %p212 = scmp.ne.s32.totalorder %s203, %s204
    %p213 = scmp.eq.s32.totalorder %s20, 0
    %p214 = por %p212, %p213
    %p215 = scmp.ne.s32.totalorder %s203, %s204
    %p216 = scmp.eq.s32.totalorder %s21, 3
    %p217 = por %p215, %p216
    %p219 = scmp.ne.s32.totalorder %s204, %s218
    %p220 = scmp.eq.s32.totalorder %s21, 0
    %p221 = por %p219, %p220
    %s222 = ssub.s32 %s15, %s22
    %p223 = scmp.eq.s32.totalorder %s222, 0
    %s225 = sadd.s32 %s224, 1
    %s226 = scalar_select %p223, %s224, %s225
    %p229 = pneg %p223
    %p230 = scmp.eq.s32.totalorder %s15, 3
    %p231 = por %p229, %p230
    %p232 = scmp.ne.s32.totalorder %s224, %s227
    %p233 = scmp.eq.s32.totalorder %s15, 0
    %p234 = por %p232, %p233
    %p235 = scmp.ne.s32.totalorder %s224, %s227
    %p236 = scmp.eq.s32.totalorder %s20, 3
    %p237 = por %p235, %p236
    %p238 = scmp.ne.s32.totalorder %s227, %s228
    %p239 = scmp.eq.s32.totalorder %s20, 0
    %p240 = por %p238, %p239
    %p241 = scmp.ne.s32.totalorder %s227, %s228
    %p242 = scmp.eq.s32.totalorder %s21, 3
    %p243 = por %p241, %p242
    %p245 = scmp.ne.s32.totalorder %s228, %s244
    %p246 = scmp.eq.s32.totalorder %s21, 0
    %p247 = por %p245, %p246
    %p248 = scmp.le.s32.totalorder 1, %s15
    %p249 = scmp.lt.s32.totalorder %s15, 5
    %p250 = pnand %p248, %p249
    %p251 = pneg %p250
    // Predicated region
    $region9: #{tpu_custom_call.1} parent=5 // pred_check
      _
    $region10: #{tpu_custom_call.1} parent=5 // pred_check_branch
      %253 = sbr.rel (%p250) target = $region12
    $region11: #{tpu_custom_call.1} parent=5 // pred_region
      %s254 = ssub.s32 %s15, 1
      // Predicated region
      $region13: #{tpu_custom_call.1} parent=11 // pred_check
        %p255 = pneg %p88
      $region14: #{tpu_custom_call.1} parent=11 // pred_check_branch
        %257 = sbr.rel (%p255) target = $region16
      $region15: #{tpu_custom_call.1} parent=11 // pred_region
        _
      $region16: #{tpu_custom_call.1} parent=11 // pred_fallthru
        _
      // Predicated region
      $region17: #{tpu_custom_call.1} parent=11 // pred_check
        %p258 = pneg %p109
      $region18: #{tpu_custom_call.1} parent=11 // pred_check_branch
        %260 = sbr.rel (%p258) target = $region20
      $region19: #{tpu_custom_call.1} parent=11 // pred_region
        _
      $region20: #{tpu_custom_call.1} parent=11 // pred_fallthru
        _
      // Predicated region
      $region21: #{tpu_custom_call.1} parent=11 // pred_check
        %p261 = pneg %p130
      $region22: #{tpu_custom_call.1} parent=11 // pred_check_branch
        %263 = sbr.rel (%p261) target = $region24
      $region23: #{tpu_custom_call.1} parent=11 // pred_region
        _
      $region24: #{tpu_custom_call.1} parent=11 // pred_fallthru
        _
      // Predicated region
      $region25: #{tpu_custom_call.1} parent=11 // pred_check
        %p264 = pneg %p151
      $region26: #{tpu_custom_call.1} parent=11 // pred_check_branch
        %266 = sbr.rel (%p264) target = $region28
      $region27: #{tpu_custom_call.1} parent=11 // pred_region
        _
      $region28: #{tpu_custom_call.1} parent=11 // pred_fallthru
        _
      // Predicated region
      $region29: #{tpu_custom_call.1} parent=11 // pred_check
        %p267 = pneg %p172
      $region30: #{tpu_custom_call.1} parent=11 // pred_check_branch
        %269 = sbr.rel (%p267) target = $region32
      $region31: #{tpu_custom_call.1} parent=11 // pred_region
        _
      $region32: #{tpu_custom_call.1} parent=11 // pred_fallthru
        _
      // Predicated region
      $region33: #{tpu_custom_call.1} parent=11 // pred_check
        %p270 = pneg %p193
      $region34: #{tpu_custom_call.1} parent=11 // pred_check_branch
        %272 = sbr.rel (%p270) target = $region36
      $region35: #{tpu_custom_call.1} parent=11 // pred_region
        _
      $region36: #{tpu_custom_call.1} parent=11 // pred_fallthru
        _
      // Predicated region
      $region37: #{tpu_custom_call.1} parent=11 // pred_check
        %p273 = pneg %p214
      $region38: #{tpu_custom_call.1} parent=11 // pred_check_branch
        %275 = sbr.rel (%p273) target = $region40
      $region39: #{tpu_custom_call.1} parent=11 // pred_region
        _
      $region40: #{tpu_custom_call.1} parent=11 // pred_fallthru
        _
    $region12: #{tpu_custom_call.1} parent=5 // pred_fallthru
      _
    %p276 = scmp.lt.s32.totalorder %s15, 4
    // Predicated region
    $region41: #{tpu_custom_call.1} parent=5 // pred_check
      %p277 = pneg %p276
    $region42: #{tpu_custom_call.1} parent=5 // pred_check_branch
      %279 = sbr.rel (%p277) target = $region44
    $region43: #{tpu_custom_call.1} parent=5 // pred_region
      // Predicated region
      $region45: #{tpu_custom_call.1} parent=43 // pred_check
        %p280 = pneg %p35
      $region46: #{tpu_custom_call.1} parent=43 // pred_check_branch
        %282 = sbr.rel (%p280) target = $region48
      $region47: #{tpu_custom_call.1} parent=43 // pred_region
        %s283 = smul.u32 64, %s15
        %p284 = scmp.lt.s32.totalorder %s283, 255
        %s285 = scalar_select %p284, %s283, 255
        %s286 = smul.addr %s285, 8
        %s287 = scalar_lea.vmem %s0, %s286
        %s288 = smul.u32 64, %s15
      $region48: #{tpu_custom_call.1} parent=43 // pred_fallthru
        _
      // Predicated region
      $region49: #{tpu_custom_call.1} parent=43 // pred_check
        %p289 = pneg %p61
      $region50: #{tpu_custom_call.1} parent=43 // pred_check_branch
        %291 = sbr.rel (%p289) target = $region52
      $region51: #{tpu_custom_call.1} parent=43 // pred_region
        %s292 = smul.u32 64, %s15
        %p293 = scmp.lt.s32.totalorder %s292, 255
        %s294 = scalar_select %p293, %s292, 255
        %s295 = smul.addr %s294, 8
        %s296 = scalar_lea.vmem %s1, %s295
        %s297 = smul.u32 64, %s15
      $region52: #{tpu_custom_call.1} parent=43 // pred_fallthru
        _
    $region44: #{tpu_custom_call.1} parent=5 // pred_fallthru
      _
    %p298 = scmp.le.s32.totalorder 1, %s15
    %p299 = scmp.lt.s32.totalorder %s15, 5
    %p300 = pnand %p298, %p299
    %p301 = pneg %p300
    // Predicated region
    $region53: #{tpu_custom_call.1} parent=5 // pred_check
      _
    $region54: #{tpu_custom_call.1} parent=5 // pred_check_branch
      %303 = sbr.rel (%p300) target = $region56
    $region55: #{tpu_custom_call.1} parent=5 // pred_region
      %s304 = ssub.s32 %s15, 1
      %s305 = smul.u32 64, %s20
      %p306 = scmp.lt.s32.totalorder %s305, 255
      %s307 = scalar_select %p306, %s305, 255
      %s308 = smul.addr %s307, 8
      %s309 = scalar_lea.vmem %s0, %s308
      %p310 = pneg %p41
      %p311 = pneg %p38
      %s312 = smul.u32 64, %s20
      %p313 = scmp.lt.s32.totalorder %s312, 255
      %s314 = scalar_select %p313, %s312, 255
      %s315 = smul.addr %s314, 8
      %s316 = scalar_lea.vmem %s1, %s315
      %p317 = pneg %p67
      %p318 = pneg %p64
      %p319 = pneg %p88
      %p320 = pneg %p85
      %p321 = pneg %p109
      %p322 = pneg %p106
      %p323 = pneg %p130
      %p324 = pneg %p127
      %p325 = pneg %p151
      %p326 = pneg %p148
      %p327 = pneg %p172
      %p328 = pneg %p169
      %p329 = pneg %p193
      %p330 = pneg %p190
      %p331 = pneg %p214
      %p332 = pneg %p211
      %p333 = pneg %p240
      %p334 = pneg %p237
      %s335 = smul.u32 64, %s20
      %p336 = scmp.lt.s32.totalorder %s335, 255
      %s337 = scalar_select %p336, %s335, 255
      %s338 = smul.addr %s337, 8
      %s339 = scalar_lea.vmem %s9, %s338
      %s340 = smul.u32 64, %s20
      %p341 = scmp.lt.s32.totalorder %s340, 255
      %s342 = scalar_select %p341, %s340, 255
      %s343 = smul.addr %s342, 8
      %s344 = scalar_lea.vmem %s0, %s343
      %s345 = smul.u32 64, %s20
      %s346 = smul.u32 64, %s20
      %p347 = scmp.lt.s32.totalorder %s346, 255
      %s348 = scalar_select %p347, %s346, 255
      %s349 = smul.addr %s348, 8
      %s350 = scalar_lea.vmem %s1, %s349
      %s351 = smul.u32 64, %s20
      %s352 = smul.u32 64, %s20
      %p353 = scmp.lt.s32.totalorder %s352, 255
      %s354 = scalar_select %p353, %s352, 255
      %s355 = smul.addr %s354, 8
      %s356 = scalar_lea.vmem %s9, %s355
      %s357 = smul.u32 64, %s20
      %v359 = vld [vmem:[%s344] sm:$0xff]
      %v360 = vld [vmem:[%s344 + $0x8] sm:$0xff]
      %v361 = vld [vmem:[%s344 + $0x10] sm:$0xff]
      %v362 = vld [vmem:[%s344 + $0x18] sm:$0xff]
      %v363 = vld [vmem:[%s344 + $0x20] sm:$0xff]
      %v364 = vld [vmem:[%s344 + $0x28] sm:$0xff]
      %v365 = vld [vmem:[%s344 + $0x30] sm:$0xff]
      %v366 = vld [vmem:[%s344 + $0x38] sm:$0xff]
      %v367 = vld [vmem:[%s344 + $0x40] sm:$0xff]
      %v368 = vld [vmem:[%s344 + $0x48] sm:$0xff]
      %v369 = vld [vmem:[%s344 + $0x50] sm:$0xff]
      %v370 = vld [vmem:[%s344 + $0x58] sm:$0xff]
      %v371 = vld [vmem:[%s344 + $0x60] sm:$0xff]
      %v372 = vld [vmem:[%s344 + $0x68] sm:$0xff]
      %v373 = vld [vmem:[%s344 + $0x70] sm:$0xff]
      %v374 = vld [vmem:[%s344 + $0x78] sm:$0xff]
      %v375 = vld [vmem:[%s344 + $0x80] sm:$0xff]
      %v376 = vld [vmem:[%s344 + $0x88] sm:$0xff]
      %v377 = vld [vmem:[%s344 + $0x90] sm:$0xff]
      %v378 = vld [vmem:[%s344 + $0x98] sm:$0xff]
      %v379 = vld [vmem:[%s344 + $0xa0] sm:$0xff]
      %v380 = vld [vmem:[%s344 + $0xa8] sm:$0xff]
      %v381 = vld [vmem:[%s344 + $0xb0] sm:$0xff]
      %v382 = vld [vmem:[%s344 + $0xb8] sm:$0xff]
      %v383 = vld [vmem:[%s344 + $0xc0] sm:$0xff]
      %v384 = vld [vmem:[%s344 + $0xc8] sm:$0xff]
      %v385 = vld [vmem:[%s344 + $0xd0] sm:$0xff]
      %v386 = vld [vmem:[%s344 + $0xd8] sm:$0xff]
      %v387 = vld [vmem:[%s344 + $0xe0] sm:$0xff]
      %v388 = vld [vmem:[%s344 + $0xe8] sm:$0xff]
      %v389 = vld [vmem:[%s344 + $0xf0] sm:$0xff]
      %v390 = vld [vmem:[%s344 + $0xf8] sm:$0xff]
      %v391 = vld [vmem:[%s344 + $0x100] sm:$0xff]
      %v392 = vld [vmem:[%s344 + $0x108] sm:$0xff]
      %v393 = vld [vmem:[%s344 + $0x110] sm:$0xff]
      %v394 = vld [vmem:[%s344 + $0x118] sm:$0xff]
      %v395 = vld [vmem:[%s344 + $0x120] sm:$0xff]
      %v396 = vld [vmem:[%s344 + $0x128] sm:$0xff]
      %v397 = vld [vmem:[%s344 + $0x130] sm:$0xff]
      %v398 = vld [vmem:[%s344 + $0x138] sm:$0xff]
      %v399 = vld [vmem:[%s344 + $0x140] sm:$0xff]
      %v400 = vld [vmem:[%s344 + $0x148] sm:$0xff]
      %v401 = vld [vmem:[%s344 + $0x150] sm:$0xff]
      %v402 = vld [vmem:[%s344 + $0x158] sm:$0xff]
      %v403 = vld [vmem:[%s344 + $0x160] sm:$0xff]
      %v404 = vld [vmem:[%s344 + $0x168] sm:$0xff]
      %v405 = vld [vmem:[%s344 + $0x170] sm:$0xff]
      %v406 = vld [vmem:[%s344 + $0x178] sm:$0xff]
      %v407 = vld [vmem:[%s344 + $0x180] sm:$0xff]
      %v408 = vld [vmem:[%s344 + $0x188] sm:$0xff]
      %v409 = vld [vmem:[%s344 + $0x190] sm:$0xff]
      %v410 = vld [vmem:[%s344 + $0x198] sm:$0xff]
      %v411 = vld [vmem:[%s344 + $0x1a0] sm:$0xff]
      %v412 = vld [vmem:[%s344 + $0x1a8] sm:$0xff]
      %v413 = vld [vmem:[%s344 + $0x1b0] sm:$0xff]
      %v414 = vld [vmem:[%s344 + $0x1b8] sm:$0xff]
      %v415 = vld [vmem:[%s344 + $0x1c0] sm:$0xff]
      %v416 = vld [vmem:[%s344 + $0x1c8] sm:$0xff]
      %v417 = vld [vmem:[%s344 + $0x1d0] sm:$0xff]
      %v418 = vld [vmem:[%s344 + $0x1d8] sm:$0xff]
      %v419 = vld [vmem:[%s344 + $0x1e0] sm:$0xff]
      %v420 = vld [vmem:[%s344 + $0x1e8] sm:$0xff]
      %v421 = vld [vmem:[%s344 + $0x1f0] sm:$0xff]
      %v422 = vld [vmem:[%s344 + $0x1f8] sm:$0xff]
      %v423 = vpack.c.bf16 %v360, %v359
      %v424 = vpack.c.bf16 %v362, %v361
      %v425 = vpack.c.bf16 %v364, %v363
      %v426 = vpack.c.bf16 %v366, %v365
      %v427 = vpack.c.bf16 %v368, %v367
      %v428 = vpack.c.bf16 %v370, %v369
      %v429 = vpack.c.bf16 %v372, %v371
      %v430 = vpack.c.bf16 %v374, %v373
      %v431 = vpack.c.bf16 %v376, %v375
      %v432 = vpack.c.bf16 %v378, %v377
      %v433 = vpack.c.bf16 %v380, %v379
      %v434 = vpack.c.bf16 %v382, %v381
      %v435 = vpack.c.bf16 %v384, %v383
      %v436 = vpack.c.bf16 %v386, %v385
      %v437 = vpack.c.bf16 %v388, %v387
      %v438 = vpack.c.bf16 %v390, %v389
      %v439 = vpack.c.bf16 %v392, %v391
      %v440 = vpack.c.bf16 %v394, %v393
      %v441 = vpack.c.bf16 %v396, %v395
      %v442 = vpack.c.bf16 %v398, %v397
      %v443 = vpack.c.bf16 %v400, %v399
      %v444 = vpack.c.bf16 %v402, %v401
      %v445 = vpack.c.bf16 %v404, %v403
      %v446 = vpack.c.bf16 %v406, %v405
      %v447 = vpack.c.bf16 %v408, %v407
      %v448 = vpack.c.bf16 %v410, %v409
      %v449 = vpack.c.bf16 %v412, %v411
      %v450 = vpack.c.bf16 %v414, %v413
      %v451 = vpack.c.bf16 %v416, %v415
      %v452 = vpack.c.bf16 %v418, %v417
      %v453 = vpack.c.bf16 %v420, %v419
      %v454 = vpack.c.bf16 %v422, %v421
      %v455 = vld [vmem:[%s350] sm:$0xff]
      %v456 = vld [vmem:[%s350 + $0x8] sm:$0xff]
      %v457 = vld [vmem:[%s350 + $0x10] sm:$0xff]
      %v458 = vld [vmem:[%s350 + $0x18] sm:$0xff]
      %v459 = vld [vmem:[%s350 + $0x20] sm:$0xff]
      %v460 = vld [vmem:[%s350 + $0x28] sm:$0xff]
      %v461 = vld [vmem:[%s350 + $0x30] sm:$0xff]
      %v462 = vld [vmem:[%s350 + $0x38] sm:$0xff]
      %v463 = vld [vmem:[%s350 + $0x40] sm:$0xff]
      %v464 = vld [vmem:[%s350 + $0x48] sm:$0xff]
      %v465 = vld [vmem:[%s350 + $0x50] sm:$0xff]
      %v466 = vld [vmem:[%s350 + $0x58] sm:$0xff]
      %v467 = vld [vmem:[%s350 + $0x60] sm:$0xff]
      %v468 = vld [vmem:[%s350 + $0x68] sm:$0xff]
      %v469 = vld [vmem:[%s350 + $0x70] sm:$0xff]
      %v470 = vld [vmem:[%s350 + $0x78] sm:$0xff]
      %v471 = vld [vmem:[%s350 + $0x80] sm:$0xff]
      %v472 = vld [vmem:[%s350 + $0x88] sm:$0xff]
      %v473 = vld [vmem:[%s350 + $0x90] sm:$0xff]
      %v474 = vld [vmem:[%s350 + $0x98] sm:$0xff]
      %v475 = vld [vmem:[%s350 + $0xa0] sm:$0xff]
      %v476 = vld [vmem:[%s350 + $0xa8] sm:$0xff]
      %v477 = vld [vmem:[%s350 + $0xb0] sm:$0xff]
      %v478 = vld [vmem:[%s350 + $0xb8] sm:$0xff]
      %v479 = vld [vmem:[%s350 + $0xc0] sm:$0xff]
      %v480 = vld [vmem:[%s350 + $0xc8] sm:$0xff]
      %v481 = vld [vmem:[%s350 + $0xd0] sm:$0xff]
      %v482 = vld [vmem:[%s350 + $0xd8] sm:$0xff]
      %v483 = vld [vmem:[%s350 + $0xe0] sm:$0xff]
      %v484 = vld [vmem:[%s350 + $0xe8] sm:$0xff]
      %v485 = vld [vmem:[%s350 + $0xf0] sm:$0xff]
      %v486 = vld [vmem:[%s350 + $0xf8] sm:$0xff]
      %v487 = vld [vmem:[%s350 + $0x100] sm:$0xff]
      %v488 = vld [vmem:[%s350 + $0x108] sm:$0xff]
      %v489 = vld [vmem:[%s350 + $0x110] sm:$0xff]
      %v490 = vld [vmem:[%s350 + $0x118] sm:$0xff]
      %v491 = vld [vmem:[%s350 + $0x120] sm:$0xff]
      %v492 = vld [vmem:[%s350 + $0x128] sm:$0xff]
      %v493 = vld [vmem:[%s350 + $0x130] sm:$0xff]
      %v494 = vld [vmem:[%s350 + $0x138] sm:$0xff]
      %v495 = vld [vmem:[%s350 + $0x140] sm:$0xff]
      %v496 = vld [vmem:[%s350 + $0x148] sm:$0xff]
      %v497 = vld [vmem:[%s350 + $0x150] sm:$0xff]
      %v498 = vld [vmem:[%s350 + $0x158] sm:$0xff]
      %v499 = vld [vmem:[%s350 + $0x160] sm:$0xff]
      %v500 = vld [vmem:[%s350 + $0x168] sm:$0xff]
      %v501 = vld [vmem:[%s350 + $0x170] sm:$0xff]
      %v502 = vld [vmem:[%s350 + $0x178] sm:$0xff]
      %v503 = vld [vmem:[%s350 + $0x180] sm:$0xff]
      %v504 = vld [vmem:[%s350 + $0x188] sm:$0xff]
      %v505 = vld [vmem:[%s350 + $0x190] sm:$0xff]
      %v506 = vld [vmem:[%s350 + $0x198] sm:$0xff]
      %v507 = vld [vmem:[%s350 + $0x1a0] sm:$0xff]
      %v508 = vld [vmem:[%s350 + $0x1a8] sm:$0xff]
      %v509 = vld [vmem:[%s350 + $0x1b0] sm:$0xff]
      %v510 = vld [vmem:[%s350 + $0x1b8] sm:$0xff]
      %v511 = vld [vmem:[%s350 + $0x1c0] sm:$0xff]
      %v512 = vld [vmem:[%s350 + $0x1c8] sm:$0xff]
      %v513 = vld [vmem:[%s350 + $0x1d0] sm:$0xff]
      %v514 = vld [vmem:[%s350 + $0x1d8] sm:$0xff]
      %v515 = vld [vmem:[%s350 + $0x1e0] sm:$0xff]
      %v516 = vld [vmem:[%s350 + $0x1e8] sm:$0xff]
      %v517 = vld [vmem:[%s350 + $0x1f0] sm:$0xff]
      %v518 = vld [vmem:[%s350 + $0x1f8] sm:$0xff]
      %v519 = vpack.c.bf16 %v456, %v455
      %v520 = vpack.c.bf16 %v458, %v457
      %v521 = vpack.c.bf16 %v460, %v459
      %v522 = vpack.c.bf16 %v462, %v461
      %v523 = vpack.c.bf16 %v464, %v463
      %v524 = vpack.c.bf16 %v466, %v465
      %v525 = vpack.c.bf16 %v468, %v467
      %v526 = vpack.c.bf16 %v470, %v469
      %v527 = vpack.c.bf16 %v472, %v471
      %v528 = vpack.c.bf16 %v474, %v473
      %v529 = vpack.c.bf16 %v476, %v475
      %v530 = vpack.c.bf16 %v478, %v477
      %v531 = vpack.c.bf16 %v480, %v479
      %v532 = vpack.c.bf16 %v482, %v481
      %v533 = vpack.c.bf16 %v484, %v483
      %v534 = vpack.c.bf16 %v486, %v485
      %v535 = vpack.c.bf16 %v488, %v487
      %v536 = vpack.c.bf16 %v490, %v489
      %v537 = vpack.c.bf16 %v492, %v491
      %v538 = vpack.c.bf16 %v494, %v493
      %v539 = vpack.c.bf16 %v496, %v495
      %v540 = vpack.c.bf16 %v498, %v497
      %v541 = vpack.c.bf16 %v500, %v499
      %v542 = vpack.c.bf16 %v502, %v501
      %v543 = vpack.c.bf16 %v504, %v503
      %v544 = vpack.c.bf16 %v506, %v505
      %v545 = vpack.c.bf16 %v508, %v507
      %v546 = vpack.c.bf16 %v510, %v509
      %v547 = vpack.c.bf16 %v512, %v511
      %v548 = vpack.c.bf16 %v514, %v513
      %v549 = vpack.c.bf16 %v516, %v515
      %v550 = vpack.c.bf16 %v518, %v517
      %v551 = vld [vmem:[%s2] sm:$0xf]
      %v552 = vld [vmem:[%s2 + $0x4] sm:$0xf]
      %v553 = vld [vmem:[%s2 + $0x8] sm:$0xf]
      %v554 = vld [vmem:[%s2 + $0xc] sm:$0xf]
      %v555 = vld [vmem:[%s3] sm:$0x1]
      %v557 = vlaneseq
      %v558 = vshrl.u32 %v557, 7
      %v559 = vsub.s32 0, %v558
      %v560 = vrot.slane %v555, %v559
      %v566 = vunpack.c.l.b16 %v551
      %v567 = vunpack.c.l.b16 %v552
      %v568 = vunpack.c.l.b16 %v553
      %v569 = vunpack.c.l.b16 %v554
      %v570 = vpack.c.b16 %v567, %v566
      %v571 = vpack.c.b16 %v569, %v568
      %vm574 = vcmask 261120
      %v576 = vsel %vm574, %v423, 0
      %v579 = vsel %vm574, %v424, 0
      %v582 = vsel %vm574, %v425, 0
      %v585 = vsel %vm574, %v426, 0
      %v588 = vsel %vm574, %v427, 0
      %v591 = vsel %vm574, %v428, 0
      %v594 = vsel %vm574, %v429, 0
      %v597 = vsel %vm574, %v430, 0
      %v600 = vsel %vm574, %v431, 0
      %v603 = vsel %vm574, %v432, 0
      %v606 = vsel %vm574, %v433, 0
      %v609 = vsel %vm574, %v434, 0
      %v612 = vsel %vm574, %v435, 0
      %v615 = vsel %vm574, %v436, 0
      %v618 = vsel %vm574, %v437, 0
      %v621 = vsel %vm574, %v438, 0
      %v624 = vsel %vm574, %v439, 0
      %v627 = vsel %vm574, %v440, 0
      %v630 = vsel %vm574, %v441, 0
      %v633 = vsel %vm574, %v442, 0
      %v636 = vsel %vm574, %v443, 0
      %v639 = vsel %vm574, %v444, 0
      %v642 = vsel %vm574, %v445, 0
      %v645 = vsel %vm574, %v446, 0
      %v648 = vsel %vm574, %v447, 0
      %v651 = vsel %vm574, %v448, 0
      %v654 = vsel %vm574, %v449, 0
      %v657 = vsel %vm574, %v450, 0
      %v660 = vsel %vm574, %v451, 0
      %v663 = vsel %vm574, %v452, 0
      %v666 = vsel %vm574, %v453, 0
      %v669 = vsel %vm574, %v454, 0
      %671 = vmatprep.subr.bf16.mxu0 0
      %672 = vmatpush1.bf16.msra.mxu0 0
      %673 = vmatprep.subr.bf16.mxu0 0
      %674 = vmatpush1.bf16.msra.mxu0 0
      %675 = vmatprep.subr.bf16.mxu0 0
      %676 = vmatpush1.bf16.msra.mxu0 0
      %677 = vmatprep.subr.bf16.mxu0 0
      %678 = vmatpush1.bf16.msra.mxu0 0
      %679 = vmatprep.subr.bf16.mxu0 0
      %680 = vmatpush1.bf16.msra.mxu0 0
      %681 = vmatprep.subr.bf16.mxu0 0
      %682 = vmatpush1.bf16.msra.mxu0 0
      %683 = vmatprep.subr.bf16.mxu0 0
      %684 = vmatpush1.bf16.msra.mxu0 %v571
      %685 = vmatprep.subr.bf16.mxu0 0
      %686 = vmatpush1.bf16.msra.mxu0 %v570
      %687 = vmatprep.subr.bf16.mxu0 0
      %688 = vmatpush2.bf16.msra.mxu0 0
      %689 = vmatprep.subr.bf16.mxu0 0
      %690 = vmatpush2.bf16.msra.mxu0 0
      %691 = vmatprep.subr.bf16.mxu0 0
      %692 = vmatpush2.bf16.msra.mxu0 0
      %693 = vmatprep.subr.bf16.mxu0 0
      %694 = vmatpush2.bf16.msra.mxu0 0
      %695 = vmatprep.subr.bf16.mxu0 0
      %696 = vmatpush2.bf16.msra.mxu0 0
      %697 = vmatprep.subr.bf16.mxu0 0
      %698 = vmatpush2.bf16.msra.mxu0 0
      %699 = vmatprep.subr.bf16.mxu0 0
      %700 = vmatpush2.bf16.msra.mxu0 0
      %701 = vmatprep.subr.bf16.mxu0 0
      %702 = vmatpush2.bf16.msra.mxu0 0
      %703 = vmatprep.mubr.bf16.mxu0 0
      %704 = vmatmul.mubr.bf16.gmra.mxu0 %v576
      %v705 = vpop.f32.mrf.mxu0
      %v706 = vadd.f32 %v560, %v705
      %v707 = vpop.f32.mrf.mxu0
      %v708 = vpop.f32.mrf.mxu0
      %v709 = vadd.f32 %v560, %v708
      %v710 = vpop.f32.mrf.mxu0
      %711 = vmatprep.mubr.bf16.mxu0 0
      %712 = vmatmul.mubr.bf16.gmra.mxu0 %v579
      %v713 = vpop.f32.mrf.mxu0
      %v714 = vadd.f32 %v560, %v713
      %v715 = vpop.f32.mrf.mxu0
      %v716 = vpop.f32.mrf.mxu0
      %v717 = vadd.f32 %v560, %v716
      %v718 = vpop.f32.mrf.mxu0
      %719 = vmatprep.mubr.bf16.mxu0 0
      %720 = vmatmul.mubr.bf16.gmra.mxu0 %v582
      %v721 = vpop.f32.mrf.mxu0
      %v722 = vadd.f32 %v560, %v721
      %v723 = vpop.f32.mrf.mxu0
      %v724 = vpop.f32.mrf.mxu0
      %v725 = vadd.f32 %v560, %v724
      %v726 = vpop.f32.mrf.mxu0
      %727 = vmatprep.mubr.bf16.mxu0 0
      %728 = vmatmul.mubr.bf16.gmra.mxu0 %v585
      %v729 = vpop.f32.mrf.mxu0
      %v730 = vadd.f32 %v560, %v729
      %v731 = vpop.f32.mrf.mxu0
      %v732 = vpop.f32.mrf.mxu0
      %v733 = vadd.f32 %v560, %v732
      %v734 = vpop.f32.mrf.mxu0
      %735 = vmatprep.mubr.bf16.mxu0 0
      %736 = vmatmul.mubr.bf16.gmra.mxu0 %v588
      %v737 = vpop.f32.mrf.mxu0
      %v738 = vadd.f32 %v560, %v737
      %v739 = vpop.f32.mrf.mxu0
      %v740 = vpop.f32.mrf.mxu0
      %v741 = vadd.f32 %v560, %v740
      %v742 = vpop.f32.mrf.mxu0
      %743 = vmatprep.mubr.bf16.mxu0 0
      %744 = vmatmul.mubr.bf16.gmra.mxu0 %v591
      %v745 = vpop.f32.mrf.mxu0
      %v746 = vadd.f32 %v560, %v745
      %v747 = vpop.f32.mrf.mxu0
      %v748 = vpop.f32.mrf.mxu0
      %v749 = vadd.f32 %v560, %v748
      %v750 = vpop.f32.mrf.mxu0
      %751 = vmatprep.mubr.bf16.mxu0 0
      %752 = vmatmul.mubr.bf16.gmra.mxu0 %v594
      %v753 = vpop.f32.mrf.mxu0
      %v754 = vadd.f32 %v560, %v753
      %v755 = vpop.f32.mrf.mxu0
      %v756 = vpop.f32.mrf.mxu0
      %v757 = vadd.f32 %v560, %v756
      %v758 = vpop.f32.mrf.mxu0
      %759 = vmatprep.mubr.bf16.mxu0 0
      %760 = vmatmul.mubr.bf16.gmra.mxu0 %v597
      %v761 = vpop.f32.mrf.mxu0
      %v762 = vadd.f32 %v560, %v761
      %v763 = vpop.f32.mrf.mxu0
      %v764 = vpop.f32.mrf.mxu0
      %v765 = vadd.f32 %v560, %v764
      %v766 = vpop.f32.mrf.mxu0
      %767 = vmatprep.mubr.bf16.mxu0 0
      %768 = vmatmul.mubr.bf16.gmra.mxu0 %v600
      %v769 = vpop.f32.mrf.mxu0
      %v770 = vadd.f32 %v560, %v769
      %v771 = vpop.f32.mrf.mxu0
      %v772 = vpop.f32.mrf.mxu0
      %v773 = vadd.f32 %v560, %v772
      %v774 = vpop.f32.mrf.mxu0
      %775 = vmatprep.mubr.bf16.mxu0 0
      %776 = vmatmul.mubr.bf16.gmra.mxu0 %v603
      %v777 = vpop.f32.mrf.mxu0
      %v778 = vadd.f32 %v560, %v777
      %v779 = vpop.f32.mrf.mxu0
      %v780 = vpop.f32.mrf.mxu0
      %v781 = vadd.f32 %v560, %v780
      %v782 = vpop.f32.mrf.mxu0
      %783 = vmatprep.mubr.bf16.mxu0 0
      %784 = vmatmul.mubr.bf16.gmra.mxu0 %v606
      %v785 = vpop.f32.mrf.mxu0
      %v786 = vadd.f32 %v560, %v785
      %v787 = vpop.f32.mrf.mxu0
      %v788 = vpop.f32.mrf.mxu0
      %v789 = vadd.f32 %v560, %v788
      %v790 = vpop.f32.mrf.mxu0
      %791 = vmatprep.mubr.bf16.mxu0 0
      %792 = vmatmul.mubr.bf16.gmra.mxu0 %v609
      %v793 = vpop.f32.mrf.mxu0
      %v794 = vadd.f32 %v560, %v793
      %v795 = vpop.f32.mrf.mxu0
      %v796 = vpop.f32.mrf.mxu0
      %v797 = vadd.f32 %v560, %v796
      %v798 = vpop.f32.mrf.mxu0
      %799 = vmatprep.mubr.bf16.mxu0 0
      %800 = vmatmul.mubr.bf16.gmra.mxu0 %v612
      %v801 = vpop.f32.mrf.mxu0
      %v802 = vadd.f32 %v560, %v801
      %v803 = vpop.f32.mrf.mxu0
      %v804 = vpop.f32.mrf.mxu0
      %v805 = vadd.f32 %v560, %v804
      %v806 = vpop.f32.mrf.mxu0
      %807 = vmatprep.mubr.bf16.mxu0 0
      %808 = vmatmul.mubr.bf16.gmra.mxu0 %v615
      %v809 = vpop.f32.mrf.mxu0
      %v810 = vadd.f32 %v560, %v809
      %v811 = vpop.f32.mrf.mxu0
      %v812 = vpop.f32.mrf.mxu0
      %v813 = vadd.f32 %v560, %v812
      %v814 = vpop.f32.mrf.mxu0
      %815 = vmatprep.mubr.bf16.mxu0 0
      %816 = vmatmul.mubr.bf16.gmra.mxu0 %v618
      %v817 = vpop.f32.mrf.mxu0
      %v818 = vadd.f32 %v560, %v817
      %v819 = vpop.f32.mrf.mxu0
      %v820 = vpop.f32.mrf.mxu0
      %v821 = vadd.f32 %v560, %v820
      %v822 = vpop.f32.mrf.mxu0
      %823 = vmatprep.mubr.bf16.mxu0 0
      %824 = vmatmul.mubr.bf16.gmra.mxu0 %v621
      %v825 = vpop.f32.mrf.mxu0
      %v826 = vadd.f32 %v560, %v825
      %v827 = vpop.f32.mrf.mxu0
      %v828 = vpop.f32.mrf.mxu0
      %v829 = vadd.f32 %v560, %v828
      %v830 = vpop.f32.mrf.mxu0
      %831 = vmatprep.mubr.bf16.mxu0 0
      %832 = vmatmul.mubr.bf16.gmra.mxu0 %v624
      %v833 = vpop.f32.mrf.mxu0
      %v834 = vadd.f32 %v560, %v833
      %v835 = vpop.f32.mrf.mxu0
      %v836 = vpop.f32.mrf.mxu0
      %v837 = vadd.f32 %v560, %v836
      %v838 = vpop.f32.mrf.mxu0
      %839 = vmatprep.mubr.bf16.mxu0 0
      %840 = vmatmul.mubr.bf16.gmra.mxu0 %v627
      %v841 = vpop.f32.mrf.mxu0
      %v842 = vadd.f32 %v560, %v841
      %v843 = vpop.f32.mrf.mxu0
      %v844 = vpop.f32.mrf.mxu0
      %v845 = vadd.f32 %v560, %v844
      %v846 = vpop.f32.mrf.mxu0
      %847 = vmatprep.mubr.bf16.mxu0 0
      %848 = vmatmul.mubr.bf16.gmra.mxu0 %v630
      %v849 = vpop.f32.mrf.mxu0
      %v850 = vadd.f32 %v560, %v849
      %v851 = vpop.f32.mrf.mxu0
      %v852 = vpop.f32.mrf.mxu0
      %v853 = vadd.f32 %v560, %v852
      %v854 = vpop.f32.mrf.mxu0
      %855 = vmatprep.mubr.bf16.mxu0 0
      %856 = vmatmul.mubr.bf16.gmra.mxu0 %v633
      %v857 = vpop.f32.mrf.mxu0
      %v858 = vadd.f32 %v560, %v857
      %v859 = vpop.f32.mrf.mxu0
      %v860 = vpop.f32.mrf.mxu0
      %v861 = vadd.f32 %v560, %v860
      %v862 = vpop.f32.mrf.mxu0
      %863 = vmatprep.mubr.bf16.mxu0 0
      %864 = vmatmul.mubr.bf16.gmra.mxu0 %v636
      %v865 = vpop.f32.mrf.mxu0
      %v866 = vadd.f32 %v560, %v865
      %v867 = vpop.f32.mrf.mxu0
      %v868 = vpop.f32.mrf.mxu0
      %v869 = vadd.f32 %v560, %v868
      %v870 = vpop.f32.mrf.mxu0
      %871 = vmatprep.mubr.bf16.mxu0 0
      %872 = vmatmul.mubr.bf16.gmra.mxu0 %v639
      %v873 = vpop.f32.mrf.mxu0
      %v874 = vadd.f32 %v560, %v873
      %v875 = vpop.f32.mrf.mxu0
      %v876 = vpop.f32.mrf.mxu0
      %v877 = vadd.f32 %v560, %v876
      %v878 = vpop.f32.mrf.mxu0
      %879 = vmatprep.mubr.bf16.mxu0 0
      %880 = vmatmul.mubr.bf16.gmra.mxu0 %v642
      %v881 = vpop.f32.mrf.mxu0
      %v882 = vadd.f32 %v560, %v881
      %v883 = vpop.f32.mrf.mxu0
      %v884 = vpop.f32.mrf.mxu0
      %v885 = vadd.f32 %v560, %v884
      %v886 = vpop.f32.mrf.mxu0
      %887 = vmatprep.mubr.bf16.mxu0 0
      %888 = vmatmul.mubr.bf16.gmra.mxu0 %v645
      %v889 = vpop.f32.mrf.mxu0
      %v890 = vadd.f32 %v560, %v889
      %v891 = vpop.f32.mrf.mxu0
      %v892 = vpop.f32.mrf.mxu0
      %v893 = vadd.f32 %v560, %v892
      %v894 = vpop.f32.mrf.mxu0
      %895 = vmatprep.mubr.bf16.mxu0 0
      %896 = vmatmul.mubr.bf16.gmra.mxu0 %v648
      %v897 = vpop.f32.mrf.mxu0
      %v898 = vadd.f32 %v560, %v897
      %v899 = vpop.f32.mrf.mxu0
      %v900 = vpop.f32.mrf.mxu0
      %v901 = vadd.f32 %v560, %v900
      %v902 = vpop.f32.mrf.mxu0
      %903 = vmatprep.mubr.bf16.mxu0 0
      %904 = vmatmul.mubr.bf16.gmra.mxu0 %v651
      %v905 = vpop.f32.mrf.mxu0
      %v906 = vadd.f32 %v560, %v905
      %v907 = vpop.f32.mrf.mxu0
      %v908 = vpop.f32.mrf.mxu0
      %v909 = vadd.f32 %v560, %v908
      %v910 = vpop.f32.mrf.mxu0
      %911 = vmatprep.mubr.bf16.mxu0 0
      %912 = vmatmul.mubr.bf16.gmra.mxu0 %v654
      %v913 = vpop.f32.mrf.mxu0
      %v914 = vadd.f32 %v560, %v913
      %v915 = vpop.f32.mrf.mxu0
      %v916 = vpop.f32.mrf.mxu0
      %v917 = vadd.f32 %v560, %v916
      %v918 = vpop.f32.mrf.mxu0
      %919 = vmatprep.mubr.bf16.mxu0 0
      %920 = vmatmul.mubr.bf16.gmra.mxu0 %v657
      %v921 = vpop.f32.mrf.mxu0
      %v922 = vadd.f32 %v560, %v921
      %v923 = vpop.f32.mrf.mxu0
      %v924 = vpop.f32.mrf.mxu0
      %v925 = vadd.f32 %v560, %v924
      %v926 = vpop.f32.mrf.mxu0
      %927 = vmatprep.mubr.bf16.mxu0 0
      %928 = vmatmul.mubr.bf16.gmra.mxu0 %v660
      %v929 = vpop.f32.mrf.mxu0
      %v930 = vadd.f32 %v560, %v929
      %v931 = vpop.f32.mrf.mxu0
      %v932 = vpop.f32.mrf.mxu0
      %v933 = vadd.f32 %v560, %v932
      %v934 = vpop.f32.mrf.mxu0
      %935 = vmatprep.mubr.bf16.mxu0 0
      %936 = vmatmul.mubr.bf16.gmra.mxu0 %v663
      %v937 = vpop.f32.mrf.mxu0
      %v938 = vadd.f32 %v560, %v937
      %v939 = vpop.f32.mrf.mxu0
      %v940 = vpop.f32.mrf.mxu0
      %v941 = vadd.f32 %v560, %v940
      %v942 = vpop.f32.mrf.mxu0
      %943 = vmatprep.mubr.bf16.mxu0 0
      %944 = vmatmul.mubr.bf16.gmra.mxu0 %v666
      %v945 = vpop.f32.mrf.mxu0
      %v946 = vadd.f32 %v560, %v945
      %v947 = vpop.f32.mrf.mxu0
      %v948 = vpop.f32.mrf.mxu0
      %v949 = vadd.f32 %v560, %v948
      %v950 = vpop.f32.mrf.mxu0
      %951 = vmatprep.mubr.bf16.mxu0 0
      %952 = vmatmul.mubr.bf16.gmra.mxu0 %v669
      %v953 = vpop.f32.mrf.mxu0
      %v954 = vadd.f32 %v560, %v953
      %v955 = vpop.f32.mrf.mxu0
      %v956 = vpop.f32.mrf.mxu0
      %v957 = vadd.f32 %v560, %v956
      %v958 = vpop.f32.mrf.mxu0
      %959 = vdwg.mxu0
      %v960 = vld [vmem:[%s4] sm:$0xf]
      %v961 = vld [vmem:[%s4 + $0x4] sm:$0xf]
      %v962 = vld [vmem:[%s4 + $0x8] sm:$0xf]
      %v963 = vld [vmem:[%s4 + $0xc] sm:$0xf]
      %v964 = vld [vmem:[%s5] sm:$0x1]
      %v966 = vlaneseq
      %v967 = vshrl.u32 %v966, 7
      %v968 = vsub.s32 0, %v967
      %v969 = vrot.slane %v964, %v968
      %v975 = vunpack.c.l.b16 %v960
      %v976 = vunpack.c.l.b16 %v961
      %v977 = vunpack.c.l.b16 %v962
      %v978 = vunpack.c.l.b16 %v963
      %v979 = vpack.c.b16 %v976, %v975
      %v980 = vpack.c.b16 %v978, %v977
      %v984 = vsel %vm574, %v519, 0
      %v987 = vsel %vm574, %v520, 0
      %v990 = vsel %vm574, %v521, 0
      %v993 = vsel %vm574, %v522, 0
      %v996 = vsel %vm574, %v523, 0
      %v999 = vsel %vm574, %v524, 0
      %v1002 = vsel %vm574, %v525, 0
      %v1005 = vsel %vm574, %v526, 0
      %v1008 = vsel %vm574, %v527, 0
      %v1011 = vsel %vm574, %v528, 0
      %v1014 = vsel %vm574, %v529, 0
      %v1017 = vsel %vm574, %v530, 0
      %v1020 = vsel %vm574, %v531, 0
      %v1023 = vsel %vm574, %v532, 0
      %v1026 = vsel %vm574, %v533, 0
      %v1029 = vsel %vm574, %v534, 0
      %v1032 = vsel %vm574, %v535, 0
      %v1035 = vsel %vm574, %v536, 0
      %v1038 = vsel %vm574, %v537, 0
      %v1041 = vsel %vm574, %v538, 0
      %v1044 = vsel %vm574, %v539, 0
      %v1047 = vsel %vm574, %v540, 0
      %v1050 = vsel %vm574, %v541, 0
      %v1053 = vsel %vm574, %v542, 0
      %v1056 = vsel %vm574, %v543, 0
      %v1059 = vsel %vm574, %v544, 0
      %v1062 = vsel %vm574, %v545, 0
      %v1065 = vsel %vm574, %v546, 0
      %v1068 = vsel %vm574, %v547, 0
      %v1071 = vsel %vm574, %v548, 0
      %v1074 = vsel %vm574, %v549, 0
      %v1077 = vsel %vm574, %v550, 0
      %1079 = vmatprep.subr.bf16.mxu0 0
      %1080 = vmatpush1.bf16.msra.mxu0 0
      %1081 = vmatprep.subr.bf16.mxu0 0
      %1082 = vmatpush1.bf16.msra.mxu0 0
      %1083 = vmatprep.subr.bf16.mxu0 0
      %1084 = vmatpush1.bf16.msra.mxu0 0
      %1085 = vmatprep.subr.bf16.mxu0 0
      %1086 = vmatpush1.bf16.msra.mxu0 0
      %1087 = vmatprep.subr.bf16.mxu0 0
      %1088 = vmatpush1.bf16.msra.mxu0 0
      %1089 = vmatprep.subr.bf16.mxu0 0
      %1090 = vmatpush1.bf16.msra.mxu0 0
      %1091 = vmatprep.subr.bf16.mxu0 0
      %1092 = vmatpush1.bf16.msra.mxu0 %v980
      %1093 = vmatprep.subr.bf16.mxu0 0
      %1094 = vmatpush1.bf16.msra.mxu0 %v979
      %1095 = vmatprep.subr.bf16.mxu0 0
      %1096 = vmatpush2.bf16.msra.mxu0 0
      %1097 = vmatprep.subr.bf16.mxu0 0
      %1098 = vmatpush2.bf16.msra.mxu0 0
      %1099 = vmatprep.subr.bf16.mxu0 0
      %1100 = vmatpush2.bf16.msra.mxu0 0
      %1101 = vmatprep.subr.bf16.mxu0 0
      %1102 = vmatpush2.bf16.msra.mxu0 0
      %1103 = vmatprep.subr.bf16.mxu0 0
      %1104 = vmatpush2.bf16.msra.mxu0 0
      %1105 = vmatprep.subr.bf16.mxu0 0
      %1106 = vmatpush2.bf16.msra.mxu0 0
      %1107 = vmatprep.subr.bf16.mxu0 0
      %1108 = vmatpush2.bf16.msra.mxu0 0
      %1109 = vmatprep.subr.bf16.mxu0 0
      %1110 = vmatpush2.bf16.msra.mxu0 0
      %1111 = vmatprep.mubr.bf16.mxu0 0
      %1112 = vmatmul.mubr.bf16.gmra.mxu0 %v984
      %v1113 = vpop.f32.mrf.mxu0
      %v1114 = vadd.f32 %v969, %v1113
      %v1115 = vpop.f32.mrf.mxu0
      %v1116 = vpop.f32.mrf.mxu0
      %v1117 = vadd.f32 %v969, %v1116
      %v1118 = vpop.f32.mrf.mxu0
      %1119 = vmatprep.mubr.bf16.mxu0 0
      %1120 = vmatmul.mubr.bf16.gmra.mxu0 %v987
      %v1121 = vpop.f32.mrf.mxu0
      %v1122 = vadd.f32 %v969, %v1121
      %v1123 = vpop.f32.mrf.mxu0
      %v1124 = vpop.f32.mrf.mxu0
      %v1125 = vadd.f32 %v969, %v1124
      %v1126 = vpop.f32.mrf.mxu0
      %1127 = vmatprep.mubr.bf16.mxu0 0
      %1128 = vmatmul.mubr.bf16.gmra.mxu0 %v990
      %v1129 = vpop.f32.mrf.mxu0
      %v1130 = vadd.f32 %v969, %v1129
      %v1131 = vpop.f32.mrf.mxu0
      %v1132 = vpop.f32.mrf.mxu0
      %v1133 = vadd.f32 %v969, %v1132
      %v1134 = vpop.f32.mrf.mxu0
      %1135 = vmatprep.mubr.bf16.mxu0 0
      %1136 = vmatmul.mubr.bf16.gmra.mxu0 %v993
      %v1137 = vpop.f32.mrf.mxu0
      %v1138 = vadd.f32 %v969, %v1137
      %v1139 = vpop.f32.mrf.mxu0
      %v1140 = vpop.f32.mrf.mxu0
      %v1141 = vadd.f32 %v969, %v1140
      %v1142 = vpop.f32.mrf.mxu0
      %1143 = vmatprep.mubr.bf16.mxu0 0
      %1144 = vmatmul.mubr.bf16.gmra.mxu0 %v996
      %v1145 = vpop.f32.mrf.mxu0
      %v1146 = vadd.f32 %v969, %v1145
      %v1147 = vpop.f32.mrf.mxu0
      %v1148 = vpop.f32.mrf.mxu0
      %v1149 = vadd.f32 %v969, %v1148
      %v1150 = vpop.f32.mrf.mxu0
      %1151 = vmatprep.mubr.bf16.mxu0 0
      %1152 = vmatmul.mubr.bf16.gmra.mxu0 %v999
      %v1153 = vpop.f32.mrf.mxu0
      %v1154 = vadd.f32 %v969, %v1153
      %v1155 = vpop.f32.mrf.mxu0
      %v1156 = vpop.f32.mrf.mxu0
      %v1157 = vadd.f32 %v969, %v1156
      %v1158 = vpop.f32.mrf.mxu0
      %1159 = vmatprep.mubr.bf16.mxu0 0
      %1160 = vmatmul.mubr.bf16.gmra.mxu0 %v1002
      %v1161 = vpop.f32.mrf.mxu0
      %v1162 = vadd.f32 %v969, %v1161
      %v1163 = vpop.f32.mrf.mxu0
      %v1164 = vpop.f32.mrf.mxu0
      %v1165 = vadd.f32 %v969, %v1164
      %v1166 = vpop.f32.mrf.mxu0
      %1167 = vmatprep.mubr.bf16.mxu0 0
      %1168 = vmatmul.mubr.bf16.gmra.mxu0 %v1005
      %v1169 = vpop.f32.mrf.mxu0
      %v1170 = vadd.f32 %v969, %v1169
      %v1171 = vpop.f32.mrf.mxu0
      %v1172 = vpop.f32.mrf.mxu0
      %v1173 = vadd.f32 %v969, %v1172
      %v1174 = vpop.f32.mrf.mxu0
      %1175 = vmatprep.mubr.bf16.mxu0 0
      %1176 = vmatmul.mubr.bf16.gmra.mxu0 %v1008
      %v1177 = vpop.f32.mrf.mxu0
      %v1178 = vadd.f32 %v969, %v1177
      %v1179 = vpop.f32.mrf.mxu0
      %v1180 = vpop.f32.mrf.mxu0
      %v1181 = vadd.f32 %v969, %v1180
      %v1182 = vpop.f32.mrf.mxu0
      %1183 = vmatprep.mubr.bf16.mxu0 0
      %1184 = vmatmul.mubr.bf16.gmra.mxu0 %v1011
      %v1185 = vpop.f32.mrf.mxu0
      %v1186 = vadd.f32 %v969, %v1185
      %v1187 = vpop.f32.mrf.mxu0
      %v1188 = vpop.f32.mrf.mxu0
      %v1189 = vadd.f32 %v969, %v1188
      %v1190 = vpop.f32.mrf.mxu0
      %1191 = vmatprep.mubr.bf16.mxu0 0
      %1192 = vmatmul.mubr.bf16.gmra.mxu0 %v1014
      %v1193 = vpop.f32.mrf.mxu0
      %v1194 = vadd.f32 %v969, %v1193
      %v1195 = vpop.f32.mrf.mxu0
      %v1196 = vpop.f32.mrf.mxu0
      %v1197 = vadd.f32 %v969, %v1196
      %v1198 = vpop.f32.mrf.mxu0
      %1199 = vmatprep.mubr.bf16.mxu0 0
      %1200 = vmatmul.mubr.bf16.gmra.mxu0 %v1017
      %v1201 = vpop.f32.mrf.mxu0
      %v1202 = vadd.f32 %v969, %v1201
      %v1203 = vpop.f32.mrf.mxu0
      %v1204 = vpop.f32.mrf.mxu0
      %v1205 = vadd.f32 %v969, %v1204
      %v1206 = vpop.f32.mrf.mxu0
      %1207 = vmatprep.mubr.bf16.mxu0 0
      %1208 = vmatmul.mubr.bf16.gmra.mxu0 %v1020
      %v1209 = vpop.f32.mrf.mxu0
      %v1210 = vadd.f32 %v969, %v1209
      %v1211 = vpop.f32.mrf.mxu0
      %v1212 = vpop.f32.mrf.mxu0
      %v1213 = vadd.f32 %v969, %v1212
      %v1214 = vpop.f32.mrf.mxu0
      %1215 = vmatprep.mubr.bf16.mxu0 0
      %1216 = vmatmul.mubr.bf16.gmra.mxu0 %v1023
      %v1217 = vpop.f32.mrf.mxu0
      %v1218 = vadd.f32 %v969, %v1217
      %v1219 = vpop.f32.mrf.mxu0
      %v1220 = vpop.f32.mrf.mxu0
      %v1221 = vadd.f32 %v969, %v1220
      %v1222 = vpop.f32.mrf.mxu0
      %1223 = vmatprep.mubr.bf16.mxu0 0
      %1224 = vmatmul.mubr.bf16.gmra.mxu0 %v1026
      %v1225 = vpop.f32.mrf.mxu0
      %v1226 = vadd.f32 %v969, %v1225
      %v1227 = vpop.f32.mrf.mxu0
      %v1228 = vpop.f32.mrf.mxu0
      %v1229 = vadd.f32 %v969, %v1228
      %v1230 = vpop.f32.mrf.mxu0
      %1231 = vmatprep.mubr.bf16.mxu0 0
      %1232 = vmatmul.mubr.bf16.gmra.mxu0 %v1029
      %v1233 = vpop.f32.mrf.mxu0
      %v1234 = vadd.f32 %v969, %v1233
      %v1235 = vpop.f32.mrf.mxu0
      %v1236 = vpop.f32.mrf.mxu0
      %v1237 = vadd.f32 %v969, %v1236
      %v1238 = vpop.f32.mrf.mxu0
      %1239 = vmatprep.mubr.bf16.mxu0 0
      %1240 = vmatmul.mubr.bf16.gmra.mxu0 %v1032
      %v1241 = vpop.f32.mrf.mxu0
      %v1242 = vadd.f32 %v969, %v1241
      %v1243 = vpop.f32.mrf.mxu0
      %v1244 = vpop.f32.mrf.mxu0
      %v1245 = vadd.f32 %v969, %v1244
      %v1246 = vpop.f32.mrf.mxu0
      %1247 = vmatprep.mubr.bf16.mxu0 0
      %1248 = vmatmul.mubr.bf16.gmra.mxu0 %v1035
      %v1249 = vpop.f32.mrf.mxu0
      %v1250 = vadd.f32 %v969, %v1249
      %v1251 = vpop.f32.mrf.mxu0
      %v1252 = vpop.f32.mrf.mxu0
      %v1253 = vadd.f32 %v969, %v1252
      %v1254 = vpop.f32.mrf.mxu0
      %1255 = vmatprep.mubr.bf16.mxu0 0
      %1256 = vmatmul.mubr.bf16.gmra.mxu0 %v1038
      %v1257 = vpop.f32.mrf.mxu0
      %v1258 = vadd.f32 %v969, %v1257
      %v1259 = vpop.f32.mrf.mxu0
      %v1260 = vpop.f32.mrf.mxu0
      %v1261 = vadd.f32 %v969, %v1260
      %v1262 = vpop.f32.mrf.mxu0
      %1263 = vmatprep.mubr.bf16.mxu0 0
      %1264 = vmatmul.mubr.bf16.gmra.mxu0 %v1041
      %v1265 = vpop.f32.mrf.mxu0
      %v1266 = vadd.f32 %v969, %v1265
      %v1267 = vpop.f32.mrf.mxu0
      %v1268 = vpop.f32.mrf.mxu0
      %v1269 = vadd.f32 %v969, %v1268
      %v1270 = vpop.f32.mrf.mxu0
      %1271 = vmatprep.mubr.bf16.mxu0 0
      %1272 = vmatmul.mubr.bf16.gmra.mxu0 %v1044
      %v1273 = vpop.f32.mrf.mxu0
      %v1274 = vadd.f32 %v969, %v1273
      %v1275 = vpop.f32.mrf.mxu0
      %v1276 = vpop.f32.mrf.mxu0
      %v1277 = vadd.f32 %v969, %v1276
      %v1278 = vpop.f32.mrf.mxu0
      %1279 = vmatprep.mubr.bf16.mxu0 0
      %1280 = vmatmul.mubr.bf16.gmra.mxu0 %v1047
      %v1281 = vpop.f32.mrf.mxu0
      %v1282 = vadd.f32 %v969, %v1281
      %v1283 = vpop.f32.mrf.mxu0
      %v1284 = vpop.f32.mrf.mxu0
      %v1285 = vadd.f32 %v969, %v1284
      %v1286 = vpop.f32.mrf.mxu0
      %1287 = vmatprep.mubr.bf16.mxu0 0
      %1288 = vmatmul.mubr.bf16.gmra.mxu0 %v1050
      %v1289 = vpop.f32.mrf.mxu0
      %v1290 = vadd.f32 %v969, %v1289
      %v1291 = vpop.f32.mrf.mxu0
      %v1292 = vpop.f32.mrf.mxu0
      %v1293 = vadd.f32 %v969, %v1292
      %v1294 = vpop.f32.mrf.mxu0
      %1295 = vmatprep.mubr.bf16.mxu0 0
      %1296 = vmatmul.mubr.bf16.gmra.mxu0 %v1053
      %v1297 = vpop.f32.mrf.mxu0
      %v1298 = vadd.f32 %v969, %v1297
      %v1299 = vpop.f32.mrf.mxu0
      %v1300 = vpop.f32.mrf.mxu0
      %v1301 = vadd.f32 %v969, %v1300
      %v1302 = vpop.f32.mrf.mxu0
      %1303 = vmatprep.mubr.bf16.mxu0 0
      %1304 = vmatmul.mubr.bf16.gmra.mxu0 %v1056
      %v1305 = vpop.f32.mrf.mxu0
      %v1306 = vadd.f32 %v969, %v1305
      %v1307 = vpop.f32.mrf.mxu0
      %v1308 = vpop.f32.mrf.mxu0
      %v1309 = vadd.f32 %v969, %v1308
      %v1310 = vpop.f32.mrf.mxu0
      %1311 = vmatprep.mubr.bf16.mxu0 0
      %1312 = vmatmul.mubr.bf16.gmra.mxu0 %v1059
      %v1313 = vpop.f32.mrf.mxu0
      %v1314 = vadd.f32 %v969, %v1313
      %v1315 = vpop.f32.mrf.mxu0
      %v1316 = vpop.f32.mrf.mxu0
      %v1317 = vadd.f32 %v969, %v1316
      %v1318 = vpop.f32.mrf.mxu0
      %1319 = vmatprep.mubr.bf16.mxu0 0
      %1320 = vmatmul.mubr.bf16.gmra.mxu0 %v1062
      %v1321 = vpop.f32.mrf.mxu0
      %v1322 = vadd.f32 %v969, %v1321
      %v1323 = vpop.f32.mrf.mxu0
      %v1324 = vpop.f32.mrf.mxu0
      %v1325 = vadd.f32 %v969, %v1324
      %v1326 = vpop.f32.mrf.mxu0
      %1327 = vmatprep.mubr.bf16.mxu0 0
      %1328 = vmatmul.mubr.bf16.gmra.mxu0 %v1065
      %v1329 = vpop.f32.mrf.mxu0
      %v1330 = vadd.f32 %v969, %v1329
      %v1331 = vpop.f32.mrf.mxu0
      %v1332 = vpop.f32.mrf.mxu0
      %v1333 = vadd.f32 %v969, %v1332
      %v1334 = vpop.f32.mrf.mxu0
      %1335 = vmatprep.mubr.bf16.mxu0 0
      %1336 = vmatmul.mubr.bf16.gmra.mxu0 %v1068
      %v1337 = vpop.f32.mrf.mxu0
      %v1338 = vadd.f32 %v969, %v1337
      %v1339 = vpop.f32.mrf.mxu0
      %v1340 = vpop.f32.mrf.mxu0
      %v1341 = vadd.f32 %v969, %v1340
      %v1342 = vpop.f32.mrf.mxu0
      %1343 = vmatprep.mubr.bf16.mxu0 0
      %1344 = vmatmul.mubr.bf16.gmra.mxu0 %v1071
      %v1345 = vpop.f32.mrf.mxu0
      %v1346 = vadd.f32 %v969, %v1345
      %v1347 = vpop.f32.mrf.mxu0
      %v1348 = vpop.f32.mrf.mxu0
      %v1349 = vadd.f32 %v969, %v1348
      %v1350 = vpop.f32.mrf.mxu0
      %1351 = vmatprep.mubr.bf16.mxu0 0
      %1352 = vmatmul.mubr.bf16.gmra.mxu0 %v1074
      %v1353 = vpop.f32.mrf.mxu0
      %v1354 = vadd.f32 %v969, %v1353
      %v1355 = vpop.f32.mrf.mxu0
      %v1356 = vpop.f32.mrf.mxu0
      %v1357 = vadd.f32 %v969, %v1356
      %v1358 = vpop.f32.mrf.mxu0
      %1359 = vmatprep.mubr.bf16.mxu0 0
      %1360 = vmatmul.mubr.bf16.gmra.mxu0 %v1077
      %v1361 = vpop.f32.mrf.mxu0
      %v1362 = vadd.f32 %v969, %v1361
      %v1363 = vpop.f32.mrf.mxu0
      %v1364 = vpop.f32.mrf.mxu0
      %v1365 = vadd.f32 %v969, %v1364
      %v1366 = vpop.f32.mrf.mxu0
      %1367 = vdwg.mxu0
      %v1368 = vld [vmem:[%s6] sm:$0xf]
      %v1369 = vld [vmem:[%s6 + $0x4] sm:$0xf]
      %v1370 = vld [vmem:[%s6 + $0x8] sm:$0xf]
      %v1371 = vld [vmem:[%s6 + $0xc] sm:$0xf]
      %v1376 = vunpack.c.l.b16 %v1368
      %v1377 = vunpack.c.l.b16 %v1369
      %v1378 = vunpack.c.l.b16 %v1370
      %v1379 = vunpack.c.l.b16 %v1371
      %v1380 = vpack.c.b16 %v1377, %v1376
      %v1381 = vpack.c.b16 %v1379, %v1378
      %1384 = vmatprep.subr.bf16.mxu0 0
      %1385 = vmatpush1.bf16.msra.mxu0 0
      %1386 = vmatprep.subr.bf16.mxu0 0
      %1387 = vmatpush1.bf16.msra.mxu0 0
      %1388 = vmatprep.subr.bf16.mxu0 0
      %1389 = vmatpush1.bf16.msra.mxu0 0
      %1390 = vmatprep.subr.bf16.mxu0 0
      %1391 = vmatpush1.bf16.msra.mxu0 0
      %1392 = vmatprep.subr.bf16.mxu0 0
      %1393 = vmatpush1.bf16.msra.mxu0 0
      %1394 = vmatprep.subr.bf16.mxu0 0
      %1395 = vmatpush1.bf16.msra.mxu0 0
      %1396 = vmatprep.subr.bf16.mxu0 0
      %1397 = vmatpush1.bf16.msra.mxu0 %v1381
      %1398 = vmatprep.subr.bf16.mxu0 0
      %1399 = vmatpush1.bf16.msra.mxu0 %v1380
      %1400 = vmatprep.subr.bf16.mxu0 0
      %1401 = vmatpush2.bf16.msra.mxu0 0
      %1402 = vmatprep.subr.bf16.mxu0 0
      %1403 = vmatpush2.bf16.msra.mxu0 0
      %1404 = vmatprep.subr.bf16.mxu0 0
      %1405 = vmatpush2.bf16.msra.mxu0 0
      %1406 = vmatprep.subr.bf16.mxu0 0
      %1407 = vmatpush2.bf16.msra.mxu0 0
      %1408 = vmatprep.subr.bf16.mxu0 0
      %1409 = vmatpush2.bf16.msra.mxu0 0
      %1410 = vmatprep.subr.bf16.mxu0 0
      %1411 = vmatpush2.bf16.msra.mxu0 0
      %1412 = vmatprep.subr.bf16.mxu0 0
      %1413 = vmatpush2.bf16.msra.mxu0 0
      %1414 = vmatprep.subr.bf16.mxu0 0
      %1415 = vmatpush2.bf16.msra.mxu0 0
      %1416 = vmatprep.mubr.bf16.mxu0 0
      %1417 = vmatmul.mubr.bf16.gmra.mxu0 %v984
      %v1418 = vpop.f32.mrf.mxu0
      %v1419 = vadd.f32 0.0, %v1418
      %v1420 = vpop.f32.mrf.mxu0
      %v1421 = vpop.f32.mrf.mxu0
      %v1422 = vadd.f32 0.0, %v1421
      %v1423 = vpop.f32.mrf.mxu0
      %1424 = vmatprep.mubr.bf16.mxu0 0
      %1425 = vmatmul.mubr.bf16.gmra.mxu0 %v987
      %v1426 = vpop.f32.mrf.mxu0
      %v1427 = vadd.f32 0.0, %v1426
      %v1428 = vpop.f32.mrf.mxu0
      %v1429 = vpop.f32.mrf.mxu0
      %v1430 = vadd.f32 0.0, %v1429
      %v1431 = vpop.f32.mrf.mxu0
      %1432 = vmatprep.mubr.bf16.mxu0 0
      %1433 = vmatmul.mubr.bf16.gmra.mxu0 %v990
      %v1434 = vpop.f32.mrf.mxu0
      %v1435 = vadd.f32 0.0, %v1434
      %v1436 = vpop.f32.mrf.mxu0
      %v1437 = vpop.f32.mrf.mxu0
      %v1438 = vadd.f32 0.0, %v1437
      %v1439 = vpop.f32.mrf.mxu0
      %1440 = vmatprep.mubr.bf16.mxu0 0
      %1441 = vmatmul.mubr.bf16.gmra.mxu0 %v993
      %v1442 = vpop.f32.mrf.mxu0
      %v1443 = vadd.f32 0.0, %v1442
      %v1444 = vpop.f32.mrf.mxu0
      %v1445 = vpop.f32.mrf.mxu0
      %v1446 = vadd.f32 0.0, %v1445
      %v1447 = vpop.f32.mrf.mxu0
      %1448 = vmatprep.mubr.bf16.mxu0 0
      %1449 = vmatmul.mubr.bf16.gmra.mxu0 %v996
      %v1450 = vpop.f32.mrf.mxu0
      %v1451 = vadd.f32 0.0, %v1450
      %v1452 = vpop.f32.mrf.mxu0
      %v1453 = vpop.f32.mrf.mxu0
      %v1454 = vadd.f32 0.0, %v1453
      %v1455 = vpop.f32.mrf.mxu0
      %1456 = vmatprep.mubr.bf16.mxu0 0
      %1457 = vmatmul.mubr.bf16.gmra.mxu0 %v999
      %v1458 = vpop.f32.mrf.mxu0
      %v1459 = vadd.f32 0.0, %v1458
      %v1460 = vpop.f32.mrf.mxu0
      %v1461 = vpop.f32.mrf.mxu0
      %v1462 = vadd.f32 0.0, %v1461
      %v1463 = vpop.f32.mrf.mxu0
      %1464 = vmatprep.mubr.bf16.mxu0 0
      %1465 = vmatmul.mubr.bf16.gmra.mxu0 %v1002
      %v1466 = vpop.f32.mrf.mxu0
      %v1467 = vadd.f32 0.0, %v1466
      %v1468 = vpop.f32.mrf.mxu0
      %v1469 = vpop.f32.mrf.mxu0
      %v1470 = vadd.f32 0.0, %v1469
      %v1471 = vpop.f32.mrf.mxu0
      %1472 = vmatprep.mubr.bf16.mxu0 0
      %1473 = vmatmul.mubr.bf16.gmra.mxu0 %v1005
      %v1474 = vpop.f32.mrf.mxu0
      %v1475 = vadd.f32 0.0, %v1474
      %v1476 = vpop.f32.mrf.mxu0
      %v1477 = vpop.f32.mrf.mxu0
      %v1478 = vadd.f32 0.0, %v1477
      %v1479 = vpop.f32.mrf.mxu0
      %1480 = vmatprep.mubr.bf16.mxu0 0
      %1481 = vmatmul.mubr.bf16.gmra.mxu0 %v1008
      %v1482 = vpop.f32.mrf.mxu0
      %v1483 = vadd.f32 0.0, %v1482
      %v1484 = vpop.f32.mrf.mxu0
      %v1485 = vpop.f32.mrf.mxu0
      %v1486 = vadd.f32 0.0, %v1485
      %v1487 = vpop.f32.mrf.mxu0
      %1488 = vmatprep.mubr.bf16.mxu0 0
      %1489 = vmatmul.mubr.bf16.gmra.mxu0 %v1011
      %v1490 = vpop.f32.mrf.mxu0
      %v1491 = vadd.f32 0.0, %v1490
      %v1492 = vpop.f32.mrf.mxu0
      %v1493 = vpop.f32.mrf.mxu0
      %v1494 = vadd.f32 0.0, %v1493
      %v1495 = vpop.f32.mrf.mxu0
      %1496 = vmatprep.mubr.bf16.mxu0 0
      %1497 = vmatmul.mubr.bf16.gmra.mxu0 %v1014
      %v1498 = vpop.f32.mrf.mxu0
      %v1499 = vadd.f32 0.0, %v1498
      %v1500 = vpop.f32.mrf.mxu0
      %v1501 = vpop.f32.mrf.mxu0
      %v1502 = vadd.f32 0.0, %v1501
      %v1503 = vpop.f32.mrf.mxu0
      %1504 = vmatprep.mubr.bf16.mxu0 0
      %1505 = vmatmul.mubr.bf16.gmra.mxu0 %v1017
      %v1506 = vpop.f32.mrf.mxu0
      %v1507 = vadd.f32 0.0, %v1506
      %v1508 = vpop.f32.mrf.mxu0
      %v1509 = vpop.f32.mrf.mxu0
      %v1510 = vadd.f32 0.0, %v1509
      %v1511 = vpop.f32.mrf.mxu0
      %1512 = vmatprep.mubr.bf16.mxu0 0
      %1513 = vmatmul.mubr.bf16.gmra.mxu0 %v1020
      %v1514 = vpop.f32.mrf.mxu0
      %v1515 = vadd.f32 0.0, %v1514
      %v1516 = vpop.f32.mrf.mxu0
      %v1517 = vpop.f32.mrf.mxu0
      %v1518 = vadd.f32 0.0, %v1517
      %v1519 = vpop.f32.mrf.mxu0
      %1520 = vmatprep.mubr.bf16.mxu0 0
      %1521 = vmatmul.mubr.bf16.gmra.mxu0 %v1023
      %v1522 = vpop.f32.mrf.mxu0
      %v1523 = vadd.f32 0.0, %v1522
      %v1524 = vpop.f32.mrf.mxu0
      %v1525 = vpop.f32.mrf.mxu0
      %v1526 = vadd.f32 0.0, %v1525
      %v1527 = vpop.f32.mrf.mxu0
      %1528 = vmatprep.mubr.bf16.mxu0 0
      %1529 = vmatmul.mubr.bf16.gmra.mxu0 %v1026
      %v1530 = vpop.f32.mrf.mxu0
      %v1531 = vadd.f32 0.0, %v1530
      %v1532 = vpop.f32.mrf.mxu0
      %v1533 = vpop.f32.mrf.mxu0
      %v1534 = vadd.f32 0.0, %v1533
      %v1535 = vpop.f32.mrf.mxu0
      %1536 = vmatprep.mubr.bf16.mxu0 0
      %1537 = vmatmul.mubr.bf16.gmra.mxu0 %v1029
      %v1538 = vpop.f32.mrf.mxu0
      %v1539 = vadd.f32 0.0, %v1538
      %v1540 = vpop.f32.mrf.mxu0
      %v1541 = vpop.f32.mrf.mxu0
      %v1542 = vadd.f32 0.0, %v1541
      %v1543 = vpop.f32.mrf.mxu0
      %1544 = vmatprep.mubr.bf16.mxu0 0
      %1545 = vmatmul.mubr.bf16.gmra.mxu0 %v1032
      %v1546 = vpop.f32.mrf.mxu0
      %v1547 = vadd.f32 0.0, %v1546
      %v1548 = vpop.f32.mrf.mxu0
      %v1549 = vpop.f32.mrf.mxu0
      %v1550 = vadd.f32 0.0, %v1549
      %v1551 = vpop.f32.mrf.mxu0
      %1552 = vmatprep.mubr.bf16.mxu0 0
      %1553 = vmatmul.mubr.bf16.gmra.mxu0 %v1035
      %v1554 = vpop.f32.mrf.mxu0
      %v1555 = vadd.f32 0.0, %v1554
      %v1556 = vpop.f32.mrf.mxu0
      %v1557 = vpop.f32.mrf.mxu0
      %v1558 = vadd.f32 0.0, %v1557
      %v1559 = vpop.f32.mrf.mxu0
      %1560 = vmatprep.mubr.bf16.mxu0 0
      %1561 = vmatmul.mubr.bf16.gmra.mxu0 %v1038
      %v1562 = vpop.f32.mrf.mxu0
      %v1563 = vadd.f32 0.0, %v1562
      %v1564 = vpop.f32.mrf.mxu0
      %v1565 = vpop.f32.mrf.mxu0
      %v1566 = vadd.f32 0.0, %v1565
      %v1567 = vpop.f32.mrf.mxu0
      %1568 = vmatprep.mubr.bf16.mxu0 0
      %1569 = vmatmul.mubr.bf16.gmra.mxu0 %v1041
      %v1570 = vpop.f32.mrf.mxu0
      %v1571 = vadd.f32 0.0, %v1570
      %v1572 = vpop.f32.mrf.mxu0
      %v1573 = vpop.f32.mrf.mxu0
      %v1574 = vadd.f32 0.0, %v1573
      %v1575 = vpop.f32.mrf.mxu0
      %1576 = vmatprep.mubr.bf16.mxu0 0
      %1577 = vmatmul.mubr.bf16.gmra.mxu0 %v1044
      %v1578 = vpop.f32.mrf.mxu0
      %v1579 = vadd.f32 0.0, %v1578
      %v1580 = vpop.f32.mrf.mxu0
      %v1581 = vpop.f32.mrf.mxu0
      %v1582 = vadd.f32 0.0, %v1581
      %v1583 = vpop.f32.mrf.mxu0
      %1584 = vmatprep.mubr.bf16.mxu0 0
      %1585 = vmatmul.mubr.bf16.gmra.mxu0 %v1047
      %v1586 = vpop.f32.mrf.mxu0
      %v1587 = vadd.f32 0.0, %v1586
      %v1588 = vpop.f32.mrf.mxu0
      %v1589 = vpop.f32.mrf.mxu0
      %v1590 = vadd.f32 0.0, %v1589
      %v1591 = vpop.f32.mrf.mxu0
      %1592 = vmatprep.mubr.bf16.mxu0 0
      %1593 = vmatmul.mubr.bf16.gmra.mxu0 %v1050
      %v1594 = vpop.f32.mrf.mxu0
      %v1595 = vadd.f32 0.0, %v1594
      %v1596 = vpop.f32.mrf.mxu0
      %v1597 = vpop.f32.mrf.mxu0
      %v1598 = vadd.f32 0.0, %v1597
      %v1599 = vpop.f32.mrf.mxu0
      %1600 = vmatprep.mubr.bf16.mxu0 0
      %1601 = vmatmul.mubr.bf16.gmra.mxu0 %v1053
      %v1602 = vpop.f32.mrf.mxu0
      %v1603 = vadd.f32 0.0, %v1602
      %v1604 = vpop.f32.mrf.mxu0
      %v1605 = vpop.f32.mrf.mxu0
      %v1606 = vadd.f32 0.0, %v1605
      %v1607 = vpop.f32.mrf.mxu0
      %1608 = vmatprep.mubr.bf16.mxu0 0
      %1609 = vmatmul.mubr.bf16.gmra.mxu0 %v1056
      %v1610 = vpop.f32.mrf.mxu0
      %v1611 = vadd.f32 0.0, %v1610
      %v1612 = vpop.f32.mrf.mxu0
      %v1613 = vpop.f32.mrf.mxu0
      %v1614 = vadd.f32 0.0, %v1613
      %v1615 = vpop.f32.mrf.mxu0
      %1616 = vmatprep.mubr.bf16.mxu0 0
      %1617 = vmatmul.mubr.bf16.gmra.mxu0 %v1059
      %v1618 = vpop.f32.mrf.mxu0
      %v1619 = vadd.f32 0.0, %v1618
      %v1620 = vpop.f32.mrf.mxu0
      %v1621 = vpop.f32.mrf.mxu0
      %v1622 = vadd.f32 0.0, %v1621
      %v1623 = vpop.f32.mrf.mxu0
      %1624 = vmatprep.mubr.bf16.mxu0 0
      %1625 = vmatmul.mubr.bf16.gmra.mxu0 %v1062
      %v1626 = vpop.f32.mrf.mxu0
      %v1627 = vadd.f32 0.0, %v1626
      %v1628 = vpop.f32.mrf.mxu0
      %v1629 = vpop.f32.mrf.mxu0
      %v1630 = vadd.f32 0.0, %v1629
      %v1631 = vpop.f32.mrf.mxu0
      %1632 = vmatprep.mubr.bf16.mxu0 0
      %1633 = vmatmul.mubr.bf16.gmra.mxu0 %v1065
      %v1634 = vpop.f32.mrf.mxu0
      %v1635 = vadd.f32 0.0, %v1634
      %v1636 = vpop.f32.mrf.mxu0
      %v1637 = vpop.f32.mrf.mxu0
      %v1638 = vadd.f32 0.0, %v1637
      %v1639 = vpop.f32.mrf.mxu0
      %1640 = vmatprep.mubr.bf16.mxu0 0
      %1641 = vmatmul.mubr.bf16.gmra.mxu0 %v1068
      %v1642 = vpop.f32.mrf.mxu0
      %v1643 = vadd.f32 0.0, %v1642
      %v1644 = vpop.f32.mrf.mxu0
      %v1645 = vpop.f32.mrf.mxu0
      %v1646 = vadd.f32 0.0, %v1645
      %v1647 = vpop.f32.mrf.mxu0
      %1648 = vmatprep.mubr.bf16.mxu0 0
      %1649 = vmatmul.mubr.bf16.gmra.mxu0 %v1071
      %v1650 = vpop.f32.mrf.mxu0
      %v1651 = vadd.f32 0.0, %v1650
      %v1652 = vpop.f32.mrf.mxu0
      %v1653 = vpop.f32.mrf.mxu0
      %v1654 = vadd.f32 0.0, %v1653
      %v1655 = vpop.f32.mrf.mxu0
      %1656 = vmatprep.mubr.bf16.mxu0 0
      %1657 = vmatmul.mubr.bf16.gmra.mxu0 %v1074
      %v1658 = vpop.f32.mrf.mxu0
      %v1659 = vadd.f32 0.0, %v1658
      %v1660 = vpop.f32.mrf.mxu0
      %v1661 = vpop.f32.mrf.mxu0
      %v1662 = vadd.f32 0.0, %v1661
      %v1663 = vpop.f32.mrf.mxu0
      %1664 = vmatprep.mubr.bf16.mxu0 0
      %1665 = vmatmul.mubr.bf16.gmra.mxu0 %v1077
      %v1666 = vpop.f32.mrf.mxu0
      %v1667 = vadd.f32 0.0, %v1666
      %v1668 = vpop.f32.mrf.mxu0
      %v1669 = vpop.f32.mrf.mxu0
      %v1670 = vadd.f32 0.0, %v1669
      %v1671 = vpop.f32.mrf.mxu0
      %1672 = vdwg.mxu0
      %v1673 = vpack.c.bf16 %v709, %v706
      %v1674 = vpack.c.bf16 %v717, %v714
      %v1675 = vpack.c.bf16 %v725, %v722
      %v1676 = vpack.c.bf16 %v733, %v730
      %v1677 = vpack.c.bf16 %v741, %v738
      %v1678 = vpack.c.bf16 %v749, %v746
      %v1679 = vpack.c.bf16 %v757, %v754
      %v1680 = vpack.c.bf16 %v765, %v762
      %v1681 = vpack.c.bf16 %v773, %v770
      %v1682 = vpack.c.bf16 %v781, %v778
      %v1683 = vpack.c.bf16 %v789, %v786
      %v1684 = vpack.c.bf16 %v797, %v794
      %v1685 = vpack.c.bf16 %v805, %v802
      %v1686 = vpack.c.bf16 %v813, %v810
      %v1687 = vpack.c.bf16 %v821, %v818
      %v1688 = vpack.c.bf16 %v829, %v826
      %v1689 = vpack.c.bf16 %v837, %v834
      %v1690 = vpack.c.bf16 %v845, %v842
      %v1691 = vpack.c.bf16 %v853, %v850
      %v1692 = vpack.c.bf16 %v861, %v858
      %v1693 = vpack.c.bf16 %v869, %v866
      %v1694 = vpack.c.bf16 %v877, %v874
      %v1695 = vpack.c.bf16 %v885, %v882
      %v1696 = vpack.c.bf16 %v893, %v890
      %v1697 = vpack.c.bf16 %v901, %v898
      %v1698 = vpack.c.bf16 %v909, %v906
      %v1699 = vpack.c.bf16 %v917, %v914
      %v1700 = vpack.c.bf16 %v925, %v922
      %v1701 = vpack.c.bf16 %v933, %v930
      %v1702 = vpack.c.bf16 %v941, %v938
      %v1703 = vpack.c.bf16 %v949, %v946
      %v1704 = vpack.c.bf16 %v957, %v954
      %v1737 = vunpack.c.l.b16 %v1673
      %v1738 = vunpack.c.h.b16 %v1673
      %v1739 = vunpack.c.l.b16 %v1674
      %v1740 = vunpack.c.h.b16 %v1674
      %v1741 = vunpack.c.l.b16 %v1675
      %v1742 = vunpack.c.h.b16 %v1675
      %v1743 = vunpack.c.l.b16 %v1676
      %v1744 = vunpack.c.h.b16 %v1676
      %v1745 = vunpack.c.l.b16 %v1677
      %v1746 = vunpack.c.h.b16 %v1677
      %v1747 = vunpack.c.l.b16 %v1678
      %v1748 = vunpack.c.h.b16 %v1678
      %v1749 = vunpack.c.l.b16 %v1679
      %v1750 = vunpack.c.h.b16 %v1679
      %v1751 = vunpack.c.l.b16 %v1680
      %v1752 = vunpack.c.h.b16 %v1680
      %v1753 = vunpack.c.l.b16 %v1681
      %v1754 = vunpack.c.h.b16 %v1681
      %v1755 = vunpack.c.l.b16 %v1682
      %v1756 = vunpack.c.h.b16 %v1682
      %v1757 = vunpack.c.l.b16 %v1683
      %v1758 = vunpack.c.h.b16 %v1683
      %v1759 = vunpack.c.l.b16 %v1684
      %v1760 = vunpack.c.h.b16 %v1684
      %v1761 = vunpack.c.l.b16 %v1685
      %v1762 = vunpack.c.h.b16 %v1685
      %v1763 = vunpack.c.l.b16 %v1686
      %v1764 = vunpack.c.h.b16 %v1686
      %v1765 = vunpack.c.l.b16 %v1687
      %v1766 = vunpack.c.h.b16 %v1687
      %v1767 = vunpack.c.l.b16 %v1688
      %v1768 = vunpack.c.h.b16 %v1688
      %v1769 = vunpack.c.l.b16 %v1689
      %v1770 = vunpack.c.h.b16 %v1689
      %v1771 = vunpack.c.l.b16 %v1690
      %v1772 = vunpack.c.h.b16 %v1690
      %v1773 = vunpack.c.l.b16 %v1691
      %v1774 = vunpack.c.h.b16 %v1691
      %v1775 = vunpack.c.l.b16 %v1692
      %v1776 = vunpack.c.h.b16 %v1692
      %v1777 = vunpack.c.l.b16 %v1693
      %v1778 = vunpack.c.h.b16 %v1693
      %v1779 = vunpack.c.l.b16 %v1694
      %v1780 = vunpack.c.h.b16 %v1694
      %v1781 = vunpack.c.l.b16 %v1695
      %v1782 = vunpack.c.h.b16 %v1695
      %v1783 = vunpack.c.l.b16 %v1696
      %v1784 = vunpack.c.h.b16 %v1696
      %v1785 = vunpack.c.l.b16 %v1697
      %v1786 = vunpack.c.h.b16 %v1697
      %v1787 = vunpack.c.l.b16 %v1698
      %v1788 = vunpack.c.h.b16 %v1698
      %v1789 = vunpack.c.l.b16 %v1699
      %v1790 = vunpack.c.h.b16 %v1699
      %v1791 = vunpack.c.l.b16 %v1700
      %v1792 = vunpack.c.h.b16 %v1700
      %v1793 = vunpack.c.l.b16 %v1701
      %v1794 = vunpack.c.h.b16 %v1701
      %v1795 = vunpack.c.l.b16 %v1702
      %v1796 = vunpack.c.h.b16 %v1702
      %v1797 = vunpack.c.l.b16 %v1703
      %v1798 = vunpack.c.h.b16 %v1703
      %v1799 = vunpack.c.l.b16 %v1704
      %v1800 = vunpack.c.h.b16 %v1704
      %v1801 = vpack.c.b16 %v1737, %v1737
      %v1802 = vpack.c.b16 %v1738, %v1738
      %v1803 = vpack.c.b16 %v1739, %v1739
      %v1804 = vpack.c.b16 %v1740, %v1740
      %v1805 = vpack.c.b16 %v1741, %v1741
      %v1806 = vpack.c.b16 %v1742, %v1742
      %v1807 = vpack.c.b16 %v1743, %v1743
      %v1808 = vpack.c.b16 %v1744, %v1744
      %v1809 = vpack.c.b16 %v1745, %v1745
      %v1810 = vpack.c.b16 %v1746, %v1746
      %v1811 = vpack.c.b16 %v1747, %v1747
      %v1812 = vpack.c.b16 %v1748, %v1748
      %v1813 = vpack.c.b16 %v1749, %v1749
      %v1814 = vpack.c.b16 %v1750, %v1750
      %v1815 = vpack.c.b16 %v1751, %v1751
      %v1816 = vpack.c.b16 %v1752, %v1752
      %v1817 = vpack.c.b16 %v1753, %v1753
      %v1818 = vpack.c.b16 %v1754, %v1754
      %v1819 = vpack.c.b16 %v1755, %v1755
      %v1820 = vpack.c.b16 %v1756, %v1756
      %v1821 = vpack.c.b16 %v1757, %v1757
      %v1822 = vpack.c.b16 %v1758, %v1758
      %v1823 = vpack.c.b16 %v1759, %v1759
      %v1824 = vpack.c.b16 %v1760, %v1760
      %v1825 = vpack.c.b16 %v1761, %v1761
      %v1826 = vpack.c.b16 %v1762, %v1762
      %v1827 = vpack.c.b16 %v1763, %v1763
      %v1828 = vpack.c.b16 %v1764, %v1764
      %v1829 = vpack.c.b16 %v1765, %v1765
      %v1830 = vpack.c.b16 %v1766, %v1766
      %v1831 = vpack.c.b16 %v1767, %v1767
      %v1832 = vpack.c.b16 %v1768, %v1768
      %v1833 = vpack.c.b16 %v1769, %v1769
      %v1834 = vpack.c.b16 %v1770, %v1770
      %v1835 = vpack.c.b16 %v1771, %v1771
      %v1836 = vpack.c.b16 %v1772, %v1772
      %v1837 = vpack.c.b16 %v1773, %v1773
      %v1838 = vpack.c.b16 %v1774, %v1774
      %v1839 = vpack.c.b16 %v1775, %v1775
      %v1840 = vpack.c.b16 %v1776, %v1776
      %v1841 = vpack.c.b16 %v1777, %v1777
      %v1842 = vpack.c.b16 %v1778, %v1778
      %v1843 = vpack.c.b16 %v1779, %v1779
      %v1844 = vpack.c.b16 %v1780, %v1780
      %v1845 = vpack.c.b16 %v1781, %v1781
      %v1846 = vpack.c.b16 %v1782, %v1782
      %v1847 = vpack.c.b16 %v1783, %v1783
      %v1848 = vpack.c.b16 %v1784, %v1784
      %v1849 = vpack.c.b16 %v1785, %v1785
      %v1850 = vpack.c.b16 %v1786, %v1786
      %v1851 = vpack.c.b16 %v1787, %v1787
      %v1852 = vpack.c.b16 %v1788, %v1788
      %v1853 = vpack.c.b16 %v1789, %v1789
      %v1854 = vpack.c.b16 %v1790, %v1790
      %v1855 = vpack.c.b16 %v1791, %v1791
      %v1856 = vpack.c.b16 %v1792, %v1792
      %v1857 = vpack.c.b16 %v1793, %v1793
      %v1858 = vpack.c.b16 %v1794, %v1794
      %v1859 = vpack.c.b16 %v1795, %v1795
      %v1860 = vpack.c.b16 %v1796, %v1796
      %v1861 = vpack.c.b16 %v1797, %v1797
      %v1862 = vpack.c.b16 %v1798, %v1798
      %v1863 = vpack.c.b16 %v1799, %v1799
      %v1864 = vpack.c.b16 %v1800, %v1800
      %vm1929 = vcmask 257024
      %1930 = vst.msk [vmem:[#allocation2] sm:$0xf] %vm1929, %v1801
      %1931 = vst.msk [vmem:[#allocation2 + $0x4] sm:$0xf] %vm1929, %v1802
      %1932 = vst.msk [vmem:[#allocation2 + $0x8] sm:$0xf] %vm1929, %v1803
      %1933 = vst.msk [vmem:[#allocation2 + $0xc] sm:$0xf] %vm1929, %v1804
      %1934 = vst.msk [vmem:[#allocation2 + $0x10] sm:$0xf] %vm1929, %v1805
      %1935 = vst.msk [vmem:[#allocation2 + $0x14] sm:$0xf] %vm1929, %v1806
      %1936 = vst.msk [vmem:[#allocation2 + $0x18] sm:$0xf] %vm1929, %v1807
      %1937 = vst.msk [vmem:[#allocation2 + $0x1c] sm:$0xf] %vm1929, %v1808
      %1938 = vst.msk [vmem:[#allocation2 + $0x20] sm:$0xf] %vm1929, %v1809
      %1939 = vst.msk [vmem:[#allocation2 + $0x24] sm:$0xf] %vm1929, %v1810
      %1940 = vst.msk [vmem:[#allocation2 + $0x28] sm:$0xf] %vm1929, %v1811
      %1941 = vst.msk [vmem:[#allocation2 + $0x2c] sm:$0xf] %vm1929, %v1812
      %1942 = vst.msk [vmem:[#allocation2 + $0x30] sm:$0xf] %vm1929, %v1813
      %1943 = vst.msk [vmem:[#allocation2 + $0x34] sm:$0xf] %vm1929, %v1814
      %1944 = vst.msk [vmem:[#allocation2 + $0x38] sm:$0xf] %vm1929, %v1815
      %1945 = vst.msk [vmem:[#allocation2 + $0x3c] sm:$0xf] %vm1929, %v1816
      %1946 = vst.msk [vmem:[#allocation2 + $0x40] sm:$0xf] %vm1929, %v1817
      %1947 = vst.msk [vmem:[#allocation2 + $0x44] sm:$0xf] %vm1929, %v1818
      %1948 = vst.msk [vmem:[#allocation2 + $0x48] sm:$0xf] %vm1929, %v1819
      %1949 = vst.msk [vmem:[#allocation2 + $0x4c] sm:$0xf] %vm1929, %v1820
      %1950 = vst.msk [vmem:[#allocation2 + $0x50] sm:$0xf] %vm1929, %v1821
      %1951 = vst.msk [vmem:[#allocation2 + $0x54] sm:$0xf] %vm1929, %v1822
      %1952 = vst.msk [vmem:[#allocation2 + $0x58] sm:$0xf] %vm1929, %v1823
      %1953 = vst.msk [vmem:[#allocation2 + $0x5c] sm:$0xf] %vm1929, %v1824
      %1954 = vst.msk [vmem:[#allocation2 + $0x60] sm:$0xf] %vm1929, %v1825
      %1955 = vst.msk [vmem:[#allocation2 + $0x64] sm:$0xf] %vm1929, %v1826
      %1956 = vst.msk [vmem:[#allocation2 + $0x68] sm:$0xf] %vm1929, %v1827
      %1957 = vst.msk [vmem:[#allocation2 + $0x6c] sm:$0xf] %vm1929, %v1828
      %1958 = vst.msk [vmem:[#allocation2 + $0x70] sm:$0xf] %vm1929, %v1829
      %1959 = vst.msk [vmem:[#allocation2 + $0x74] sm:$0xf] %vm1929, %v1830
      %1960 = vst.msk [vmem:[#allocation2 + $0x78] sm:$0xf] %vm1929, %v1831
      %1961 = vst.msk [vmem:[#allocation2 + $0x7c] sm:$0xf] %vm1929, %v1832
      %1962 = vst.msk [vmem:[#allocation2 + $0x80] sm:$0xf] %vm1929, %v1833
      %1963 = vst.msk [vmem:[#allocation2 + $0x84] sm:$0xf] %vm1929, %v1834
      %1964 = vst.msk [vmem:[#allocation2 + $0x88] sm:$0xf] %vm1929, %v1835
      %1965 = vst.msk [vmem:[#allocation2 + $0x8c] sm:$0xf] %vm1929, %v1836
      %1966 = vst.msk [vmem:[#allocation2 + $0x90] sm:$0xf] %vm1929, %v1837
      %1967 = vst.msk [vmem:[#allocation2 + $0x94] sm:$0xf] %vm1929, %v1838
      %1968 = vst.msk [vmem:[#allocation2 + $0x98] sm:$0xf] %vm1929, %v1839
      %1969 = vst.msk [vmem:[#allocation2 + $0x9c] sm:$0xf] %vm1929, %v1840
      %1970 = vst.msk [vmem:[#allocation2 + $0xa0] sm:$0xf] %vm1929, %v1841
      %1971 = vst.msk [vmem:[#allocation2 + $0xa4] sm:$0xf] %vm1929, %v1842
      %1972 = vst.msk [vmem:[#allocation2 + $0xa8] sm:$0xf] %vm1929, %v1843
      %1973 = vst.msk [vmem:[#allocation2 + $0xac] sm:$0xf] %vm1929, %v1844
      %1974 = vst.msk [vmem:[#allocation2 + $0xb0] sm:$0xf] %vm1929, %v1845
      %1975 = vst.msk [vmem:[#allocation2 + $0xb4] sm:$0xf] %vm1929, %v1846
      %1976 = vst.msk [vmem:[#allocation2 + $0xb8] sm:$0xf] %vm1929, %v1847
      %1977 = vst.msk [vmem:[#allocation2 + $0xbc] sm:$0xf] %vm1929, %v1848
      %1978 = vst.msk [vmem:[#allocation2 + $0xc0] sm:$0xf] %vm1929, %v1849
      %1979 = vst.msk [vmem:[#allocation2 + $0xc4] sm:$0xf] %vm1929, %v1850
      %1980 = vst.msk [vmem:[#allocation2 + $0xc8] sm:$0xf] %vm1929, %v1851
      %1981 = vst.msk [vmem:[#allocation2 + $0xcc] sm:$0xf] %vm1929, %v1852
      %1982 = vst.msk [vmem:[#allocation2 + $0xd0] sm:$0xf] %vm1929, %v1853
      %1983 = vst.msk [vmem:[#allocation2 + $0xd4] sm:$0xf] %vm1929, %v1854
      %1984 = vst.msk [vmem:[#allocation2 + $0xd8] sm:$0xf] %vm1929, %v1855
      %1985 = vst.msk [vmem:[#allocation2 + $0xdc] sm:$0xf] %vm1929, %v1856
      %1986 = vst.msk [vmem:[#allocation2 + $0xe0] sm:$0xf] %vm1929, %v1857
      %1987 = vst.msk [vmem:[#allocation2 + $0xe4] sm:$0xf] %vm1929, %v1858
      %1988 = vst.msk [vmem:[#allocation2 + $0xe8] sm:$0xf] %vm1929, %v1859
      %1989 = vst.msk [vmem:[#allocation2 + $0xec] sm:$0xf] %vm1929, %v1860
      %1990 = vst.msk [vmem:[#allocation2 + $0xf0] sm:$0xf] %vm1929, %v1861
      %1991 = vst.msk [vmem:[#allocation2 + $0xf4] sm:$0xf] %vm1929, %v1862
      %1992 = vst.msk [vmem:[#allocation2 + $0xf8] sm:$0xf] %vm1929, %v1863
      %1993 = vst.msk [vmem:[#allocation2 + $0xfc] sm:$0xf] %vm1929, %v1864
      %v1994 = vpack.c.bf16 %v1117, %v1114
      %v1995 = vpack.c.bf16 %v1125, %v1122
      %v1996 = vpack.c.bf16 %v1133, %v1130
      %v1997 = vpack.c.bf16 %v1141, %v1138
      %v1998 = vpack.c.bf16 %v1149, %v1146
      %v1999 = vpack.c.bf16 %v1157, %v1154
      %v2000 = vpack.c.bf16 %v1165, %v1162
      %v2001 = vpack.c.bf16 %v1173, %v1170
      %v2002 = vpack.c.bf16 %v1181, %v1178
      %v2003 = vpack.c.bf16 %v1189, %v1186
      %v2004 = vpack.c.bf16 %v1197, %v1194
      %v2005 = vpack.c.bf16 %v1205, %v1202
      %v2006 = vpack.c.bf16 %v1213, %v1210
      %v2007 = vpack.c.bf16 %v1221, %v1218
      %v2008 = vpack.c.bf16 %v1229, %v1226
      %v2009 = vpack.c.bf16 %v1237, %v1234
      %v2010 = vpack.c.bf16 %v1245, %v1242
      %v2011 = vpack.c.bf16 %v1253, %v1250
      %v2012 = vpack.c.bf16 %v1261, %v1258
      %v2013 = vpack.c.bf16 %v1269, %v1266
      %v2014 = vpack.c.bf16 %v1277, %v1274
      %v2015 = vpack.c.bf16 %v1285, %v1282
      %v2016 = vpack.c.bf16 %v1293, %v1290
      %v2017 = vpack.c.bf16 %v1301, %v1298
      %v2018 = vpack.c.bf16 %v1309, %v1306
      %v2019 = vpack.c.bf16 %v1317, %v1314
      %v2020 = vpack.c.bf16 %v1325, %v1322
      %v2021 = vpack.c.bf16 %v1333, %v1330
      %v2022 = vpack.c.bf16 %v1341, %v1338
      %v2023 = vpack.c.bf16 %v1349, %v1346
      %v2024 = vpack.c.bf16 %v1357, %v1354
      %v2025 = vpack.c.bf16 %v1365, %v1362
      %v2058 = vunpack.c.l.b16 %v1994
      %v2059 = vunpack.c.h.b16 %v1994
      %v2060 = vunpack.c.l.b16 %v1995
      %v2061 = vunpack.c.h.b16 %v1995
      %v2062 = vunpack.c.l.b16 %v1996
      %v2063 = vunpack.c.h.b16 %v1996
      %v2064 = vunpack.c.l.b16 %v1997
      %v2065 = vunpack.c.h.b16 %v1997
      %v2066 = vunpack.c.l.b16 %v1998
      %v2067 = vunpack.c.h.b16 %v1998
      %v2068 = vunpack.c.l.b16 %v1999
      %v2069 = vunpack.c.h.b16 %v1999
      %v2070 = vunpack.c.l.b16 %v2000
      %v2071 = vunpack.c.h.b16 %v2000
      %v2072 = vunpack.c.l.b16 %v2001
      %v2073 = vunpack.c.h.b16 %v2001
      %v2074 = vunpack.c.l.b16 %v2002
      %v2075 = vunpack.c.h.b16 %v2002
      %v2076 = vunpack.c.l.b16 %v2003
      %v2077 = vunpack.c.h.b16 %v2003
      %v2078 = vunpack.c.l.b16 %v2004
      %v2079 = vunpack.c.h.b16 %v2004
      %v2080 = vunpack.c.l.b16 %v2005
      %v2081 = vunpack.c.h.b16 %v2005
      %v2082 = vunpack.c.l.b16 %v2006
      %v2083 = vunpack.c.h.b16 %v2006
      %v2084 = vunpack.c.l.b16 %v2007
      %v2085 = vunpack.c.h.b16 %v2007
      %v2086 = vunpack.c.l.b16 %v2008
      %v2087 = vunpack.c.h.b16 %v2008
      %v2088 = vunpack.c.l.b16 %v2009
      %v2089 = vunpack.c.h.b16 %v2009
      %v2090 = vunpack.c.l.b16 %v2010
      %v2091 = vunpack.c.h.b16 %v2010
      %v2092 = vunpack.c.l.b16 %v2011
      %v2093 = vunpack.c.h.b16 %v2011
      %v2094 = vunpack.c.l.b16 %v2012
      %v2095 = vunpack.c.h.b16 %v2012
      %v2096 = vunpack.c.l.b16 %v2013
      %v2097 = vunpack.c.h.b16 %v2013
      %v2098 = vunpack.c.l.b16 %v2014
      %v2099 = vunpack.c.h.b16 %v2014
      %v2100 = vunpack.c.l.b16 %v2015
      %v2101 = vunpack.c.h.b16 %v2015
      %v2102 = vunpack.c.l.b16 %v2016
      %v2103 = vunpack.c.h.b16 %v2016
      %v2104 = vunpack.c.l.b16 %v2017
      %v2105 = vunpack.c.h.b16 %v2017
      %v2106 = vunpack.c.l.b16 %v2018
      %v2107 = vunpack.c.h.b16 %v2018
      %v2108 = vunpack.c.l.b16 %v2019
      %v2109 = vunpack.c.h.b16 %v2019
      %v2110 = vunpack.c.l.b16 %v2020
      %v2111 = vunpack.c.h.b16 %v2020
      %v2112 = vunpack.c.l.b16 %v2021
      %v2113 = vunpack.c.h.b16 %v2021
      %v2114 = vunpack.c.l.b16 %v2022
      %v2115 = vunpack.c.h.b16 %v2022
      %v2116 = vunpack.c.l.b16 %v2023
      %v2117 = vunpack.c.h.b16 %v2023
      %v2118 = vunpack.c.l.b16 %v2024
      %v2119 = vunpack.c.h.b16 %v2024
      %v2120 = vunpack.c.l.b16 %v2025
      %v2121 = vunpack.c.h.b16 %v2025
      %v2122 = vpack.c.b16 %v2058, %v2058
      %v2123 = vpack.c.b16 %v2059, %v2059
      %v2124 = vpack.c.b16 %v2060, %v2060
      %v2125 = vpack.c.b16 %v2061, %v2061
      %v2126 = vpack.c.b16 %v2062, %v2062
      %v2127 = vpack.c.b16 %v2063, %v2063
      %v2128 = vpack.c.b16 %v2064, %v2064
      %v2129 = vpack.c.b16 %v2065, %v2065
      %v2130 = vpack.c.b16 %v2066, %v2066
      %v2131 = vpack.c.b16 %v2067, %v2067
      %v2132 = vpack.c.b16 %v2068, %v2068
      %v2133 = vpack.c.b16 %v2069, %v2069
      %v2134 = vpack.c.b16 %v2070, %v2070
      %v2135 = vpack.c.b16 %v2071, %v2071
      %v2136 = vpack.c.b16 %v2072, %v2072
      %v2137 = vpack.c.b16 %v2073, %v2073
      %v2138 = vpack.c.b16 %v2074, %v2074
      %v2139 = vpack.c.b16 %v2075, %v2075
      %v2140 = vpack.c.b16 %v2076, %v2076
      %v2141 = vpack.c.b16 %v2077, %v2077
      %v2142 = vpack.c.b16 %v2078, %v2078
      %v2143 = vpack.c.b16 %v2079, %v2079
      %v2144 = vpack.c.b16 %v2080, %v2080
      %v2145 = vpack.c.b16 %v2081, %v2081
      %v2146 = vpack.c.b16 %v2082, %v2082
      %v2147 = vpack.c.b16 %v2083, %v2083
      %v2148 = vpack.c.b16 %v2084, %v2084
      %v2149 = vpack.c.b16 %v2085, %v2085
      %v2150 = vpack.c.b16 %v2086, %v2086
      %v2151 = vpack.c.b16 %v2087, %v2087
      %v2152 = vpack.c.b16 %v2088, %v2088
      %v2153 = vpack.c.b16 %v2089, %v2089
      %v2154 = vpack.c.b16 %v2090, %v2090
      %v2155 = vpack.c.b16 %v2091, %v2091
      %v2156 = vpack.c.b16 %v2092, %v2092
      %v2157 = vpack.c.b16 %v2093, %v2093
      %v2158 = vpack.c.b16 %v2094, %v2094
      %v2159 = vpack.c.b16 %v2095, %v2095
      %v2160 = vpack.c.b16 %v2096, %v2096
      %v2161 = vpack.c.b16 %v2097, %v2097
      %v2162 = vpack.c.b16 %v2098, %v2098
      %v2163 = vpack.c.b16 %v2099, %v2099
      %v2164 = vpack.c.b16 %v2100, %v2100
      %v2165 = vpack.c.b16 %v2101, %v2101
      %v2166 = vpack.c.b16 %v2102, %v2102
      %v2167 = vpack.c.b16 %v2103, %v2103
      %v2168 = vpack.c.b16 %v2104, %v2104
      %v2169 = vpack.c.b16 %v2105, %v2105
      %v2170 = vpack.c.b16 %v2106, %v2106
      %v2171 = vpack.c.b16 %v2107, %v2107
      %v2172 = vpack.c.b16 %v2108, %v2108
      %v2173 = vpack.c.b16 %v2109, %v2109
      %v2174 = vpack.c.b16 %v2110, %v2110
      %v2175 = vpack.c.b16 %v2111, %v2111
      %v2176 = vpack.c.b16 %v2112, %v2112
      %v2177 = vpack.c.b16 %v2113, %v2113
      %v2178 = vpack.c.b16 %v2114, %v2114
      %v2179 = vpack.c.b16 %v2115, %v2115
      %v2180 = vpack.c.b16 %v2116, %v2116
      %v2181 = vpack.c.b16 %v2117, %v2117
      %v2182 = vpack.c.b16 %v2118, %v2118
      %v2183 = vpack.c.b16 %v2119, %v2119
      %v2184 = vpack.c.b16 %v2120, %v2120
      %v2185 = vpack.c.b16 %v2121, %v2121
      %2250 = vst.msk [vmem:[#allocation3] sm:$0xf] %vm1929, %v2122
      %2251 = vst.msk [vmem:[#allocation3 + $0x4] sm:$0xf] %vm1929, %v2123
      %2252 = vst.msk [vmem:[#allocation3 + $0x8] sm:$0xf] %vm1929, %v2124
      %2253 = vst.msk [vmem:[#allocation3 + $0xc] sm:$0xf] %vm1929, %v2125
      %2254 = vst.msk [vmem:[#allocation3 + $0x10] sm:$0xf] %vm1929, %v2126
      %2255 = vst.msk [vmem:[#allocation3 + $0x14] sm:$0xf] %vm1929, %v2127
      %2256 = vst.msk [vmem:[#allocation3 + $0x18] sm:$0xf] %vm1929, %v2128
      %2257 = vst.msk [vmem:[#allocation3 + $0x1c] sm:$0xf] %vm1929, %v2129
      %2258 = vst.msk [vmem:[#allocation3 + $0x20] sm:$0xf] %vm1929, %v2130
      %2259 = vst.msk [vmem:[#allocation3 + $0x24] sm:$0xf] %vm1929, %v2131
      %2260 = vst.msk [vmem:[#allocation3 + $0x28] sm:$0xf] %vm1929, %v2132
      %2261 = vst.msk [vmem:[#allocation3 + $0x2c] sm:$0xf] %vm1929, %v2133
      %2262 = vst.msk [vmem:[#allocation3 + $0x30] sm:$0xf] %vm1929, %v2134
      %2263 = vst.msk [vmem:[#allocation3 + $0x34] sm:$0xf] %vm1929, %v2135
      %2264 = vst.msk [vmem:[#allocation3 + $0x38] sm:$0xf] %vm1929, %v2136
      %2265 = vst.msk [vmem:[#allocation3 + $0x3c] sm:$0xf] %vm1929, %v2137
      %2266 = vst.msk [vmem:[#allocation3 + $0x40] sm:$0xf] %vm1929, %v2138
      %2267 = vst.msk [vmem:[#allocation3 + $0x44] sm:$0xf] %vm1929, %v2139
      %2268 = vst.msk [vmem:[#allocation3 + $0x48] sm:$0xf] %vm1929, %v2140
      %2269 = vst.msk [vmem:[#allocation3 + $0x4c] sm:$0xf] %vm1929, %v2141
      %2270 = vst.msk [vmem:[#allocation3 + $0x50] sm:$0xf] %vm1929, %v2142
      %2271 = vst.msk [vmem:[#allocation3 + $0x54] sm:$0xf] %vm1929, %v2143
      %2272 = vst.msk [vmem:[#allocation3 + $0x58] sm:$0xf] %vm1929, %v2144
      %2273 = vst.msk [vmem:[#allocation3 + $0x5c] sm:$0xf] %vm1929, %v2145
      %2274 = vst.msk [vmem:[#allocation3 + $0x60] sm:$0xf] %vm1929, %v2146
      %2275 = vst.msk [vmem:[#allocation3 + $0x64] sm:$0xf] %vm1929, %v2147
      %2276 = vst.msk [vmem:[#allocation3 + $0x68] sm:$0xf] %vm1929, %v2148
      %2277 = vst.msk [vmem:[#allocation3 + $0x6c] sm:$0xf] %vm1929, %v2149
      %2278 = vst.msk [vmem:[#allocation3 + $0x70] sm:$0xf] %vm1929, %v2150
      %2279 = vst.msk [vmem:[#allocation3 + $0x74] sm:$0xf] %vm1929, %v2151
      %2280 = vst.msk [vmem:[#allocation3 + $0x78] sm:$0xf] %vm1929, %v2152
      %2281 = vst.msk [vmem:[#allocation3 + $0x7c] sm:$0xf] %vm1929, %v2153
      %2282 = vst.msk [vmem:[#allocation3 + $0x80] sm:$0xf] %vm1929, %v2154
      %2283 = vst.msk [vmem:[#allocation3 + $0x84] sm:$0xf] %vm1929, %v2155
      %2284 = vst.msk [vmem:[#allocation3 + $0x88] sm:$0xf] %vm1929, %v2156
      %2285 = vst.msk [vmem:[#allocation3 + $0x8c] sm:$0xf] %vm1929, %v2157
      %2286 = vst.msk [vmem:[#allocation3 + $0x90] sm:$0xf] %vm1929, %v2158
      %2287 = vst.msk [vmem:[#allocation3 + $0x94] sm:$0xf] %vm1929, %v2159
      %2288 = vst.msk [vmem:[#allocation3 + $0x98] sm:$0xf] %vm1929, %v2160
      %2289 = vst.msk [vmem:[#allocation3 + $0x9c] sm:$0xf] %vm1929, %v2161
      %2290 = vst.msk [vmem:[#allocation3 + $0xa0] sm:$0xf] %vm1929, %v2162
      %2291 = vst.msk [vmem:[#allocation3 + $0xa4] sm:$0xf] %vm1929, %v2163
      %2292 = vst.msk [vmem:[#allocation3 + $0xa8] sm:$0xf] %vm1929, %v2164
      %2293 = vst.msk [vmem:[#allocation3 + $0xac] sm:$0xf] %vm1929, %v2165
      %2294 = vst.msk [vmem:[#allocation3 + $0xb0] sm:$0xf] %vm1929, %v2166
      %2295 = vst.msk [vmem:[#allocation3 + $0xb4] sm:$0xf] %vm1929, %v2167
      %2296 = vst.msk [vmem:[#allocation3 + $0xb8] sm:$0xf] %vm1929, %v2168
      %2297 = vst.msk [vmem:[#allocation3 + $0xbc] sm:$0xf] %vm1929, %v2169
      %2298 = vst.msk [vmem:[#allocation3 + $0xc0] sm:$0xf] %vm1929, %v2170
      %2299 = vst.msk [vmem:[#allocation3 + $0xc4] sm:$0xf] %vm1929, %v2171
      %2300 = vst.msk [vmem:[#allocation3 + $0xc8] sm:$0xf] %vm1929, %v2172
      %2301 = vst.msk [vmem:[#allocation3 + $0xcc] sm:$0xf] %vm1929, %v2173
      %2302 = vst.msk [vmem:[#allocation3 + $0xd0] sm:$0xf] %vm1929, %v2174
      %2303 = vst.msk [vmem:[#allocation3 + $0xd4] sm:$0xf] %vm1929, %v2175
      %2304 = vst.msk [vmem:[#allocation3 + $0xd8] sm:$0xf] %vm1929, %v2176
      %2305 = vst.msk [vmem:[#allocation3 + $0xdc] sm:$0xf] %vm1929, %v2177
      %2306 = vst.msk [vmem:[#allocation3 + $0xe0] sm:$0xf] %vm1929, %v2178
      %2307 = vst.msk [vmem:[#allocation3 + $0xe4] sm:$0xf] %vm1929, %v2179
      %2308 = vst.msk [vmem:[#allocation3 + $0xe8] sm:$0xf] %vm1929, %v2180
      %2309 = vst.msk [vmem:[#allocation3 + $0xec] sm:$0xf] %vm1929, %v2181
      %2310 = vst.msk [vmem:[#allocation3 + $0xf0] sm:$0xf] %vm1929, %v2182
      %2311 = vst.msk [vmem:[#allocation3 + $0xf4] sm:$0xf] %vm1929, %v2183
      %2312 = vst.msk [vmem:[#allocation3 + $0xf8] sm:$0xf] %vm1929, %v2184
      %2313 = vst.msk [vmem:[#allocation3 + $0xfc] sm:$0xf] %vm1929, %v2185
      %v2314 = vpack.c.bf16 %v1422, %v1419
      %v2315 = vpack.c.bf16 %v1430, %v1427
      %v2316 = vpack.c.bf16 %v1438, %v1435
      %v2317 = vpack.c.bf16 %v1446, %v1443
      %v2318 = vpack.c.bf16 %v1454, %v1451
      %v2319 = vpack.c.bf16 %v1462, %v1459
      %v2320 = vpack.c.bf16 %v1470, %v1467
      %v2321 = vpack.c.bf16 %v1478, %v1475
      %v2322 = vpack.c.bf16 %v1486, %v1483
      %v2323 = vpack.c.bf16 %v1494, %v1491
      %v2324 = vpack.c.bf16 %v1502, %v1499
      %v2325 = vpack.c.bf16 %v1510, %v1507
      %v2326 = vpack.c.bf16 %v1518, %v1515
      %v2327 = vpack.c.bf16 %v1526, %v1523
      %v2328 = vpack.c.bf16 %v1534, %v1531
      %v2329 = vpack.c.bf16 %v1542, %v1539
      %v2330 = vpack.c.bf16 %v1550, %v1547
      %v2331 = vpack.c.bf16 %v1558, %v1555
      %v2332 = vpack.c.bf16 %v1566, %v1563
      %v2333 = vpack.c.bf16 %v1574, %v1571
      %v2334 = vpack.c.bf16 %v1582, %v1579
      %v2335 = vpack.c.bf16 %v1590, %v1587
      %v2336 = vpack.c.bf16 %v1598, %v1595
      %v2337 = vpack.c.bf16 %v1606, %v1603
      %v2338 = vpack.c.bf16 %v1614, %v1611
      %v2339 = vpack.c.bf16 %v1622, %v1619
      %v2340 = vpack.c.bf16 %v1630, %v1627
      %v2341 = vpack.c.bf16 %v1638, %v1635
      %v2342 = vpack.c.bf16 %v1646, %v1643
      %v2343 = vpack.c.bf16 %v1654, %v1651
      %v2344 = vpack.c.bf16 %v1662, %v1659
      %v2345 = vpack.c.bf16 %v1670, %v1667
      %v2378 = vunpack.c.l.b16 %v2314
      %v2379 = vunpack.c.h.b16 %v2314
      %v2380 = vunpack.c.l.b16 %v2315
      %v2381 = vunpack.c.h.b16 %v2315
      %v2382 = vunpack.c.l.b16 %v2316
      %v2383 = vunpack.c.h.b16 %v2316
      %v2384 = vunpack.c.l.b16 %v2317
      %v2385 = vunpack.c.h.b16 %v2317
      %v2386 = vunpack.c.l.b16 %v2318
      %v2387 = vunpack.c.h.b16 %v2318
      %v2388 = vunpack.c.l.b16 %v2319
      %v2389 = vunpack.c.h.b16 %v2319
      %v2390 = vunpack.c.l.b16 %v2320
      %v2391 = vunpack.c.h.b16 %v2320
      %v2392 = vunpack.c.l.b16 %v2321
      %v2393 = vunpack.c.h.b16 %v2321
      %v2394 = vunpack.c.l.b16 %v2322
      %v2395 = vunpack.c.h.b16 %v2322
      %v2396 = vunpack.c.l.b16 %v2323
      %v2397 = vunpack.c.h.b16 %v2323
      %v2398 = vunpack.c.l.b16 %v2324
      %v2399 = vunpack.c.h.b16 %v2324
      %v2400 = vunpack.c.l.b16 %v2325
      %v2401 = vunpack.c.h.b16 %v2325
      %v2402 = vunpack.c.l.b16 %v2326
      %v2403 = vunpack.c.h.b16 %v2326
      %v2404 = vunpack.c.l.b16 %v2327
      %v2405 = vunpack.c.h.b16 %v2327
      %v2406 = vunpack.c.l.b16 %v2328
      %v2407 = vunpack.c.h.b16 %v2328
      %v2408 = vunpack.c.l.b16 %v2329
      %v2409 = vunpack.c.h.b16 %v2329
      %v2410 = vunpack.c.l.b16 %v2330
      %v2411 = vunpack.c.h.b16 %v2330
      %v2412 = vunpack.c.l.b16 %v2331
      %v2413 = vunpack.c.h.b16 %v2331
      %v2414 = vunpack.c.l.b16 %v2332
      %v2415 = vunpack.c.h.b16 %v2332
      %v2416 = vunpack.c.l.b16 %v2333
      %v2417 = vunpack.c.h.b16 %v2333
      %v2418 = vunpack.c.l.b16 %v2334
      %v2419 = vunpack.c.h.b16 %v2334
      %v2420 = vunpack.c.l.b16 %v2335
      %v2421 = vunpack.c.h.b16 %v2335
      %v2422 = vunpack.c.l.b16 %v2336
      %v2423 = vunpack.c.h.b16 %v2336
      %v2424 = vunpack.c.l.b16 %v2337
      %v2425 = vunpack.c.h.b16 %v2337
      %v2426 = vunpack.c.l.b16 %v2338
      %v2427 = vunpack.c.h.b16 %v2338
      %v2428 = vunpack.c.l.b16 %v2339
      %v2429 = vunpack.c.h.b16 %v2339
      %v2430 = vunpack.c.l.b16 %v2340
      %v2431 = vunpack.c.h.b16 %v2340
      %v2432 = vunpack.c.l.b16 %v2341
      %v2433 = vunpack.c.h.b16 %v2341
      %v2434 = vunpack.c.l.b16 %v2342
      %v2435 = vunpack.c.h.b16 %v2342
      %v2436 = vunpack.c.l.b16 %v2343
      %v2437 = vunpack.c.h.b16 %v2343
      %v2438 = vunpack.c.l.b16 %v2344
      %v2439 = vunpack.c.h.b16 %v2344
      %v2440 = vunpack.c.l.b16 %v2345
      %v2441 = vunpack.c.h.b16 %v2345
      %v2442 = vpack.c.b16 %v2378, %v2378
      %v2443 = vpack.c.b16 %v2379, %v2379
      %v2444 = vpack.c.b16 %v2380, %v2380
      %v2445 = vpack.c.b16 %v2381, %v2381
      %v2446 = vpack.c.b16 %v2382, %v2382
      %v2447 = vpack.c.b16 %v2383, %v2383
      %v2448 = vpack.c.b16 %v2384, %v2384
      %v2449 = vpack.c.b16 %v2385, %v2385
      %v2450 = vpack.c.b16 %v2386, %v2386
      %v2451 = vpack.c.b16 %v2387, %v2387
      %v2452 = vpack.c.b16 %v2388, %v2388
      %v2453 = vpack.c.b16 %v2389, %v2389
      %v2454 = vpack.c.b16 %v2390, %v2390
      %v2455 = vpack.c.b16 %v2391, %v2391
      %v2456 = vpack.c.b16 %v2392, %v2392
      %v2457 = vpack.c.b16 %v2393, %v2393
      %v2458 = vpack.c.b16 %v2394, %v2394
      %v2459 = vpack.c.b16 %v2395, %v2395
      %v2460 = vpack.c.b16 %v2396, %v2396
      %v2461 = vpack.c.b16 %v2397, %v2397
      %v2462 = vpack.c.b16 %v2398, %v2398
      %v2463 = vpack.c.b16 %v2399, %v2399
      %v2464 = vpack.c.b16 %v2400, %v2400
      %v2465 = vpack.c.b16 %v2401, %v2401
      %v2466 = vpack.c.b16 %v2402, %v2402
      %v2467 = vpack.c.b16 %v2403, %v2403
      %v2468 = vpack.c.b16 %v2404, %v2404
      %v2469 = vpack.c.b16 %v2405, %v2405
      %v2470 = vpack.c.b16 %v2406, %v2406
      %v2471 = vpack.c.b16 %v2407, %v2407
      %v2472 = vpack.c.b16 %v2408, %v2408
      %v2473 = vpack.c.b16 %v2409, %v2409
      %v2474 = vpack.c.b16 %v2410, %v2410
      %v2475 = vpack.c.b16 %v2411, %v2411
      %v2476 = vpack.c.b16 %v2412, %v2412
      %v2477 = vpack.c.b16 %v2413, %v2413
      %v2478 = vpack.c.b16 %v2414, %v2414
      %v2479 = vpack.c.b16 %v2415, %v2415
      %v2480 = vpack.c.b16 %v2416, %v2416
      %v2481 = vpack.c.b16 %v2417, %v2417
      %v2482 = vpack.c.b16 %v2418, %v2418
      %v2483 = vpack.c.b16 %v2419, %v2419
      %v2484 = vpack.c.b16 %v2420, %v2420
      %v2485 = vpack.c.b16 %v2421, %v2421
      %v2486 = vpack.c.b16 %v2422, %v2422
      %v2487 = vpack.c.b16 %v2423, %v2423
      %v2488 = vpack.c.b16 %v2424, %v2424
      %v2489 = vpack.c.b16 %v2425, %v2425
      %v2490 = vpack.c.b16 %v2426, %v2426
      %v2491 = vpack.c.b16 %v2427, %v2427
      %v2492 = vpack.c.b16 %v2428, %v2428
      %v2493 = vpack.c.b16 %v2429, %v2429
      %v2494 = vpack.c.b16 %v2430, %v2430
      %v2495 = vpack.c.b16 %v2431, %v2431
      %v2496 = vpack.c.b16 %v2432, %v2432
      %v2497 = vpack.c.b16 %v2433, %v2433
      %v2498 = vpack.c.b16 %v2434, %v2434
      %v2499 = vpack.c.b16 %v2435, %v2435
      %v2500 = vpack.c.b16 %v2436, %v2436
      %v2501 = vpack.c.b16 %v2437, %v2437
      %v2502 = vpack.c.b16 %v2438, %v2438
      %v2503 = vpack.c.b16 %v2439, %v2439
      %v2504 = vpack.c.b16 %v2440, %v2440
      %v2505 = vpack.c.b16 %v2441, %v2441
      %2570 = vst [vmem:[#allocation4] sm:$0xf] %v2442
      %2571 = vst [vmem:[#allocation4 + $0x4] sm:$0xf] %v2443
      %2572 = vst [vmem:[#allocation4 + $0x8] sm:$0xf] %v2444
      %2573 = vst [vmem:[#allocation4 + $0xc] sm:$0xf] %v2445
      %2574 = vst [vmem:[#allocation4 + $0x10] sm:$0xf] %v2446
      %2575 = vst [vmem:[#allocation4 + $0x14] sm:$0xf] %v2447
      %2576 = vst [vmem:[#allocation4 + $0x18] sm:$0xf] %v2448
      %2577 = vst [vmem:[#allocation4 + $0x1c] sm:$0xf] %v2449
      %2578 = vst [vmem:[#allocation4 + $0x20] sm:$0xf] %v2450
      %2579 = vst [vmem:[#allocation4 + $0x24] sm:$0xf] %v2451
      %2580 = vst [vmem:[#allocation4 + $0x28] sm:$0xf] %v2452
      %2581 = vst [vmem:[#allocation4 + $0x2c] sm:$0xf] %v2453
      %2582 = vst [vmem:[#allocation4 + $0x30] sm:$0xf] %v2454
      %2583 = vst [vmem:[#allocation4 + $0x34] sm:$0xf] %v2455
      %2584 = vst [vmem:[#allocation4 + $0x38] sm:$0xf] %v2456
      %2585 = vst [vmem:[#allocation4 + $0x3c] sm:$0xf] %v2457
      %2586 = vst [vmem:[#allocation4 + $0x40] sm:$0xf] %v2458
      %2587 = vst [vmem:[#allocation4 + $0x44] sm:$0xf] %v2459
      %2588 = vst [vmem:[#allocation4 + $0x48] sm:$0xf] %v2460
      %2589 = vst [vmem:[#allocation4 + $0x4c] sm:$0xf] %v2461
      %2590 = vst [vmem:[#allocation4 + $0x50] sm:$0xf] %v2462
      %2591 = vst [vmem:[#allocation4 + $0x54] sm:$0xf] %v2463
      %2592 = vst [vmem:[#allocation4 + $0x58] sm:$0xf] %v2464
      %2593 = vst [vmem:[#allocation4 + $0x5c] sm:$0xf] %v2465
      %2594 = vst [vmem:[#allocation4 + $0x60] sm:$0xf] %v2466
      %2595 = vst [vmem:[#allocation4 + $0x64] sm:$0xf] %v2467
      %2596 = vst [vmem:[#allocation4 + $0x68] sm:$0xf] %v2468
      %2597 = vst [vmem:[#allocation4 + $0x6c] sm:$0xf] %v2469
      %2598 = vst [vmem:[#allocation4 + $0x70] sm:$0xf] %v2470
      %2599 = vst [vmem:[#allocation4 + $0x74] sm:$0xf] %v2471
      %2600 = vst [vmem:[#allocation4 + $0x78] sm:$0xf] %v2472
      %2601 = vst [vmem:[#allocation4 + $0x7c] sm:$0xf] %v2473
      %2602 = vst [vmem:[#allocation4 + $0x80] sm:$0xf] %v2474
      %2603 = vst [vmem:[#allocation4 + $0x84] sm:$0xf] %v2475
      %2604 = vst [vmem:[#allocation4 + $0x88] sm:$0xf] %v2476
      %2605 = vst [vmem:[#allocation4 + $0x8c] sm:$0xf] %v2477
      %2606 = vst [vmem:[#allocation4 + $0x90] sm:$0xf] %v2478
      %2607 = vst [vmem:[#allocation4 + $0x94] sm:$0xf] %v2479
      %2608 = vst [vmem:[#allocation4 + $0x98] sm:$0xf] %v2480
      %2609 = vst [vmem:[#allocation4 + $0x9c] sm:$0xf] %v2481
      %2610 = vst [vmem:[#allocation4 + $0xa0] sm:$0xf] %v2482
      %2611 = vst [vmem:[#allocation4 + $0xa4] sm:$0xf] %v2483
      %2612 = vst [vmem:[#allocation4 + $0xa8] sm:$0xf] %v2484
      %2613 = vst [vmem:[#allocation4 + $0xac] sm:$0xf] %v2485
      %2614 = vst [vmem:[#allocation4 + $0xb0] sm:$0xf] %v2486
      %2615 = vst [vmem:[#allocation4 + $0xb4] sm:$0xf] %v2487
      %2616 = vst [vmem:[#allocation4 + $0xb8] sm:$0xf] %v2488
      %2617 = vst [vmem:[#allocation4 + $0xbc] sm:$0xf] %v2489
      %2618 = vst [vmem:[#allocation4 + $0xc0] sm:$0xf] %v2490
      %2619 = vst [vmem:[#allocation4 + $0xc4] sm:$0xf] %v2491
      %2620 = vst [vmem:[#allocation4 + $0xc8] sm:$0xf] %v2492
      %2621 = vst [vmem:[#allocation4 + $0xcc] sm:$0xf] %v2493
      %2622 = vst [vmem:[#allocation4 + $0xd0] sm:$0xf] %v2494
      %2623 = vst [vmem:[#allocation4 + $0xd4] sm:$0xf] %v2495
      %2624 = vst [vmem:[#allocation4 + $0xd8] sm:$0xf] %v2496
      %2625 = vst [vmem:[#allocation4 + $0xdc] sm:$0xf] %v2497
      %2626 = vst [vmem:[#allocation4 + $0xe0] sm:$0xf] %v2498
      %2627 = vst [vmem:[#allocation4 + $0xe4] sm:$0xf] %v2499
      %2628 = vst [vmem:[#allocation4 + $0xe8] sm:$0xf] %v2500
      %2629 = vst [vmem:[#allocation4 + $0xec] sm:$0xf] %v2501
      %2630 = vst [vmem:[#allocation4 + $0xf0] sm:$0xf] %v2502
      %2631 = vst [vmem:[#allocation4 + $0xf4] sm:$0xf] %v2503
      %2632 = vst [vmem:[#allocation4 + $0xf8] sm:$0xf] %v2504
      %2633 = vst [vmem:[#allocation4 + $0xfc] sm:$0xf] %v2505
      loop: start=0, step=1, limit=4
      $region57: #{tpu_custom_call.1} parent=55 // loop_pre_header
        _
      $region58: #{tpu_custom_call.1} parent=55 // loop_header
        %s2635 = sphi 0, %s2639
        %p2636 = scmp.ge.s32.totalorder %s2635, 4
      $region59: #{tpu_custom_call.1} parent=55 // loop_header_branch
        %2638 = sbr.rel (%p2636) target = $region63
      $region60: #{tpu_custom_call.1} parent=55 // loop_body
        %s2640 = smul.u32 %s2635, 128
        %s2641 = sshra.s32 %s2640, 3
        %s2642 = sand.u32 %s2640, 7
        %s2643 = smul.addr %s2641, 4
        %s2644 = scalar_lea.vmem [#allocation2], %s2643
        %v2645 = vld [vmem:[%s2644] sm:$0xf]
        %v2646 = vld [vmem:[%s2644 + $0x4] sm:$0xf]
        %v2647 = vld [vmem:[%s2644 + $0x8] sm:$0xf]
        %v2648 = vld [vmem:[%s2644 + $0xc] sm:$0xf]
        %v2649 = vld [vmem:[%s2644 + $0x10] sm:$0xf]
        %v2650 = vld [vmem:[%s2644 + $0x14] sm:$0xf]
        %v2651 = vld [vmem:[%s2644 + $0x18] sm:$0xf]
        %v2652 = vld [vmem:[%s2644 + $0x1c] sm:$0xf]
        %v2653 = vld [vmem:[%s2644 + $0x20] sm:$0xf]
        %v2654 = vld [vmem:[%s2644 + $0x24] sm:$0xf]
        %v2655 = vld [vmem:[%s2644 + $0x28] sm:$0xf]
        %v2656 = vld [vmem:[%s2644 + $0x2c] sm:$0xf]
        %v2657 = vld [vmem:[%s2644 + $0x30] sm:$0xf]
        %v2658 = vld [vmem:[%s2644 + $0x34] sm:$0xf]
        %v2659 = vld [vmem:[%s2644 + $0x38] sm:$0xf]
        %v2660 = vld [vmem:[%s2644 + $0x3c] sm:$0xf]
        %s2661 = smul.addr %s2641, 4
        %s2662 = scalar_lea.vmem [#allocation3], %s2661
        %v2663 = vld [vmem:[%s2662] sm:$0xf]
        %v2664 = vld [vmem:[%s2662 + $0x4] sm:$0xf]
        %v2665 = vld [vmem:[%s2662 + $0x8] sm:$0xf]
        %v2666 = vld [vmem:[%s2662 + $0xc] sm:$0xf]
        %v2667 = vld [vmem:[%s2662 + $0x10] sm:$0xf]
        %v2668 = vld [vmem:[%s2662 + $0x14] sm:$0xf]
        %v2669 = vld [vmem:[%s2662 + $0x18] sm:$0xf]
        %v2670 = vld [vmem:[%s2662 + $0x1c] sm:$0xf]
        %v2671 = vld [vmem:[%s2662 + $0x20] sm:$0xf]
        %v2672 = vld [vmem:[%s2662 + $0x24] sm:$0xf]
        %v2673 = vld [vmem:[%s2662 + $0x28] sm:$0xf]
        %v2674 = vld [vmem:[%s2662 + $0x2c] sm:$0xf]
        %v2675 = vld [vmem:[%s2662 + $0x30] sm:$0xf]
        %v2676 = vld [vmem:[%s2662 + $0x34] sm:$0xf]
        %v2677 = vld [vmem:[%s2662 + $0x38] sm:$0xf]
        %v2678 = vld [vmem:[%s2662 + $0x3c] sm:$0xf]
        %s2679 = smul.addr %s2641, 4
        %s2680 = scalar_lea.vmem [#allocation4], %s2679
        %v2681 = vld [vmem:[%s2680] sm:$0xf]
        %v2682 = vld [vmem:[%s2680 + $0x4] sm:$0xf]
        %v2683 = vld [vmem:[%s2680 + $0x8] sm:$0xf]
        %v2684 = vld [vmem:[%s2680 + $0xc] sm:$0xf]
        %v2685 = vld [vmem:[%s2680 + $0x10] sm:$0xf]
        %v2686 = vld [vmem:[%s2680 + $0x14] sm:$0xf]
        %v2687 = vld [vmem:[%s2680 + $0x18] sm:$0xf]
        %v2688 = vld [vmem:[%s2680 + $0x1c] sm:$0xf]
        %v2689 = vld [vmem:[%s2680 + $0x20] sm:$0xf]
        %v2690 = vld [vmem:[%s2680 + $0x24] sm:$0xf]
        %v2691 = vld [vmem:[%s2680 + $0x28] sm:$0xf]
        %v2692 = vld [vmem:[%s2680 + $0x2c] sm:$0xf]
        %v2693 = vld [vmem:[%s2680 + $0x30] sm:$0xf]
        %v2694 = vld [vmem:[%s2680 + $0x34] sm:$0xf]
        %v2695 = vld [vmem:[%s2680 + $0x38] sm:$0xf]
        %v2696 = vld [vmem:[%s2680 + $0x3c] sm:$0xf]
        %v2697 = vld [vmem:[%s8] sm:$0xff]
        %v2698 = vld [vmem:[%s8 + $0x8] sm:$0xff]
        %v2699 = vld [vmem:[%s8 + $0x10] sm:$0xff]
        %v2700 = vld [vmem:[%s8 + $0x18] sm:$0xff]
        %v2701 = vld [vmem:[%s8 + $0x20] sm:$0xff]
        %v2702 = vld [vmem:[%s8 + $0x28] sm:$0xff]
        %v2703 = vld [vmem:[%s8 + $0x30] sm:$0xff]
        %v2704 = vld [vmem:[%s8 + $0x38] sm:$0xff]
        %v2713 = vunpack.c.l.b16 %v2645
        %v2714 = vunpack.c.l.b16 %v2646
        %v2715 = vunpack.c.l.b16 %v2647
        %v2716 = vunpack.c.l.b16 %v2648
        %v2717 = vunpack.c.l.b16 %v2649
        %v2718 = vunpack.c.l.b16 %v2650
        %v2719 = vunpack.c.l.b16 %v2651
        %v2720 = vunpack.c.l.b16 %v2652
        %v2721 = vpack.c.b16 %v2714, %v2713
        %v2722 = vpack.c.b16 %v2716, %v2715
        %v2723 = vpack.c.b16 %v2718, %v2717
        %v2724 = vpack.c.b16 %v2720, %v2719
        %v2733 = vunpack.c.l.b16 %v2663
        %v2734 = vunpack.c.l.b16 %v2664
        %v2735 = vunpack.c.l.b16 %v2665
        %v2736 = vunpack.c.l.b16 %v2666
        %v2737 = vunpack.c.l.b16 %v2667
        %v2738 = vunpack.c.l.b16 %v2668
        %v2739 = vunpack.c.l.b16 %v2669
        %v2740 = vunpack.c.l.b16 %v2670
        %v2741 = vpack.c.b16 %v2734, %v2733
        %v2742 = vpack.c.b16 %v2736, %v2735
        %v2743 = vpack.c.b16 %v2738, %v2737
        %v2744 = vpack.c.b16 %v2740, %v2739
        %vm2745 = vcmask 64512
        %v2747 = vsel %vm2745, %v2721, 0
        %v2750 = vsel %vm2745, %v2722, 0
        %v2753 = vsel %vm2745, %v2723, 0
        %v2756 = vsel %vm2745, %v2724, 0
        %v2759 = vsel %vm2745, %v2741, 0
        %v2762 = vsel %vm2745, %v2742, 0
        %v2765 = vsel %vm2745, %v2743, 0
        %v2768 = vsel %vm2745, %v2744, 0
        %2770 = vmatprep.subr.bf16.mxu0 0
        %2771 = vmatpush1.bf16.xpose.msra.mxu0 0
        %2772 = vmatprep.subr.bf16.mxu0 0
        %2773 = vmatpush1.bf16.xpose.msra.mxu0 0
        %2774 = vmatprep.subr.bf16.mxu0 0
        %2775 = vmatpush1.bf16.xpose.msra.mxu0 0
        %2776 = vmatprep.subr.bf16.mxu0 0
        %2777 = vmatpush1.bf16.xpose.msra.mxu0 0
        %2778 = vmatprep.subr.bf16.mxu0 0
        %2779 = vmatpush1.bf16.xpose.msra.mxu0 %v2768
        %2780 = vmatprep.subr.bf16.mxu0 0
        %2781 = vmatpush1.bf16.xpose.msra.mxu0 %v2765
        %2782 = vmatprep.subr.bf16.mxu0 0
        %2783 = vmatpush1.bf16.xpose.msra.mxu0 %v2762
        %2784 = vmatprep.subr.bf16.mxu0 0
        %2785 = vmatpush1.bf16.xpose.msra.mxu0 %v2759
        %2786 = vmatprep.subr.bf16.mxu0 0
        %2787 = vmatpush2.bf16.xpose.msra.mxu0 0
        %2788 = vmatprep.subr.bf16.mxu0 0
        %2789 = vmatpush2.bf16.xpose.msra.mxu0 0
        %2790 = vmatprep.subr.bf16.mxu0 0
        %2791 = vmatpush2.bf16.xpose.msra.mxu0 0
        %2792 = vmatprep.subr.bf16.mxu0 0
        %2793 = vmatpush2.bf16.xpose.msra.mxu0 0
        %2794 = vmatprep.subr.bf16.mxu0 0
        %2795 = vmatpush2.bf16.xpose.msra.mxu0 0
        %2796 = vmatprep.subr.bf16.mxu0 0
        %2797 = vmatpush2.bf16.xpose.msra.mxu0 0
        %2798 = vmatprep.subr.bf16.mxu0 0
        %2799 = vmatpush2.bf16.xpose.msra.mxu0 0
        %2800 = vmatprep.subr.bf16.mxu0 0
        %2801 = vmatpush2.bf16.xpose.msra.mxu0 0
        %2802 = vmatprep.mubr.bf16.mxu0 0
        %2803 = vmatmul.mubr.bf16.gmra.mxu0 %v2747
        %v2804 = vpop.f32.mrf.mxu0
        %v2805 = vadd.f32 %v2697, %v2804
        %v2806 = vpop.f32.mrf.mxu0
        %v2807 = vpop.f32.mrf.mxu0
        %v2808 = vadd.f32 %v2698, %v2807
        %v2809 = vpop.f32.mrf.mxu0
        %2810 = vmatprep.mubr.bf16.mxu0 0
        %2811 = vmatmul.mubr.bf16.gmra.mxu0 %v2750
        %v2812 = vpop.f32.mrf.mxu0
        %v2813 = vadd.f32 %v2699, %v2812
        %v2814 = vpop.f32.mrf.mxu0
        %v2815 = vpop.f32.mrf.mxu0
        %v2816 = vadd.f32 %v2700, %v2815
        %v2817 = vpop.f32.mrf.mxu0
        %2818 = vmatprep.mubr.bf16.mxu0 0
        %2819 = vmatmul.mubr.bf16.gmra.mxu0 %v2753
        %v2820 = vpop.f32.mrf.mxu0
        %v2821 = vadd.f32 %v2701, %v2820
        %v2822 = vpop.f32.mrf.mxu0
        %v2823 = vpop.f32.mrf.mxu0
        %v2824 = vadd.f32 %v2702, %v2823
        %v2825 = vpop.f32.mrf.mxu0
        %2826 = vmatprep.mubr.bf16.mxu0 0
        %2827 = vmatmul.mubr.bf16.gmra.mxu0 %v2756
        %v2828 = vpop.f32.mrf.mxu0
        %v2829 = vadd.f32 %v2703, %v2828
        %v2830 = vpop.f32.mrf.mxu0
        %v2831 = vpop.f32.mrf.mxu0
        %v2832 = vadd.f32 %v2704, %v2831
        %v2833 = vpop.f32.mrf.mxu0
        %2834 = vdwg.mxu0
        %v2843 = vunpack.c.l.b16 %v2653
        %v2844 = vunpack.c.l.b16 %v2654
        %v2845 = vunpack.c.l.b16 %v2655
        %v2846 = vunpack.c.l.b16 %v2656
        %v2847 = vunpack.c.l.b16 %v2657
        %v2848 = vunpack.c.l.b16 %v2658
        %v2849 = vunpack.c.l.b16 %v2659
        %v2850 = vunpack.c.l.b16 %v2660
        %v2851 = vpack.c.b16 %v2844, %v2843
        %v2852 = vpack.c.b16 %v2846, %v2845
        %v2853 = vpack.c.b16 %v2848, %v2847
        %v2854 = vpack.c.b16 %v2850, %v2849
        %v2863 = vunpack.c.l.b16 %v2671
        %v2864 = vunpack.c.l.b16 %v2672
        %v2865 = vunpack.c.l.b16 %v2673
        %v2866 = vunpack.c.l.b16 %v2674
        %v2867 = vunpack.c.l.b16 %v2675
        %v2868 = vunpack.c.l.b16 %v2676
        %v2869 = vunpack.c.l.b16 %v2677
        %v2870 = vunpack.c.l.b16 %v2678
        %v2871 = vpack.c.b16 %v2864, %v2863
        %v2872 = vpack.c.b16 %v2866, %v2865
        %v2873 = vpack.c.b16 %v2868, %v2867
        %v2874 = vpack.c.b16 %v2870, %v2869
        %v2876 = vsel %vm2745, %v2851, 0
        %v2879 = vsel %vm2745, %v2852, 0
        %v2882 = vsel %vm2745, %v2853, 0
        %v2885 = vsel %vm2745, %v2854, 0
        %v2888 = vsel %vm2745, %v2871, 0
        %v2891 = vsel %vm2745, %v2872, 0
        %v2894 = vsel %vm2745, %v2873, 0
        %v2897 = vsel %vm2745, %v2874, 0
        %2899 = vmatprep.subr.bf16.mxu0 0
        %2900 = vmatpush1.bf16.xpose.msra.mxu0 0
        %2901 = vmatprep.subr.bf16.mxu0 0
        %2902 = vmatpush1.bf16.xpose.msra.mxu0 0
        %2903 = vmatprep.subr.bf16.mxu0 0
        %2904 = vmatpush1.bf16.xpose.msra.mxu0 0
        %2905 = vmatprep.subr.bf16.mxu0 0
        %2906 = vmatpush1.bf16.xpose.msra.mxu0 0
        %2907 = vmatprep.subr.bf16.mxu0 0
        %2908 = vmatpush1.bf16.xpose.msra.mxu0 %v2897
        %2909 = vmatprep.subr.bf16.mxu0 0
        %2910 = vmatpush1.bf16.xpose.msra.mxu0 %v2894
        %2911 = vmatprep.subr.bf16.mxu0 0
        %2912 = vmatpush1.bf16.xpose.msra.mxu0 %v2891
        %2913 = vmatprep.subr.bf16.mxu0 0
        %2914 = vmatpush1.bf16.xpose.msra.mxu0 %v2888
        %2915 = vmatprep.subr.bf16.mxu0 0
        %2916 = vmatpush2.bf16.xpose.msra.mxu0 0
        %2917 = vmatprep.subr.bf16.mxu0 0
        %2918 = vmatpush2.bf16.xpose.msra.mxu0 0
        %2919 = vmatprep.subr.bf16.mxu0 0
        %2920 = vmatpush2.bf16.xpose.msra.mxu0 0
        %2921 = vmatprep.subr.bf16.mxu0 0
        %2922 = vmatpush2.bf16.xpose.msra.mxu0 0
        %2923 = vmatprep.subr.bf16.mxu0 0
        %2924 = vmatpush2.bf16.xpose.msra.mxu0 0
        %2925 = vmatprep.subr.bf16.mxu0 0
        %2926 = vmatpush2.bf16.xpose.msra.mxu0 0
        %2927 = vmatprep.subr.bf16.mxu0 0
        %2928 = vmatpush2.bf16.xpose.msra.mxu0 0
        %2929 = vmatprep.subr.bf16.mxu0 0
        %2930 = vmatpush2.bf16.xpose.msra.mxu0 0
        %2931 = vmatprep.mubr.bf16.mxu0 0
        %2932 = vmatmul.mubr.bf16.gmra.mxu0 %v2876
        %v2933 = vpop.f32.mrf.mxu0
        %v2934 = vadd.f32 %v2697, %v2933
        %v2935 = vpop.f32.mrf.mxu0
        %v2936 = vpop.f32.mrf.mxu0
        %v2937 = vadd.f32 %v2698, %v2936
        %v2938 = vpop.f32.mrf.mxu0
        %2939 = vmatprep.mubr.bf16.mxu0 0
        %2940 = vmatmul.mubr.bf16.gmra.mxu0 %v2879
        %v2941 = vpop.f32.mrf.mxu0
        %v2942 = vadd.f32 %v2699, %v2941
        %v2943 = vpop.f32.mrf.mxu0
        %v2944 = vpop.f32.mrf.mxu0
        %v2945 = vadd.f32 %v2700, %v2944
        %v2946 = vpop.f32.mrf.mxu0
        %2947 = vmatprep.mubr.bf16.mxu0 0
        %2948 = vmatmul.mubr.bf16.gmra.mxu0 %v2882
        %v2949 = vpop.f32.mrf.mxu0
        %v2950 = vadd.f32 %v2701, %v2949
        %v2951 = vpop.f32.mrf.mxu0
        %v2952 = vpop.f32.mrf.mxu0
        %v2953 = vadd.f32 %v2702, %v2952
        %v2954 = vpop.f32.mrf.mxu0
        %2955 = vmatprep.mubr.bf16.mxu0 0
        %2956 = vmatmul.mubr.bf16.gmra.mxu0 %v2885
        %v2957 = vpop.f32.mrf.mxu0
        %v2958 = vadd.f32 %v2703, %v2957
        %v2959 = vpop.f32.mrf.mxu0
        %v2960 = vpop.f32.mrf.mxu0
        %v2961 = vadd.f32 %v2704, %v2960
        %v2962 = vpop.f32.mrf.mxu0
        %2963 = vdwg.mxu0
        %vm2964 = vcmask 523264
        %v2965 = vsel %vm2964, %v2805, -inf
        %2966 = vmax.xlane.f32.xlu0 %v2965
        %v2967 = vpop.xlane.xlu0 %2966
        %v2968 = vsel %vm2964, %v2808, -inf
        %2969 = vmax.xlane.f32.xlu0 %v2968
        %v2970 = vpop.xlane.xlu0 %2969
        %v2971 = vsel %vm2964, %v2813, -inf
        %2972 = vmax.xlane.f32.xlu0 %v2971
        %v2973 = vpop.xlane.xlu0 %2972
        %v2974 = vsel %vm2964, %v2816, -inf
        %2975 = vmax.xlane.f32.xlu0 %v2974
        %v2976 = vpop.xlane.xlu0 %2975
        %v2977 = vsel %vm2964, %v2821, -inf
        %2978 = vmax.xlane.f32.xlu0 %v2977
        %v2979 = vpop.xlane.xlu0 %2978
        %v2980 = vsel %vm2964, %v2824, -inf
        %2981 = vmax.xlane.f32.xlu0 %v2980
        %v2982 = vpop.xlane.xlu0 %2981
        %v2983 = vsel %vm2964, %v2829, -inf
        %2984 = vmax.xlane.f32.xlu0 %v2983
        %v2985 = vpop.xlane.xlu0 %2984
        %v2986 = vsel %vm2964, %v2832, -inf
        %2987 = vmax.xlane.f32.xlu0 %v2986
        %v2988 = vpop.xlane.xlu0 %2987
        %v2989 = vsel %vm2964, %v2934, -inf
        %2990 = vmax.xlane.f32.xlu0 %v2989
        %v2991 = vpop.xlane.xlu0 %2990
        %v2992 = vsel %vm2964, %v2937, -inf
        %2993 = vmax.xlane.f32.xlu0 %v2992
        %v2994 = vpop.xlane.xlu0 %2993
        %v2995 = vsel %vm2964, %v2942, -inf
        %2996 = vmax.xlane.f32.xlu0 %v2995
        %v2997 = vpop.xlane.xlu0 %2996
        %v2998 = vsel %vm2964, %v2945, -inf
        %2999 = vmax.xlane.f32.xlu0 %v2998
        %v3000 = vpop.xlane.xlu0 %2999
        %v3001 = vsel %vm2964, %v2950, -inf
        %3002 = vmax.xlane.f32.xlu0 %v3001
        %v3003 = vpop.xlane.xlu0 %3002
        %v3004 = vsel %vm2964, %v2953, -inf
        %3005 = vmax.xlane.f32.xlu0 %v3004
        %v3006 = vpop.xlane.xlu0 %3005
        %v3007 = vsel %vm2964, %v2958, -inf
        %3008 = vmax.xlane.f32.xlu0 %v3007
        %v3009 = vpop.xlane.xlu0 %3008
        %v3010 = vsel %vm2964, %v2961, -inf
        %3011 = vmax.xlane.f32.xlu0 %v3010
        %v3012 = vpop.xlane.xlu0 %3011
        %v3013 = vsub.f32 %v2805, %v2967
        %v3014 = vsub.f32 %v2808, %v2970
        %v3015 = vsub.f32 %v2813, %v2973
        %v3016 = vsub.f32 %v2816, %v2976
        %v3017 = vsub.f32 %v2821, %v2979
        %v3018 = vsub.f32 %v2824, %v2982
        %v3019 = vsub.f32 %v2829, %v2985
        %v3020 = vsub.f32 %v2832, %v2988
        %v3021 = vsub.f32 %v2934, %v2991
        %v3022 = vsub.f32 %v2937, %v2994
        %v3023 = vsub.f32 %v2942, %v2997
        %v3024 = vsub.f32 %v2945, %v3000
        %v3025 = vsub.f32 %v2950, %v3003
        %v3026 = vsub.f32 %v2953, %v3006
        %v3027 = vsub.f32 %v2958, %v3009
        %v3028 = vsub.f32 %v2961, %v3012
        %v3029 = vmul.f32 %v3013, 1.442695
        %v3030 = vpow.pop %v3029
        %v3031 = vmul.f32 %v3014, 1.442695
        %v3032 = vpow.pop %v3031
        %v3033 = vmul.f32 %v3015, 1.442695
        %v3034 = vpow.pop %v3033
        %v3035 = vmul.f32 %v3016, 1.442695
        %v3036 = vpow.pop %v3035
        %v3037 = vmul.f32 %v3017, 1.442695
        %v3038 = vpow.pop %v3037
        %v3039 = vmul.f32 %v3018, 1.442695
        %v3040 = vpow.pop %v3039
        %v3041 = vmul.f32 %v3019, 1.442695
        %v3042 = vpow.pop %v3041
        %v3043 = vmul.f32 %v3020, 1.442695
        %v3044 = vpow.pop %v3043
        %v3045 = vmul.f32 %v3021, 1.442695
        %v3046 = vpow.pop %v3045
        %v3047 = vmul.f32 %v3022, 1.442695
        %v3048 = vpow.pop %v3047
        %v3049 = vmul.f32 %v3023, 1.442695
        %v3050 = vpow.pop %v3049
        %v3051 = vmul.f32 %v3024, 1.442695
        %v3052 = vpow.pop %v3051
        %v3053 = vmul.f32 %v3025, 1.442695
        %v3054 = vpow.pop %v3053
        %v3055 = vmul.f32 %v3026, 1.442695
        %v3056 = vpow.pop %v3055
        %v3057 = vmul.f32 %v3027, 1.442695
        %v3058 = vpow.pop %v3057
        %v3059 = vmul.f32 %v3028, 1.442695
        %v3060 = vpow.pop %v3059
        %v3061 = vsel %vm2964, %v3030, 0.0
        %3062 = vadd.xlane.f32.xlu0 %v3061
        %v3063 = vpop.xlane.xlu0 %3062
        %v3064 = vsel %vm2964, %v3032, 0.0
        %3065 = vadd.xlane.f32.xlu0 %v3064
        %v3066 = vpop.xlane.xlu0 %3065
        %v3067 = vsel %vm2964, %v3034, 0.0
        %3068 = vadd.xlane.f32.xlu0 %v3067
        %v3069 = vpop.xlane.xlu0 %3068
        %v3070 = vsel %vm2964, %v3036, 0.0
        %3071 = vadd.xlane.f32.xlu0 %v3070
        %v3072 = vpop.xlane.xlu0 %3071
        %v3073 = vsel %vm2964, %v3038, 0.0
        %3074 = vadd.xlane.f32.xlu0 %v3073
        %v3075 = vpop.xlane.xlu0 %3074
        %v3076 = vsel %vm2964, %v3040, 0.0
        %3077 = vadd.xlane.f32.xlu0 %v3076
        %v3078 = vpop.xlane.xlu0 %3077
        %v3079 = vsel %vm2964, %v3042, 0.0
        %3080 = vadd.xlane.f32.xlu0 %v3079
        %v3081 = vpop.xlane.xlu0 %3080
        %v3082 = vsel %vm2964, %v3044, 0.0
        %3083 = vadd.xlane.f32.xlu0 %v3082
        %v3084 = vpop.xlane.xlu0 %3083
        %v3085 = vsel %vm2964, %v3046, 0.0
        %3086 = vadd.xlane.f32.xlu0 %v3085
        %v3087 = vpop.xlane.xlu0 %3086
        %v3088 = vsel %vm2964, %v3048, 0.0
        %3089 = vadd.xlane.f32.xlu0 %v3088
        %v3090 = vpop.xlane.xlu0 %3089
        %v3091 = vsel %vm2964, %v3050, 0.0
        %3092 = vadd.xlane.f32.xlu0 %v3091
        %v3093 = vpop.xlane.xlu0 %3092
        %v3094 = vsel %vm2964, %v3052, 0.0
        %3095 = vadd.xlane.f32.xlu0 %v3094
        %v3096 = vpop.xlane.xlu0 %3095
        %v3097 = vsel %vm2964, %v3054, 0.0
        %3098 = vadd.xlane.f32.xlu0 %v3097
        %v3099 = vpop.xlane.xlu0 %3098
        %v3100 = vsel %vm2964, %v3056, 0.0
        %3101 = vadd.xlane.f32.xlu0 %v3100
        %v3102 = vpop.xlane.xlu0 %3101
        %v3103 = vsel %vm2964, %v3058, 0.0
        %3104 = vadd.xlane.f32.xlu0 %v3103
        %v3105 = vpop.xlane.xlu0 %3104
        %v3106 = vsel %vm2964, %v3060, 0.0
        %3107 = vadd.xlane.f32.xlu0 %v3106
        %v3108 = vpop.xlane.xlu0 %3107
        %v3109 = vrcp.pop %v3063
        %v3110 = vrcp.pop %v3066
        %v3111 = vrcp.pop %v3069
        %v3112 = vrcp.pop %v3072
        %v3113 = vrcp.pop %v3075
        %v3114 = vrcp.pop %v3078
        %v3115 = vrcp.pop %v3081
        %v3116 = vrcp.pop %v3084
        %v3117 = vrcp.pop %v3087
        %v3118 = vrcp.pop %v3090
        %v3119 = vrcp.pop %v3093
        %v3120 = vrcp.pop %v3096
        %v3121 = vrcp.pop %v3099
        %v3122 = vrcp.pop %v3102
        %v3123 = vrcp.pop %v3105
        %v3124 = vrcp.pop %v3108
        %v3125 = vmul.f32 %v3030, %v3109
        %v3126 = vmul.f32 %v3032, %v3110
        %v3127 = vmul.f32 %v3034, %v3111
        %v3128 = vmul.f32 %v3036, %v3112
        %v3129 = vmul.f32 %v3038, %v3113
        %v3130 = vmul.f32 %v3040, %v3114
        %v3131 = vmul.f32 %v3042, %v3115
        %v3132 = vmul.f32 %v3044, %v3116
        %v3133 = vmul.f32 %v3046, %v3117
        %v3134 = vmul.f32 %v3048, %v3118
        %v3135 = vmul.f32 %v3050, %v3119
        %v3136 = vmul.f32 %v3052, %v3120
        %v3137 = vmul.f32 %v3054, %v3121
        %v3138 = vmul.f32 %v3056, %v3122
        %v3139 = vmul.f32 %v3058, %v3123
        %v3140 = vmul.f32 %v3060, %v3124
        %v3141 = vpack.c.bf16 %v3126, %v3125
        %v3142 = vpack.c.bf16 %v3128, %v3127
        %v3143 = vpack.c.bf16 %v3130, %v3129
        %v3144 = vpack.c.bf16 %v3132, %v3131
        %v3145 = vpack.c.bf16 %v3134, %v3133
        %v3146 = vpack.c.bf16 %v3136, %v3135
        %v3147 = vpack.c.bf16 %v3138, %v3137
        %v3148 = vpack.c.bf16 %v3140, %v3139
        %s3149 = scalar_lea.vmem %s8, 64
        %v3150 = vld [vmem:[%s3149] sm:$0xff]
        %v3151 = vld [vmem:[%s3149 + $0x8] sm:$0xff]
        %v3152 = vld [vmem:[%s3149 + $0x10] sm:$0xff]
        %v3153 = vld [vmem:[%s3149 + $0x18] sm:$0xff]
        %v3154 = vld [vmem:[%s3149 + $0x20] sm:$0xff]
        %v3155 = vld [vmem:[%s3149 + $0x28] sm:$0xff]
        %v3156 = vld [vmem:[%s3149 + $0x30] sm:$0xff]
        %v3157 = vld [vmem:[%s3149 + $0x38] sm:$0xff]
        %3158 = vrot.lane.b32.xlu0 %v2721, 120
        %v3159 = vpop.permute.xlu0 %3158
        %3160 = vrot.lane.b32.xlu0 %v2722, 120
        %v3161 = vpop.permute.xlu0 %3160
        %3162 = vrot.lane.b32.xlu0 %v2723, 120
        %v3163 = vpop.permute.xlu0 %3162
        %3164 = vrot.lane.b32.xlu0 %v2724, 120
        %v3165 = vpop.permute.xlu0 %3164
        %3166 = vrot.lane.b32.xlu0 %v2741, 120
        %v3167 = vpop.permute.xlu0 %3166
        %3168 = vrot.lane.b32.xlu0 %v2742, 120
        %v3169 = vpop.permute.xlu0 %3168
        %3170 = vrot.lane.b32.xlu0 %v2743, 120
        %v3171 = vpop.permute.xlu0 %3170
        %3172 = vrot.lane.b32.xlu0 %v2744, 120
        %v3173 = vpop.permute.xlu0 %3172
        %v3175 = vsel %vm2745, %v3159, 0
        %v3178 = vsel %vm2745, %v3161, 0
        %v3181 = vsel %vm2745, %v3163, 0
        %v3184 = vsel %vm2745, %v3165, 0
        %v3187 = vsel %vm2745, %v3167, 0
        %v3190 = vsel %vm2745, %v3169, 0
        %v3193 = vsel %vm2745, %v3171, 0
        %v3196 = vsel %vm2745, %v3173, 0
        %3198 = vmatprep.subr.bf16.mxu0 0
        %3199 = vmatpush1.bf16.xpose.msra.mxu0 0
        %3200 = vmatprep.subr.bf16.mxu0 0
        %3201 = vmatpush1.bf16.xpose.msra.mxu0 0
        %3202 = vmatprep.subr.bf16.mxu0 0
        %3203 = vmatpush1.bf16.xpose.msra.mxu0 0
        %3204 = vmatprep.subr.bf16.mxu0 0
        %3205 = vmatpush1.bf16.xpose.msra.mxu0 0
        %3206 = vmatprep.subr.bf16.mxu0 0
        %3207 = vmatpush1.bf16.xpose.msra.mxu0 %v3196
        %3208 = vmatprep.subr.bf16.mxu0 0
        %3209 = vmatpush1.bf16.xpose.msra.mxu0 %v3193
        %3210 = vmatprep.subr.bf16.mxu0 0
        %3211 = vmatpush1.bf16.xpose.msra.mxu0 %v3190
        %3212 = vmatprep.subr.bf16.mxu0 0
        %3213 = vmatpush1.bf16.xpose.msra.mxu0 %v3187
        %3214 = vmatprep.subr.bf16.mxu0 0
        %3215 = vmatpush2.bf16.xpose.msra.mxu0 0
        %3216 = vmatprep.subr.bf16.mxu0 0
        %3217 = vmatpush2.bf16.xpose.msra.mxu0 0
        %3218 = vmatprep.subr.bf16.mxu0 0
        %3219 = vmatpush2.bf16.xpose.msra.mxu0 0
        %3220 = vmatprep.subr.bf16.mxu0 0
        %3221 = vmatpush2.bf16.xpose.msra.mxu0 0
        %3222 = vmatprep.subr.bf16.mxu0 0
        %3223 = vmatpush2.bf16.xpose.msra.mxu0 0
        %3224 = vmatprep.subr.bf16.mxu0 0
        %3225 = vmatpush2.bf16.xpose.msra.mxu0 0
        %3226 = vmatprep.subr.bf16.mxu0 0
        %3227 = vmatpush2.bf16.xpose.msra.mxu0 0
        %3228 = vmatprep.subr.bf16.mxu0 0
        %3229 = vmatpush2.bf16.xpose.msra.mxu0 0
        %3230 = vmatprep.mubr.bf16.mxu0 0
        %3231 = vmatmul.mubr.bf16.gmra.mxu0 %v3175
        %v3232 = vpop.f32.mrf.mxu0
        %v3233 = vadd.f32 %v3150, %v3232
        %v3234 = vpop.f32.mrf.mxu0
        %v3235 = vpop.f32.mrf.mxu0
        %v3236 = vadd.f32 %v3151, %v3235
        %v3237 = vpop.f32.mrf.mxu0
        %3238 = vmatprep.mubr.bf16.mxu0 0
        %3239 = vmatmul.mubr.bf16.gmra.mxu0 %v3178
        %v3240 = vpop.f32.mrf.mxu0
        %v3241 = vadd.f32 %v3152, %v3240
        %v3242 = vpop.f32.mrf.mxu0
        %v3243 = vpop.f32.mrf.mxu0
        %v3244 = vadd.f32 %v3153, %v3243
        %v3245 = vpop.f32.mrf.mxu0
        %3246 = vmatprep.mubr.bf16.mxu0 0
        %3247 = vmatmul.mubr.bf16.gmra.mxu0 %v3181
        %v3248 = vpop.f32.mrf.mxu0
        %v3249 = vadd.f32 %v3154, %v3248
        %v3250 = vpop.f32.mrf.mxu0
        %v3251 = vpop.f32.mrf.mxu0
        %v3252 = vadd.f32 %v3155, %v3251
        %v3253 = vpop.f32.mrf.mxu0
        %3254 = vmatprep.mubr.bf16.mxu0 0
        %3255 = vmatmul.mubr.bf16.gmra.mxu0 %v3184
        %v3256 = vpop.f32.mrf.mxu0
        %v3257 = vadd.f32 %v3156, %v3256
        %v3258 = vpop.f32.mrf.mxu0
        %v3259 = vpop.f32.mrf.mxu0
        %v3260 = vadd.f32 %v3157, %v3259
        %v3261 = vpop.f32.mrf.mxu0
        %3262 = vdwg.mxu0
        %3263 = vrot.lane.b32.xlu0 %v2851, 120
        %v3264 = vpop.permute.xlu0 %3263
        %3265 = vrot.lane.b32.xlu0 %v2852, 120
        %v3266 = vpop.permute.xlu0 %3265
        %3267 = vrot.lane.b32.xlu0 %v2853, 120
        %v3268 = vpop.permute.xlu0 %3267
        %3269 = vrot.lane.b32.xlu0 %v2854, 120
        %v3270 = vpop.permute.xlu0 %3269
        %3271 = vrot.lane.b32.xlu0 %v2871, 120
        %v3272 = vpop.permute.xlu0 %3271
        %3273 = vrot.lane.b32.xlu0 %v2872, 120
        %v3274 = vpop.permute.xlu0 %3273
        %3275 = vrot.lane.b32.xlu0 %v2873, 120
        %v3276 = vpop.permute.xlu0 %3275
        %3277 = vrot.lane.b32.xlu0 %v2874, 120
        %v3278 = vpop.permute.xlu0 %3277
        %v3280 = vsel %vm2745, %v3264, 0
        %v3283 = vsel %vm2745, %v3266, 0
        %v3286 = vsel %vm2745, %v3268, 0
        %v3289 = vsel %vm2745, %v3270, 0
        %v3292 = vsel %vm2745, %v3272, 0
        %v3295 = vsel %vm2745, %v3274, 0
        %v3298 = vsel %vm2745, %v3276, 0
        %v3301 = vsel %vm2745, %v3278, 0
        %3303 = vmatprep.subr.bf16.mxu0 0
        %3304 = vmatpush1.bf16.xpose.msra.mxu0 0
        %3305 = vmatprep.subr.bf16.mxu0 0
        %3306 = vmatpush1.bf16.xpose.msra.mxu0 0
        %3307 = vmatprep.subr.bf16.mxu0 0
        %3308 = vmatpush1.bf16.xpose.msra.mxu0 0
        %3309 = vmatprep.subr.bf16.mxu0 0
        %3310 = vmatpush1.bf16.xpose.msra.mxu0 0
        %3311 = vmatprep.subr.bf16.mxu0 0
        %3312 = vmatpush1.bf16.xpose.msra.mxu0 %v3301
        %3313 = vmatprep.subr.bf16.mxu0 0
        %3314 = vmatpush1.bf16.xpose.msra.mxu0 %v3298
        %3315 = vmatprep.subr.bf16.mxu0 0
        %3316 = vmatpush1.bf16.xpose.msra.mxu0 %v3295
        %3317 = vmatprep.subr.bf16.mxu0 0
        %3318 = vmatpush1.bf16.xpose.msra.mxu0 %v3292
        %3319 = vmatprep.subr.bf16.mxu0 0
        %3320 = vmatpush2.bf16.xpose.msra.mxu0 0
        %3321 = vmatprep.subr.bf16.mxu0 0
        %3322 = vmatpush2.bf16.xpose.msra.mxu0 0
        %3323 = vmatprep.subr.bf16.mxu0 0
        %3324 = vmatpush2.bf16.xpose.msra.mxu0 0
        %3325 = vmatprep.subr.bf16.mxu0 0
        %3326 = vmatpush2.bf16.xpose.msra.mxu0 0
        %3327 = vmatprep.subr.bf16.mxu0 0
        %3328 = vmatpush2.bf16.xpose.msra.mxu0 0
        %3329 = vmatprep.subr.bf16.mxu0 0
        %3330 = vmatpush2.bf16.xpose.msra.mxu0 0
        %3331 = vmatprep.subr.bf16.mxu0 0
        %3332 = vmatpush2.bf16.xpose.msra.mxu0 0
        %3333 = vmatprep.subr.bf16.mxu0 0
        %3334 = vmatpush2.bf16.xpose.msra.mxu0 0
        %3335 = vmatprep.mubr.bf16.mxu0 0
        %3336 = vmatmul.mubr.bf16.gmra.mxu0 %v3280
        %v3337 = vpop.f32.mrf.mxu0
        %v3338 = vadd.f32 %v3150, %v3337
        %v3339 = vpop.f32.mrf.mxu0
        %v3340 = vpop.f32.mrf.mxu0
        %v3341 = vadd.f32 %v3151, %v3340
        %v3342 = vpop.f32.mrf.mxu0
        %3343 = vmatprep.mubr.bf16.mxu0 0
        %3344 = vmatmul.mubr.bf16.gmra.mxu0 %v3283
        %v3345 = vpop.f32.mrf.mxu0
        %v3346 = vadd.f32 %v3152, %v3345
        %v3347 = vpop.f32.mrf.mxu0
        %v3348 = vpop.f32.mrf.mxu0
        %v3349 = vadd.f32 %v3153, %v3348
        %v3350 = vpop.f32.mrf.mxu0
        %3351 = vmatprep.mubr.bf16.mxu0 0
        %3352 = vmatmul.mubr.bf16.gmra.mxu0 %v3286
        %v3353 = vpop.f32.mrf.mxu0
        %v3354 = vadd.f32 %v3154, %v3353
        %v3355 = vpop.f32.mrf.mxu0
        %v3356 = vpop.f32.mrf.mxu0
        %v3357 = vadd.f32 %v3155, %v3356
        %v3358 = vpop.f32.mrf.mxu0
        %3359 = vmatprep.mubr.bf16.mxu0 0
        %3360 = vmatmul.mubr.bf16.gmra.mxu0 %v3289
        %v3361 = vpop.f32.mrf.mxu0
        %v3362 = vadd.f32 %v3156, %v3361
        %v3363 = vpop.f32.mrf.mxu0
        %v3364 = vpop.f32.mrf.mxu0
        %v3365 = vadd.f32 %v3157, %v3364
        %v3366 = vpop.f32.mrf.mxu0
        %3367 = vdwg.mxu0
        %v3368 = vsel %vm2964, %v3233, -inf
        %3369 = vmax.xlane.f32.xlu0 %v3368
        %v3370 = vpop.xlane.xlu0 %3369
        %v3371 = vsel %vm2964, %v3236, -inf
        %3372 = vmax.xlane.f32.xlu0 %v3371
        %v3373 = vpop.xlane.xlu0 %3372
        %v3374 = vsel %vm2964, %v3241, -inf
        %3375 = vmax.xlane.f32.xlu0 %v3374
        %v3376 = vpop.xlane.xlu0 %3375
        %v3377 = vsel %vm2964, %v3244, -inf
        %3378 = vmax.xlane.f32.xlu0 %v3377
        %v3379 = vpop.xlane.xlu0 %3378
        %v3380 = vsel %vm2964, %v3249, -inf
        %3381 = vmax.xlane.f32.xlu0 %v3380
        %v3382 = vpop.xlane.xlu0 %3381
        %v3383 = vsel %vm2964, %v3252, -inf
        %3384 = vmax.xlane.f32.xlu0 %v3383
        %v3385 = vpop.xlane.xlu0 %3384
        %v3386 = vsel %vm2964, %v3257, -inf
        %3387 = vmax.xlane.f32.xlu0 %v3386
        %v3388 = vpop.xlane.xlu0 %3387
        %v3389 = vsel %vm2964, %v3260, -inf
        %3390 = vmax.xlane.f32.xlu0 %v3389
        %v3391 = vpop.xlane.xlu0 %3390
        %v3392 = vsel %vm2964, %v3338, -inf
        %3393 = vmax.xlane.f32.xlu0 %v3392
        %v3394 = vpop.xlane.xlu0 %3393
        %v3395 = vsel %vm2964, %v3341, -inf
        %3396 = vmax.xlane.f32.xlu0 %v3395
        %v3397 = vpop.xlane.xlu0 %3396
        %v3398 = vsel %vm2964, %v3346, -inf
        %3399 = vmax.xlane.f32.xlu0 %v3398
        %v3400 = vpop.xlane.xlu0 %3399
        %v3401 = vsel %vm2964, %v3349, -inf
        %3402 = vmax.xlane.f32.xlu0 %v3401
        %v3403 = vpop.xlane.xlu0 %3402
        %v3404 = vsel %vm2964, %v3354, -inf
        %3405 = vmax.xlane.f32.xlu0 %v3404
        %v3406 = vpop.xlane.xlu0 %3405
        %v3407 = vsel %vm2964, %v3357, -inf
        %3408 = vmax.xlane.f32.xlu0 %v3407
        %v3409 = vpop.xlane.xlu0 %3408
        %v3410 = vsel %vm2964, %v3362, -inf
        %3411 = vmax.xlane.f32.xlu0 %v3410
        %v3412 = vpop.xlane.xlu0 %3411
        %v3413 = vsel %vm2964, %v3365, -inf
        %3414 = vmax.xlane.f32.xlu0 %v3413
        %v3415 = vpop.xlane.xlu0 %3414
        %v3416 = vsub.f32 %v3233, %v3370
        %v3417 = vsub.f32 %v3236, %v3373
        %v3418 = vsub.f32 %v3241, %v3376
        %v3419 = vsub.f32 %v3244, %v3379
        %v3420 = vsub.f32 %v3249, %v3382
        %v3421 = vsub.f32 %v3252, %v3385
        %v3422 = vsub.f32 %v3257, %v3388
        %v3423 = vsub.f32 %v3260, %v3391
        %v3424 = vsub.f32 %v3338, %v3394
        %v3425 = vsub.f32 %v3341, %v3397
        %v3426 = vsub.f32 %v3346, %v3400
        %v3427 = vsub.f32 %v3349, %v3403
        %v3428 = vsub.f32 %v3354, %v3406
        %v3429 = vsub.f32 %v3357, %v3409
        %v3430 = vsub.f32 %v3362, %v3412
        %v3431 = vsub.f32 %v3365, %v3415
        %v3432 = vmul.f32 %v3416, 1.442695
        %v3433 = vpow.pop %v3432
        %v3434 = vmul.f32 %v3417, 1.442695
        %v3435 = vpow.pop %v3434
        %v3436 = vmul.f32 %v3418, 1.442695
        %v3437 = vpow.pop %v3436
        %v3438 = vmul.f32 %v3419, 1.442695
        %v3439 = vpow.pop %v3438
        %v3440 = vmul.f32 %v3420, 1.442695
        %v3441 = vpow.pop %v3440
        %v3442 = vmul.f32 %v3421, 1.442695
        %v3443 = vpow.pop %v3442
        %v3444 = vmul.f32 %v3422, 1.442695
        %v3445 = vpow.pop %v3444
        %v3446 = vmul.f32 %v3423, 1.442695
        %v3447 = vpow.pop %v3446
        %v3448 = vmul.f32 %v3424, 1.442695
        %v3449 = vpow.pop %v3448
        %v3450 = vmul.f32 %v3425, 1.442695
        %v3451 = vpow.pop %v3450
        %v3452 = vmul.f32 %v3426, 1.442695
        %v3453 = vpow.pop %v3452
        %v3454 = vmul.f32 %v3427, 1.442695
        %v3455 = vpow.pop %v3454
        %v3456 = vmul.f32 %v3428, 1.442695
        %v3457 = vpow.pop %v3456
        %v3458 = vmul.f32 %v3429, 1.442695
        %v3459 = vpow.pop %v3458
        %v3460 = vmul.f32 %v3430, 1.442695
        %v3461 = vpow.pop %v3460
        %v3462 = vmul.f32 %v3431, 1.442695
        %v3463 = vpow.pop %v3462
        %v3464 = vsel %vm2964, %v3433, 0.0
        %3465 = vadd.xlane.f32.xlu0 %v3464
        %v3466 = vpop.xlane.xlu0 %3465
        %v3467 = vsel %vm2964, %v3435, 0.0
        %3468 = vadd.xlane.f32.xlu0 %v3467
        %v3469 = vpop.xlane.xlu0 %3468
        %v3470 = vsel %vm2964, %v3437, 0.0
        %3471 = vadd.xlane.f32.xlu0 %v3470
        %v3472 = vpop.xlane.xlu0 %3471
        %v3473 = vsel %vm2964, %v3439, 0.0
        %3474 = vadd.xlane.f32.xlu0 %v3473
        %v3475 = vpop.xlane.xlu0 %3474
        %v3476 = vsel %vm2964, %v3441, 0.0
        %3477 = vadd.xlane.f32.xlu0 %v3476
        %v3478 = vpop.xlane.xlu0 %3477
        %v3479 = vsel %vm2964, %v3443, 0.0
        %3480 = vadd.xlane.f32.xlu0 %v3479
        %v3481 = vpop.xlane.xlu0 %3480
        %v3482 = vsel %vm2964, %v3445, 0.0
        %3483 = vadd.xlane.f32.xlu0 %v3482
        %v3484 = vpop.xlane.xlu0 %3483
        %v3485 = vsel %vm2964, %v3447, 0.0
        %3486 = vadd.xlane.f32.xlu0 %v3485
        %v3487 = vpop.xlane.xlu0 %3486
        %v3488 = vsel %vm2964, %v3449, 0.0
        %3489 = vadd.xlane.f32.xlu0 %v3488
        %v3490 = vpop.xlane.xlu0 %3489
        %v3491 = vsel %vm2964, %v3451, 0.0
        %3492 = vadd.xlane.f32.xlu0 %v3491
        %v3493 = vpop.xlane.xlu0 %3492
        %v3494 = vsel %vm2964, %v3453, 0.0
        %3495 = vadd.xlane.f32.xlu0 %v3494
        %v3496 = vpop.xlane.xlu0 %3495
        %v3497 = vsel %vm2964, %v3455, 0.0
        %3498 = vadd.xlane.f32.xlu0 %v3497
        %v3499 = vpop.xlane.xlu0 %3498
        %v3500 = vsel %vm2964, %v3457, 0.0
        %3501 = vadd.xlane.f32.xlu0 %v3500
        %v3502 = vpop.xlane.xlu0 %3501
        %v3503 = vsel %vm2964, %v3459, 0.0
        %3504 = vadd.xlane.f32.xlu0 %v3503
        %v3505 = vpop.xlane.xlu0 %3504
        %v3506 = vsel %vm2964, %v3461, 0.0
        %3507 = vadd.xlane.f32.xlu0 %v3506
        %v3508 = vpop.xlane.xlu0 %3507
        %v3509 = vsel %vm2964, %v3463, 0.0
        %3510 = vadd.xlane.f32.xlu0 %v3509
        %v3511 = vpop.xlane.xlu0 %3510
        %v3512 = vrcp.pop %v3466
        %v3513 = vrcp.pop %v3469
        %v3514 = vrcp.pop %v3472
        %v3515 = vrcp.pop %v3475
        %v3516 = vrcp.pop %v3478
        %v3517 = vrcp.pop %v3481
        %v3518 = vrcp.pop %v3484
        %v3519 = vrcp.pop %v3487
        %v3520 = vrcp.pop %v3490
        %v3521 = vrcp.pop %v3493
        %v3522 = vrcp.pop %v3496
        %v3523 = vrcp.pop %v3499
        %v3524 = vrcp.pop %v3502
        %v3525 = vrcp.pop %v3505
        %v3526 = vrcp.pop %v3508
        %v3527 = vrcp.pop %v3511
        %v3528 = vmul.f32 %v3433, %v3512
        %v3529 = vmul.f32 %v3435, %v3513
        %v3530 = vmul.f32 %v3437, %v3514
        %v3531 = vmul.f32 %v3439, %v3515
        %v3532 = vmul.f32 %v3441, %v3516
        %v3533 = vmul.f32 %v3443, %v3517
        %v3534 = vmul.f32 %v3445, %v3518
        %v3535 = vmul.f32 %v3447, %v3519
        %v3536 = vmul.f32 %v3449, %v3520
        %v3537 = vmul.f32 %v3451, %v3521
        %v3538 = vmul.f32 %v3453, %v3522
        %v3539 = vmul.f32 %v3455, %v3523
        %v3540 = vmul.f32 %v3457, %v3524
        %v3541 = vmul.f32 %v3459, %v3525
        %v3542 = vmul.f32 %v3461, %v3526
        %v3543 = vmul.f32 %v3463, %v3527
        %v3544 = vpack.c.bf16 %v3529, %v3528
        %v3545 = vpack.c.bf16 %v3531, %v3530
        %v3546 = vpack.c.bf16 %v3533, %v3532
        %v3547 = vpack.c.bf16 %v3535, %v3534
        %v3548 = vpack.c.bf16 %v3537, %v3536
        %v3549 = vpack.c.bf16 %v3539, %v3538
        %v3550 = vpack.c.bf16 %v3541, %v3540
        %v3551 = vpack.c.bf16 %v3543, %v3542
        %v3560 = vunpack.c.l.b16 %v2681
        %v3561 = vunpack.c.l.b16 %v2682
        %v3562 = vunpack.c.l.b16 %v2683
        %v3563 = vunpack.c.l.b16 %v2684
        %v3564 = vunpack.c.l.b16 %v2685
        %v3565 = vunpack.c.l.b16 %v2686
        %v3566 = vunpack.c.l.b16 %v2687
        %v3567 = vunpack.c.l.b16 %v2688
        %v3568 = vpack.c.b16 %v3561, %v3560
        %v3569 = vpack.c.b16 %v3563, %v3562
        %v3570 = vpack.c.b16 %v3565, %v3564
        %v3571 = vpack.c.b16 %v3567, %v3566
        %3572 = vrot.lane.b32.xlu0 %v3568, 96
        %v3573 = vpop.permute.xlu0 %3572
        %3574 = vrot.lane.b32.xlu0 %v3569, 96
        %v3575 = vpop.permute.xlu0 %3574
        %3576 = vrot.lane.b32.xlu0 %v3570, 96
        %v3577 = vpop.permute.xlu0 %3576
        %3578 = vrot.lane.b32.xlu0 %v3571, 96
        %v3579 = vpop.permute.xlu0 %3578
        %v3585 = vsel %vm2964, %v3544, 0
        %v3588 = vsel %vm2964, %v3545, 0
        %v3591 = vsel %vm2964, %v3546, 0
        %v3594 = vsel %vm2964, %v3547, 0
        %3596 = vmatprep.subr.bf16.mxu0 0
        %3597 = vmatpush1.bf16.msra.mxu0 0
        %3598 = vmatprep.subr.bf16.mxu0 0
        %3599 = vmatpush1.bf16.msra.mxu0 0
        %3600 = vmatprep.subr.bf16.mxu0 0
        %3601 = vmatpush1.bf16.msra.mxu0 0
        %3602 = vmatprep.subr.bf16.mxu0 0
        %3603 = vmatpush1.bf16.msra.mxu0 0
        %3604 = vmatprep.subr.bf16.mxu0 0
        %3605 = vmatpush1.bf16.msra.mxu0 %v3579
        %3606 = vmatprep.subr.bf16.mxu0 0
        %3607 = vmatpush1.bf16.msra.mxu0 %v3577
        %3608 = vmatprep.subr.bf16.mxu0 0
        %3609 = vmatpush1.bf16.msra.mxu0 %v3575
        %3610 = vmatprep.subr.bf16.mxu0 0
        %3611 = vmatpush1.bf16.msra.mxu0 %v3573
        %3612 = vmatprep.subr.bf16.mxu0 0
        %3613 = vmatpush2.bf16.msra.mxu0 0
        %3614 = vmatprep.subr.bf16.mxu0 0
        %3615 = vmatpush2.bf16.msra.mxu0 0
        %3616 = vmatprep.subr.bf16.mxu0 0
        %3617 = vmatpush2.bf16.msra.mxu0 0
        %3618 = vmatprep.subr.bf16.mxu0 0
        %3619 = vmatpush2.bf16.msra.mxu0 0
        %3620 = vmatprep.subr.bf16.mxu0 0
        %3621 = vmatpush2.bf16.msra.mxu0 0
        %3622 = vmatprep.subr.bf16.mxu0 0
        %3623 = vmatpush2.bf16.msra.mxu0 0
        %3624 = vmatprep.subr.bf16.mxu0 0
        %3625 = vmatpush2.bf16.msra.mxu0 0
        %3626 = vmatprep.subr.bf16.mxu0 0
        %3627 = vmatpush2.bf16.msra.mxu0 0
        %3628 = vmatprep.mubr.bf16.mxu0 0
        %3629 = vmatmul.mubr.bf16.gmra.mxu0 %v3585
        %v3630 = vpop.f32.mrf.mxu0
        %v3631 = vadd.f32 0.0, %v3630
        %v3632 = vpop.f32.mrf.mxu0
        %v3633 = vpop.f32.mrf.mxu0
        %v3634 = vadd.f32 0.0, %v3633
        %v3635 = vpop.f32.mrf.mxu0
        %3636 = vmatprep.mubr.bf16.mxu0 0
        %3637 = vmatmul.mubr.bf16.gmra.mxu0 %v3588
        %v3638 = vpop.f32.mrf.mxu0
        %v3639 = vadd.f32 0.0, %v3638
        %v3640 = vpop.f32.mrf.mxu0
        %v3641 = vpop.f32.mrf.mxu0
        %v3642 = vadd.f32 0.0, %v3641
        %v3643 = vpop.f32.mrf.mxu0
        %3644 = vmatprep.mubr.bf16.mxu0 0
        %3645 = vmatmul.mubr.bf16.gmra.mxu0 %v3591
        %v3646 = vpop.f32.mrf.mxu0
        %v3647 = vadd.f32 0.0, %v3646
        %v3648 = vpop.f32.mrf.mxu0
        %v3649 = vpop.f32.mrf.mxu0
        %v3650 = vadd.f32 0.0, %v3649
        %v3651 = vpop.f32.mrf.mxu0
        %3652 = vmatprep.mubr.bf16.mxu0 0
        %3653 = vmatmul.mubr.bf16.gmra.mxu0 %v3594
        %v3654 = vpop.f32.mrf.mxu0
        %v3655 = vadd.f32 0.0, %v3654
        %v3656 = vpop.f32.mrf.mxu0
        %v3657 = vpop.f32.mrf.mxu0
        %v3658 = vadd.f32 0.0, %v3657
        %v3659 = vpop.f32.mrf.mxu0
        %3660 = vdwg.mxu0
        %v3669 = vunpack.c.l.b16 %v2689
        %v3670 = vunpack.c.l.b16 %v2690
        %v3671 = vunpack.c.l.b16 %v2691
        %v3672 = vunpack.c.l.b16 %v2692
        %v3673 = vunpack.c.l.b16 %v2693
        %v3674 = vunpack.c.l.b16 %v2694
        %v3675 = vunpack.c.l.b16 %v2695
        %v3676 = vunpack.c.l.b16 %v2696
        %v3677 = vpack.c.b16 %v3670, %v3669
        %v3678 = vpack.c.b16 %v3672, %v3671
        %v3679 = vpack.c.b16 %v3674, %v3673
        %v3680 = vpack.c.b16 %v3676, %v3675
        %3681 = vrot.lane.b32.xlu0 %v3677, 96
        %v3682 = vpop.permute.xlu0 %3681
        %3683 = vrot.lane.b32.xlu0 %v3678, 96
        %v3684 = vpop.permute.xlu0 %3683
        %3685 = vrot.lane.b32.xlu0 %v3679, 96
        %v3686 = vpop.permute.xlu0 %3685
        %3687 = vrot.lane.b32.xlu0 %v3680, 96
        %v3688 = vpop.permute.xlu0 %3687
        %v3694 = vsel %vm2964, %v3548, 0
        %v3697 = vsel %vm2964, %v3549, 0
        %v3700 = vsel %vm2964, %v3550, 0
        %v3703 = vsel %vm2964, %v3551, 0
        %3705 = vmatprep.subr.bf16.mxu0 0
        %3706 = vmatpush1.bf16.msra.mxu0 0
        %3707 = vmatprep.subr.bf16.mxu0 0
        %3708 = vmatpush1.bf16.msra.mxu0 0
        %3709 = vmatprep.subr.bf16.mxu0 0
        %3710 = vmatpush1.bf16.msra.mxu0 0
        %3711 = vmatprep.subr.bf16.mxu0 0
        %3712 = vmatpush1.bf16.msra.mxu0 0
        %3713 = vmatprep.subr.bf16.mxu0 0
        %3714 = vmatpush1.bf16.msra.mxu0 %v3688
        %3715 = vmatprep.subr.bf16.mxu0 0
        %3716 = vmatpush1.bf16.msra.mxu0 %v3686
        %3717 = vmatprep.subr.bf16.mxu0 0
        %3718 = vmatpush1.bf16.msra.mxu0 %v3684
        %3719 = vmatprep.subr.bf16.mxu0 0
        %3720 = vmatpush1.bf16.msra.mxu0 %v3682
        %3721 = vmatprep.subr.bf16.mxu0 0
        %3722 = vmatpush2.bf16.msra.mxu0 0
        %3723 = vmatprep.subr.bf16.mxu0 0
        %3724 = vmatpush2.bf16.msra.mxu0 0
        %3725 = vmatprep.subr.bf16.mxu0 0
        %3726 = vmatpush2.bf16.msra.mxu0 0
        %3727 = vmatprep.subr.bf16.mxu0 0
        %3728 = vmatpush2.bf16.msra.mxu0 0
        %3729 = vmatprep.subr.bf16.mxu0 0
        %3730 = vmatpush2.bf16.msra.mxu0 0
        %3731 = vmatprep.subr.bf16.mxu0 0
        %3732 = vmatpush2.bf16.msra.mxu0 0
        %3733 = vmatprep.subr.bf16.mxu0 0
        %3734 = vmatpush2.bf16.msra.mxu0 0
        %3735 = vmatprep.subr.bf16.mxu0 0
        %3736 = vmatpush2.bf16.msra.mxu0 0
        %3737 = vmatprep.mubr.bf16.mxu0 0
        %3738 = vmatmul.mubr.bf16.gmra.mxu0 %v3694
        %v3739 = vpop.f32.mrf.mxu0
        %v3740 = vadd.f32 0.0, %v3739
        %v3741 = vpop.f32.mrf.mxu0
        %v3742 = vpop.f32.mrf.mxu0
        %v3743 = vadd.f32 0.0, %v3742
        %v3744 = vpop.f32.mrf.mxu0
        %3745 = vmatprep.mubr.bf16.mxu0 0
        %3746 = vmatmul.mubr.bf16.gmra.mxu0 %v3697
        %v3747 = vpop.f32.mrf.mxu0
        %v3748 = vadd.f32 0.0, %v3747
        %v3749 = vpop.f32.mrf.mxu0
        %v3750 = vpop.f32.mrf.mxu0
        %v3751 = vadd.f32 0.0, %v3750
        %v3752 = vpop.f32.mrf.mxu0
        %3753 = vmatprep.mubr.bf16.mxu0 0
        %3754 = vmatmul.mubr.bf16.gmra.mxu0 %v3700
        %v3755 = vpop.f32.mrf.mxu0
        %v3756 = vadd.f32 0.0, %v3755
        %v3757 = vpop.f32.mrf.mxu0
        %v3758 = vpop.f32.mrf.mxu0
        %v3759 = vadd.f32 0.0, %v3758
        %v3760 = vpop.f32.mrf.mxu0
        %3761 = vmatprep.mubr.bf16.mxu0 0
        %3762 = vmatmul.mubr.bf16.gmra.mxu0 %v3703
        %v3763 = vpop.f32.mrf.mxu0
        %v3764 = vadd.f32 0.0, %v3763
        %v3765 = vpop.f32.mrf.mxu0
        %v3766 = vpop.f32.mrf.mxu0
        %v3767 = vadd.f32 0.0, %v3766
        %v3768 = vpop.f32.mrf.mxu0
        %3769 = vdwg.mxu0
        %v3775 = vsel %vm2964, %v3141, 0
        %v3778 = vsel %vm2964, %v3142, 0
        %v3781 = vsel %vm2964, %v3143, 0
        %v3784 = vsel %vm2964, %v3144, 0
        %3786 = vmatprep.subr.bf16.mxu0 0
        %3787 = vmatpush1.bf16.msra.mxu0 0
        %3788 = vmatprep.subr.bf16.mxu0 0
        %3789 = vmatpush1.bf16.msra.mxu0 0
        %3790 = vmatprep.subr.bf16.mxu0 0
        %3791 = vmatpush1.bf16.msra.mxu0 0
        %3792 = vmatprep.subr.bf16.mxu0 0
        %3793 = vmatpush1.bf16.msra.mxu0 0
        %3794 = vmatprep.subr.bf16.mxu0 0
        %3795 = vmatpush1.bf16.msra.mxu0 %v3571
        %3796 = vmatprep.subr.bf16.mxu0 0
        %3797 = vmatpush1.bf16.msra.mxu0 %v3570
        %3798 = vmatprep.subr.bf16.mxu0 0
        %3799 = vmatpush1.bf16.msra.mxu0 %v3569
        %3800 = vmatprep.subr.bf16.mxu0 0
        %3801 = vmatpush1.bf16.msra.mxu0 %v3568
        %3802 = vmatprep.subr.bf16.mxu0 0
        %3803 = vmatpush2.bf16.msra.mxu0 0
        %3804 = vmatprep.subr.bf16.mxu0 0
        %3805 = vmatpush2.bf16.msra.mxu0 0
        %3806 = vmatprep.subr.bf16.mxu0 0
        %3807 = vmatpush2.bf16.msra.mxu0 0
        %3808 = vmatprep.subr.bf16.mxu0 0
        %3809 = vmatpush2.bf16.msra.mxu0 0
        %3810 = vmatprep.subr.bf16.mxu0 0
        %3811 = vmatpush2.bf16.msra.mxu0 0
        %3812 = vmatprep.subr.bf16.mxu0 0
        %3813 = vmatpush2.bf16.msra.mxu0 0
        %3814 = vmatprep.subr.bf16.mxu0 0
        %3815 = vmatpush2.bf16.msra.mxu0 0
        %3816 = vmatprep.subr.bf16.mxu0 0
        %3817 = vmatpush2.bf16.msra.mxu0 0
        %3818 = vmatprep.mubr.bf16.mxu0 0
        %3819 = vmatmul.mubr.bf16.gmra.mxu0 %v3775
        %v3820 = vpop.f32.mrf.mxu0
        %v3821 = vadd.f32 %v3631, %v3820
        %v3822 = vpop.f32.mrf.mxu0
        %v3823 = vpop.f32.mrf.mxu0
        %v3824 = vadd.f32 %v3634, %v3823
        %v3825 = vpop.f32.mrf.mxu0
        %3826 = vmatprep.mubr.bf16.mxu0 0
        %3827 = vmatmul.mubr.bf16.gmra.mxu0 %v3778
        %v3828 = vpop.f32.mrf.mxu0
        %v3829 = vadd.f32 %v3639, %v3828
        %v3830 = vpop.f32.mrf.mxu0
        %v3831 = vpop.f32.mrf.mxu0
        %v3832 = vadd.f32 %v3642, %v3831
        %v3833 = vpop.f32.mrf.mxu0
        %3834 = vmatprep.mubr.bf16.mxu0 0
        %3835 = vmatmul.mubr.bf16.gmra.mxu0 %v3781
        %v3836 = vpop.f32.mrf.mxu0
        %v3837 = vadd.f32 %v3647, %v3836
        %v3838 = vpop.f32.mrf.mxu0
        %v3839 = vpop.f32.mrf.mxu0
        %v3840 = vadd.f32 %v3650, %v3839
        %v3841 = vpop.f32.mrf.mxu0
        %3842 = vmatprep.mubr.bf16.mxu0 0
        %3843 = vmatmul.mubr.bf16.gmra.mxu0 %v3784
        %v3844 = vpop.f32.mrf.mxu0
        %v3845 = vadd.f32 %v3655, %v3844
        %v3846 = vpop.f32.mrf.mxu0
        %v3847 = vpop.f32.mrf.mxu0
        %v3848 = vadd.f32 %v3658, %v3847
        %v3849 = vpop.f32.mrf.mxu0
        %3850 = vdwg.mxu0
        %v3856 = vsel %vm2964, %v3145, 0
        %v3859 = vsel %vm2964, %v3146, 0
        %v3862 = vsel %vm2964, %v3147, 0
        %v3865 = vsel %vm2964, %v3148, 0
        %3867 = vmatprep.subr.bf16.mxu0 0
        %3868 = vmatpush1.bf16.msra.mxu0 0
        %3869 = vmatprep.subr.bf16.mxu0 0
        %3870 = vmatpush1.bf16.msra.mxu0 0
        %3871 = vmatprep.subr.bf16.mxu0 0
        %3872 = vmatpush1.bf16.msra.mxu0 0
        %3873 = vmatprep.subr.bf16.mxu0 0
        %3874 = vmatpush1.bf16.msra.mxu0 0
        %3875 = vmatprep.subr.bf16.mxu0 0
        %3876 = vmatpush1.bf16.msra.mxu0 %v3680
        %3877 = vmatprep.subr.bf16.mxu0 0
        %3878 = vmatpush1.bf16.msra.mxu0 %v3679
        %3879 = vmatprep.subr.bf16.mxu0 0
        %3880 = vmatpush1.bf16.msra.mxu0 %v3678
        %3881 = vmatprep.subr.bf16.mxu0 0
        %3882 = vmatpush1.bf16.msra.mxu0 %v3677
        %3883 = vmatprep.subr.bf16.mxu0 0
        %3884 = vmatpush2.bf16.msra.mxu0 0
        %3885 = vmatprep.subr.bf16.mxu0 0
        %3886 = vmatpush2.bf16.msra.mxu0 0
        %3887 = vmatprep.subr.bf16.mxu0 0
        %3888 = vmatpush2.bf16.msra.mxu0 0
        %3889 = vmatprep.subr.bf16.mxu0 0
        %3890 = vmatpush2.bf16.msra.mxu0 0
        %3891 = vmatprep.subr.bf16.mxu0 0
        %3892 = vmatpush2.bf16.msra.mxu0 0
        %3893 = vmatprep.subr.bf16.mxu0 0
        %3894 = vmatpush2.bf16.msra.mxu0 0
        %3895 = vmatprep.subr.bf16.mxu0 0
        %3896 = vmatpush2.bf16.msra.mxu0 0
        %3897 = vmatprep.subr.bf16.mxu0 0
        %3898 = vmatpush2.bf16.msra.mxu0 0
        %3899 = vmatprep.mubr.bf16.mxu0 0
        %3900 = vmatmul.mubr.bf16.gmra.mxu0 %v3856
        %v3901 = vpop.f32.mrf.mxu0
        %v3902 = vadd.f32 %v3740, %v3901
        %v3903 = vpop.f32.mrf.mxu0
        %v3904 = vpop.f32.mrf.mxu0
        %v3905 = vadd.f32 %v3743, %v3904
        %v3906 = vpop.f32.mrf.mxu0
        %3907 = vmatprep.mubr.bf16.mxu0 0
        %3908 = vmatmul.mubr.bf16.gmra.mxu0 %v3859
        %v3909 = vpop.f32.mrf.mxu0
        %v3910 = vadd.f32 %v3748, %v3909
        %v3911 = vpop.f32.mrf.mxu0
        %v3912 = vpop.f32.mrf.mxu0
        %v3913 = vadd.f32 %v3751, %v3912
        %v3914 = vpop.f32.mrf.mxu0
        %3915 = vmatprep.mubr.bf16.mxu0 0
        %3916 = vmatmul.mubr.bf16.gmra.mxu0 %v3862
        %v3917 = vpop.f32.mrf.mxu0
        %v3918 = vadd.f32 %v3756, %v3917
        %v3919 = vpop.f32.mrf.mxu0
        %v3920 = vpop.f32.mrf.mxu0
        %v3921 = vadd.f32 %v3759, %v3920
        %v3922 = vpop.f32.mrf.mxu0
        %3923 = vmatprep.mubr.bf16.mxu0 0
        %3924 = vmatmul.mubr.bf16.gmra.mxu0 %v3865
        %v3925 = vpop.f32.mrf.mxu0
        %v3926 = vadd.f32 %v3764, %v3925
        %v3927 = vpop.f32.mrf.mxu0
        %v3928 = vpop.f32.mrf.mxu0
        %v3929 = vadd.f32 %v3767, %v3928
        %v3930 = vpop.f32.mrf.mxu0
        %3931 = vdwg.mxu0
        %s3932 = scalar_lea.vmem %s8, 128
        %v3933 = vld [vmem:[%s3932] sm:$0xff]
        %v3934 = vld [vmem:[%s3932 + $0x8] sm:$0xff]
        %v3935 = vld [vmem:[%s3932 + $0x10] sm:$0xff]
        %v3936 = vld [vmem:[%s3932 + $0x18] sm:$0xff]
        %v3937 = vld [vmem:[%s3932 + $0x20] sm:$0xff]
        %v3938 = vld [vmem:[%s3932 + $0x28] sm:$0xff]
        %v3939 = vld [vmem:[%s3932 + $0x30] sm:$0xff]
        %v3940 = vld [vmem:[%s3932 + $0x38] sm:$0xff]
        %3941 = vrot.lane.b32.xlu0 %v2721, 112
        %v3942 = vpop.permute.xlu0 %3941
        %3943 = vrot.lane.b32.xlu0 %v2722, 112
        %v3944 = vpop.permute.xlu0 %3943
        %3945 = vrot.lane.b32.xlu0 %v2723, 112
        %v3946 = vpop.permute.xlu0 %3945
        %3947 = vrot.lane.b32.xlu0 %v2724, 112
        %v3948 = vpop.permute.xlu0 %3947
        %3949 = vrot.lane.b32.xlu0 %v2741, 112
        %v3950 = vpop.permute.xlu0 %3949
        %3951 = vrot.lane.b32.xlu0 %v2742, 112
        %v3952 = vpop.permute.xlu0 %3951
        %3953 = vrot.lane.b32.xlu0 %v2743, 112
        %v3954 = vpop.permute.xlu0 %3953
        %3955 = vrot.lane.b32.xlu0 %v2744, 112
        %v3956 = vpop.permute.xlu0 %3955
        %v3958 = vsel %vm2745, %v3942, 0
        %v3961 = vsel %vm2745, %v3944, 0
        %v3964 = vsel %vm2745, %v3946, 0
        %v3967 = vsel %vm2745, %v3948, 0
        %v3970 = vsel %vm2745, %v3950, 0
        %v3973 = vsel %vm2745, %v3952, 0
        %v3976 = vsel %vm2745, %v3954, 0
        %v3979 = vsel %vm2745, %v3956, 0
        %3981 = vmatprep.subr.bf16.mxu0 0
        %3982 = vmatpush1.bf16.xpose.msra.mxu0 0
        %3983 = vmatprep.subr.bf16.mxu0 0
        %3984 = vmatpush1.bf16.xpose.msra.mxu0 0
        %3985 = vmatprep.subr.bf16.mxu0 0
        %3986 = vmatpush1.bf16.xpose.msra.mxu0 0
        %3987 = vmatprep.subr.bf16.mxu0 0
        %3988 = vmatpush1.bf16.xpose.msra.mxu0 0
        %3989 = vmatprep.subr.bf16.mxu0 0
        %3990 = vmatpush1.bf16.xpose.msra.mxu0 %v3979
        %3991 = vmatprep.subr.bf16.mxu0 0
        %3992 = vmatpush1.bf16.xpose.msra.mxu0 %v3976
        %3993 = vmatprep.subr.bf16.mxu0 0
        %3994 = vmatpush1.bf16.xpose.msra.mxu0 %v3973
        %3995 = vmatprep.subr.bf16.mxu0 0
        %3996 = vmatpush1.bf16.xpose.msra.mxu0 %v3970
        %3997 = vmatprep.subr.bf16.mxu0 0
        %3998 = vmatpush2.bf16.xpose.msra.mxu0 0
        %3999 = vmatprep.subr.bf16.mxu0 0
        %4000 = vmatpush2.bf16.xpose.msra.mxu0 0
        %4001 = vmatprep.subr.bf16.mxu0 0
        %4002 = vmatpush2.bf16.xpose.msra.mxu0 0
        %4003 = vmatprep.subr.bf16.mxu0 0
        %4004 = vmatpush2.bf16.xpose.msra.mxu0 0
        %4005 = vmatprep.subr.bf16.mxu0 0
        %4006 = vmatpush2.bf16.xpose.msra.mxu0 0
        %4007 = vmatprep.subr.bf16.mxu0 0
        %4008 = vmatpush2.bf16.xpose.msra.mxu0 0
        %4009 = vmatprep.subr.bf16.mxu0 0
        %4010 = vmatpush2.bf16.xpose.msra.mxu0 0
        %4011 = vmatprep.subr.bf16.mxu0 0
        %4012 = vmatpush2.bf16.xpose.msra.mxu0 0
        %4013 = vmatprep.mubr.bf16.mxu0 0
        %4014 = vmatmul.mubr.bf16.gmra.mxu0 %v3958
        %v4015 = vpop.f32.mrf.mxu0
        %v4016 = vadd.f32 %v3933, %v4015
        %v4017 = vpop.f32.mrf.mxu0
        %v4018 = vpop.f32.mrf.mxu0
        %v4019 = vadd.f32 %v3934, %v4018
        %v4020 = vpop.f32.mrf.mxu0
        %4021 = vmatprep.mubr.bf16.mxu0 0
        %4022 = vmatmul.mubr.bf16.gmra.mxu0 %v3961
        %v4023 = vpop.f32.mrf.mxu0
        %v4024 = vadd.f32 %v3935, %v4023
        %v4025 = vpop.f32.mrf.mxu0
        %v4026 = vpop.f32.mrf.mxu0
        %v4027 = vadd.f32 %v3936, %v4026
        %v4028 = vpop.f32.mrf.mxu0
        %4029 = vmatprep.mubr.bf16.mxu0 0
        %4030 = vmatmul.mubr.bf16.gmra.mxu0 %v3964
        %v4031 = vpop.f32.mrf.mxu0
        %v4032 = vadd.f32 %v3937, %v4031
        %v4033 = vpop.f32.mrf.mxu0
        %v4034 = vpop.f32.mrf.mxu0
        %v4035 = vadd.f32 %v3938, %v4034
        %v4036 = vpop.f32.mrf.mxu0
        %4037 = vmatprep.mubr.bf16.mxu0 0
        %4038 = vmatmul.mubr.bf16.gmra.mxu0 %v3967
        %v4039 = vpop.f32.mrf.mxu0
        %v4040 = vadd.f32 %v3939, %v4039
        %v4041 = vpop.f32.mrf.mxu0
        %v4042 = vpop.f32.mrf.mxu0
        %v4043 = vadd.f32 %v3940, %v4042
        %v4044 = vpop.f32.mrf.mxu0
        %4045 = vdwg.mxu0
        %4046 = vrot.lane.b32.xlu0 %v2851, 112
        %v4047 = vpop.permute.xlu0 %4046
        %4048 = vrot.lane.b32.xlu0 %v2852, 112
        %v4049 = vpop.permute.xlu0 %4048
        %4050 = vrot.lane.b32.xlu0 %v2853, 112
        %v4051 = vpop.permute.xlu0 %4050
        %4052 = vrot.lane.b32.xlu0 %v2854, 112
        %v4053 = vpop.permute.xlu0 %4052
        %4054 = vrot.lane.b32.xlu0 %v2871, 112
        %v4055 = vpop.permute.xlu0 %4054
        %4056 = vrot.lane.b32.xlu0 %v2872, 112
        %v4057 = vpop.permute.xlu0 %4056
        %4058 = vrot.lane.b32.xlu0 %v2873, 112
        %v4059 = vpop.permute.xlu0 %4058
        %4060 = vrot.lane.b32.xlu0 %v2874, 112
        %v4061 = vpop.permute.xlu0 %4060
        %v4063 = vsel %vm2745, %v4047, 0
        %v4066 = vsel %vm2745, %v4049, 0
        %v4069 = vsel %vm2745, %v4051, 0
        %v4072 = vsel %vm2745, %v4053, 0
        %v4075 = vsel %vm2745, %v4055, 0
        %v4078 = vsel %vm2745, %v4057, 0
        %v4081 = vsel %vm2745, %v4059, 0
        %v4084 = vsel %vm2745, %v4061, 0
        %4086 = vmatprep.subr.bf16.mxu0 0
        %4087 = vmatpush1.bf16.xpose.msra.mxu0 0
        %4088 = vmatprep.subr.bf16.mxu0 0
        %4089 = vmatpush1.bf16.xpose.msra.mxu0 0
        %4090 = vmatprep.subr.bf16.mxu0 0
        %4091 = vmatpush1.bf16.xpose.msra.mxu0 0
        %4092 = vmatprep.subr.bf16.mxu0 0
        %4093 = vmatpush1.bf16.xpose.msra.mxu0 0
        %4094 = vmatprep.subr.bf16.mxu0 0
        %4095 = vmatpush1.bf16.xpose.msra.mxu0 %v4084
        %4096 = vmatprep.subr.bf16.mxu0 0
        %4097 = vmatpush1.bf16.xpose.msra.mxu0 %v4081
        %4098 = vmatprep.subr.bf16.mxu0 0
        %4099 = vmatpush1.bf16.xpose.msra.mxu0 %v4078
        %4100 = vmatprep.subr.bf16.mxu0 0
        %4101 = vmatpush1.bf16.xpose.msra.mxu0 %v4075
        %4102 = vmatprep.subr.bf16.mxu0 0
        %4103 = vmatpush2.bf16.xpose.msra.mxu0 0
        %4104 = vmatprep.subr.bf16.mxu0 0
        %4105 = vmatpush2.bf16.xpose.msra.mxu0 0
        %4106 = vmatprep.subr.bf16.mxu0 0
        %4107 = vmatpush2.bf16.xpose.msra.mxu0 0
        %4108 = vmatprep.subr.bf16.mxu0 0
        %4109 = vmatpush2.bf16.xpose.msra.mxu0 0
        %4110 = vmatprep.subr.bf16.mxu0 0
        %4111 = vmatpush2.bf16.xpose.msra.mxu0 0
        %4112 = vmatprep.subr.bf16.mxu0 0
        %4113 = vmatpush2.bf16.xpose.msra.mxu0 0
        %4114 = vmatprep.subr.bf16.mxu0 0
        %4115 = vmatpush2.bf16.xpose.msra.mxu0 0
        %4116 = vmatprep.subr.bf16.mxu0 0
        %4117 = vmatpush2.bf16.xpose.msra.mxu0 0
        %4118 = vmatprep.mubr.bf16.mxu0 0
        %4119 = vmatmul.mubr.bf16.gmra.mxu0 %v4063
        %v4120 = vpop.f32.mrf.mxu0
        %v4121 = vadd.f32 %v3933, %v4120
        %v4122 = vpop.f32.mrf.mxu0
        %v4123 = vpop.f32.mrf.mxu0
        %v4124 = vadd.f32 %v3934, %v4123
        %v4125 = vpop.f32.mrf.mxu0
        %4126 = vmatprep.mubr.bf16.mxu0 0
        %4127 = vmatmul.mubr.bf16.gmra.mxu0 %v4066
        %v4128 = vpop.f32.mrf.mxu0
        %v4129 = vadd.f32 %v3935, %v4128
        %v4130 = vpop.f32.mrf.mxu0
        %v4131 = vpop.f32.mrf.mxu0
        %v4132 = vadd.f32 %v3936, %v4131
        %v4133 = vpop.f32.mrf.mxu0
        %4134 = vmatprep.mubr.bf16.mxu0 0
        %4135 = vmatmul.mubr.bf16.gmra.mxu0 %v4069
        %v4136 = vpop.f32.mrf.mxu0
        %v4137 = vadd.f32 %v3937, %v4136
        %v4138 = vpop.f32.mrf.mxu0
        %v4139 = vpop.f32.mrf.mxu0
        %v4140 = vadd.f32 %v3938, %v4139
        %v4141 = vpop.f32.mrf.mxu0
        %4142 = vmatprep.mubr.bf16.mxu0 0
        %4143 = vmatmul.mubr.bf16.gmra.mxu0 %v4072
        %v4144 = vpop.f32.mrf.mxu0
        %v4145 = vadd.f32 %v3939, %v4144
        %v4146 = vpop.f32.mrf.mxu0
        %v4147 = vpop.f32.mrf.mxu0
        %v4148 = vadd.f32 %v3940, %v4147
        %v4149 = vpop.f32.mrf.mxu0
        %4150 = vdwg.mxu0
        %v4151 = vsel %vm2964, %v4016, -inf
        %4152 = vmax.xlane.f32.xlu0 %v4151
        %v4153 = vpop.xlane.xlu0 %4152
        %v4154 = vsel %vm2964, %v4019, -inf
        %4155 = vmax.xlane.f32.xlu0 %v4154
        %v4156 = vpop.xlane.xlu0 %4155
        %v4157 = vsel %vm2964, %v4024, -inf
        %4158 = vmax.xlane.f32.xlu0 %v4157
        %v4159 = vpop.xlane.xlu0 %4158
        %v4160 = vsel %vm2964, %v4027, -inf
        %4161 = vmax.xlane.f32.xlu0 %v4160
        %v4162 = vpop.xlane.xlu0 %4161
        %v4163 = vsel %vm2964, %v4032, -inf
        %4164 = vmax.xlane.f32.xlu0 %v4163
        %v4165 = vpop.xlane.xlu0 %4164
        %v4166 = vsel %vm2964, %v4035, -inf
        %4167 = vmax.xlane.f32.xlu0 %v4166
        %v4168 = vpop.xlane.xlu0 %4167
        %v4169 = vsel %vm2964, %v4040, -inf
        %4170 = vmax.xlane.f32.xlu0 %v4169
        %v4171 = vpop.xlane.xlu0 %4170
        %v4172 = vsel %vm2964, %v4043, -inf
        %4173 = vmax.xlane.f32.xlu0 %v4172
        %v4174 = vpop.xlane.xlu0 %4173
        %v4175 = vsel %vm2964, %v4121, -inf
        %4176 = vmax.xlane.f32.xlu0 %v4175
        %v4177 = vpop.xlane.xlu0 %4176
        %v4178 = vsel %vm2964, %v4124, -inf
        %4179 = vmax.xlane.f32.xlu0 %v4178
        %v4180 = vpop.xlane.xlu0 %4179
        %v4181 = vsel %vm2964, %v4129, -inf
        %4182 = vmax.xlane.f32.xlu0 %v4181
        %v4183 = vpop.xlane.xlu0 %4182
        %v4184 = vsel %vm2964, %v4132, -inf
        %4185 = vmax.xlane.f32.xlu0 %v4184
        %v4186 = vpop.xlane.xlu0 %4185
        %v4187 = vsel %vm2964, %v4137, -inf
        %4188 = vmax.xlane.f32.xlu0 %v4187
        %v4189 = vpop.xlane.xlu0 %4188
        %v4190 = vsel %vm2964, %v4140, -inf
        %4191 = vmax.xlane.f32.xlu0 %v4190
        %v4192 = vpop.xlane.xlu0 %4191
        %v4193 = vsel %vm2964, %v4145, -inf
        %4194 = vmax.xlane.f32.xlu0 %v4193
        %v4195 = vpop.xlane.xlu0 %4194
        %v4196 = vsel %vm2964, %v4148, -inf
        %4197 = vmax.xlane.f32.xlu0 %v4196
        %v4198 = vpop.xlane.xlu0 %4197
        %v4199 = vsub.f32 %v4016, %v4153
        %v4200 = vsub.f32 %v4019, %v4156
        %v4201 = vsub.f32 %v4024, %v4159
        %v4202 = vsub.f32 %v4027, %v4162
        %v4203 = vsub.f32 %v4032, %v4165
        %v4204 = vsub.f32 %v4035, %v4168
        %v4205 = vsub.f32 %v4040, %v4171
        %v4206 = vsub.f32 %v4043, %v4174
        %v4207 = vsub.f32 %v4121, %v4177
        %v4208 = vsub.f32 %v4124, %v4180
        %v4209 = vsub.f32 %v4129, %v4183
        %v4210 = vsub.f32 %v4132, %v4186
        %v4211 = vsub.f32 %v4137, %v4189
        %v4212 = vsub.f32 %v4140, %v4192
        %v4213 = vsub.f32 %v4145, %v4195
        %v4214 = vsub.f32 %v4148, %v4198
        %v4215 = vmul.f32 %v4199, 1.442695
        %v4216 = vpow.pop %v4215
        %v4217 = vmul.f32 %v4200, 1.442695
        %v4218 = vpow.pop %v4217
        %v4219 = vmul.f32 %v4201, 1.442695
        %v4220 = vpow.pop %v4219
        %v4221 = vmul.f32 %v4202, 1.442695
        %v4222 = vpow.pop %v4221
        %v4223 = vmul.f32 %v4203, 1.442695
        %v4224 = vpow.pop %v4223
        %v4225 = vmul.f32 %v4204, 1.442695
        %v4226 = vpow.pop %v4225
        %v4227 = vmul.f32 %v4205, 1.442695
        %v4228 = vpow.pop %v4227
        %v4229 = vmul.f32 %v4206, 1.442695
        %v4230 = vpow.pop %v4229
        %v4231 = vmul.f32 %v4207, 1.442695
        %v4232 = vpow.pop %v4231
        %v4233 = vmul.f32 %v4208, 1.442695
        %v4234 = vpow.pop %v4233
        %v4235 = vmul.f32 %v4209, 1.442695
        %v4236 = vpow.pop %v4235
        %v4237 = vmul.f32 %v4210, 1.442695
        %v4238 = vpow.pop %v4237
        %v4239 = vmul.f32 %v4211, 1.442695
        %v4240 = vpow.pop %v4239
        %v4241 = vmul.f32 %v4212, 1.442695
        %v4242 = vpow.pop %v4241
        %v4243 = vmul.f32 %v4213, 1.442695
        %v4244 = vpow.pop %v4243
        %v4245 = vmul.f32 %v4214, 1.442695
        %v4246 = vpow.pop %v4245
        %v4247 = vsel %vm2964, %v4216, 0.0
        %4248 = vadd.xlane.f32.xlu0 %v4247
        %v4249 = vpop.xlane.xlu0 %4248
        %v4250 = vsel %vm2964, %v4218, 0.0
        %4251 = vadd.xlane.f32.xlu0 %v4250
        %v4252 = vpop.xlane.xlu0 %4251
        %v4253 = vsel %vm2964, %v4220, 0.0
        %4254 = vadd.xlane.f32.xlu0 %v4253
        %v4255 = vpop.xlane.xlu0 %4254
        %v4256 = vsel %vm2964, %v4222, 0.0
        %4257 = vadd.xlane.f32.xlu0 %v4256
        %v4258 = vpop.xlane.xlu0 %4257
        %v4259 = vsel %vm2964, %v4224, 0.0
        %4260 = vadd.xlane.f32.xlu0 %v4259
        %v4261 = vpop.xlane.xlu0 %4260
        %v4262 = vsel %vm2964, %v4226, 0.0
        %4263 = vadd.xlane.f32.xlu0 %v4262
        %v4264 = vpop.xlane.xlu0 %4263
        %v4265 = vsel %vm2964, %v4228, 0.0
        %4266 = vadd.xlane.f32.xlu0 %v4265
        %v4267 = vpop.xlane.xlu0 %4266
        %v4268 = vsel %vm2964, %v4230, 0.0
        %4269 = vadd.xlane.f32.xlu0 %v4268
        %v4270 = vpop.xlane.xlu0 %4269
        %v4271 = vsel %vm2964, %v4232, 0.0
        %4272 = vadd.xlane.f32.xlu0 %v4271
        %v4273 = vpop.xlane.xlu0 %4272
        %v4274 = vsel %vm2964, %v4234, 0.0
        %4275 = vadd.xlane.f32.xlu0 %v4274
        %v4276 = vpop.xlane.xlu0 %4275
        %v4277 = vsel %vm2964, %v4236, 0.0
        %4278 = vadd.xlane.f32.xlu0 %v4277
        %v4279 = vpop.xlane.xlu0 %4278
        %v4280 = vsel %vm2964, %v4238, 0.0
        %4281 = vadd.xlane.f32.xlu0 %v4280
        %v4282 = vpop.xlane.xlu0 %4281
        %v4283 = vsel %vm2964, %v4240, 0.0
        %4284 = vadd.xlane.f32.xlu0 %v4283
        %v4285 = vpop.xlane.xlu0 %4284
        %v4286 = vsel %vm2964, %v4242, 0.0
        %4287 = vadd.xlane.f32.xlu0 %v4286
        %v4288 = vpop.xlane.xlu0 %4287
        %v4289 = vsel %vm2964, %v4244, 0.0
        %4290 = vadd.xlane.f32.xlu0 %v4289
        %v4291 = vpop.xlane.xlu0 %4290
        %v4292 = vsel %vm2964, %v4246, 0.0
        %4293 = vadd.xlane.f32.xlu0 %v4292
        %v4294 = vpop.xlane.xlu0 %4293
        %v4295 = vrcp.pop %v4249
        %v4296 = vrcp.pop %v4252
        %v4297 = vrcp.pop %v4255
        %v4298 = vrcp.pop %v4258
        %v4299 = vrcp.pop %v4261
        %v4300 = vrcp.pop %v4264
        %v4301 = vrcp.pop %v4267
        %v4302 = vrcp.pop %v4270
        %v4303 = vrcp.pop %v4273
        %v4304 = vrcp.pop %v4276
        %v4305 = vrcp.pop %v4279
        %v4306 = vrcp.pop %v4282
        %v4307 = vrcp.pop %v4285
        %v4308 = vrcp.pop %v4288
        %v4309 = vrcp.pop %v4291
        %v4310 = vrcp.pop %v4294
        %v4311 = vmul.f32 %v4216, %v4295
        %v4312 = vmul.f32 %v4218, %v4296
        %v4313 = vmul.f32 %v4220, %v4297
        %v4314 = vmul.f32 %v4222, %v4298
        %v4315 = vmul.f32 %v4224, %v4299
        %v4316 = vmul.f32 %v4226, %v4300
        %v4317 = vmul.f32 %v4228, %v4301
        %v4318 = vmul.f32 %v4230, %v4302
        %v4319 = vmul.f32 %v4232, %v4303
        %v4320 = vmul.f32 %v4234, %v4304
        %v4321 = vmul.f32 %v4236, %v4305
        %v4322 = vmul.f32 %v4238, %v4306
        %v4323 = vmul.f32 %v4240, %v4307
        %v4324 = vmul.f32 %v4242, %v4308
        %v4325 = vmul.f32 %v4244, %v4309
        %v4326 = vmul.f32 %v4246, %v4310
        %v4327 = vpack.c.bf16 %v4312, %v4311
        %v4328 = vpack.c.bf16 %v4314, %v4313
        %v4329 = vpack.c.bf16 %v4316, %v4315
        %v4330 = vpack.c.bf16 %v4318, %v4317
        %v4331 = vpack.c.bf16 %v4320, %v4319
        %v4332 = vpack.c.bf16 %v4322, %v4321
        %v4333 = vpack.c.bf16 %v4324, %v4323
        %v4334 = vpack.c.bf16 %v4326, %v4325
        %4335 = vrot.lane.b32.xlu0 %v3568, 64
        %v4336 = vpop.permute.xlu0 %4335
        %4337 = vrot.lane.b32.xlu0 %v3569, 64
        %v4338 = vpop.permute.xlu0 %4337
        %4339 = vrot.lane.b32.xlu0 %v3570, 64
        %v4340 = vpop.permute.xlu0 %4339
        %4341 = vrot.lane.b32.xlu0 %v3571, 64
        %v4342 = vpop.permute.xlu0 %4341
        %v4348 = vsel %vm2964, %v4327, 0
        %v4351 = vsel %vm2964, %v4328, 0
        %v4354 = vsel %vm2964, %v4329, 0
        %v4357 = vsel %vm2964, %v4330, 0
        %4359 = vmatprep.subr.bf16.mxu0 0
        %4360 = vmatpush1.bf16.msra.mxu0 0
        %4361 = vmatprep.subr.bf16.mxu0 0
        %4362 = vmatpush1.bf16.msra.mxu0 0
        %4363 = vmatprep.subr.bf16.mxu0 0
        %4364 = vmatpush1.bf16.msra.mxu0 0
        %4365 = vmatprep.subr.bf16.mxu0 0
        %4366 = vmatpush1.bf16.msra.mxu0 0
        %4367 = vmatprep.subr.bf16.mxu0 0
        %4368 = vmatpush1.bf16.msra.mxu0 %v4342
        %4369 = vmatprep.subr.bf16.mxu0 0
        %4370 = vmatpush1.bf16.msra.mxu0 %v4340
        %4371 = vmatprep.subr.bf16.mxu0 0
        %4372 = vmatpush1.bf16.msra.mxu0 %v4338
        %4373 = vmatprep.subr.bf16.mxu0 0
        %4374 = vmatpush1.bf16.msra.mxu0 %v4336
        %4375 = vmatprep.subr.bf16.mxu0 0
        %4376 = vmatpush2.bf16.msra.mxu0 0
        %4377 = vmatprep.subr.bf16.mxu0 0
        %4378 = vmatpush2.bf16.msra.mxu0 0
        %4379 = vmatprep.subr.bf16.mxu0 0
        %4380 = vmatpush2.bf16.msra.mxu0 0
        %4381 = vmatprep.subr.bf16.mxu0 0
        %4382 = vmatpush2.bf16.msra.mxu0 0
        %4383 = vmatprep.subr.bf16.mxu0 0
        %4384 = vmatpush2.bf16.msra.mxu0 0
        %4385 = vmatprep.subr.bf16.mxu0 0
        %4386 = vmatpush2.bf16.msra.mxu0 0
        %4387 = vmatprep.subr.bf16.mxu0 0
        %4388 = vmatpush2.bf16.msra.mxu0 0
        %4389 = vmatprep.subr.bf16.mxu0 0
        %4390 = vmatpush2.bf16.msra.mxu0 0
        %4391 = vmatprep.mubr.bf16.mxu0 0
        %4392 = vmatmul.mubr.bf16.gmra.mxu0 %v4348
        %v4393 = vpop.f32.mrf.mxu0
        %v4394 = vadd.f32 0.0, %v4393
        %v4395 = vpop.f32.mrf.mxu0
        %v4396 = vpop.f32.mrf.mxu0
        %v4397 = vadd.f32 0.0, %v4396
        %v4398 = vpop.f32.mrf.mxu0
        %4399 = vmatprep.mubr.bf16.mxu0 0
        %4400 = vmatmul.mubr.bf16.gmra.mxu0 %v4351
        %v4401 = vpop.f32.mrf.mxu0
        %v4402 = vadd.f32 0.0, %v4401
        %v4403 = vpop.f32.mrf.mxu0
        %v4404 = vpop.f32.mrf.mxu0
        %v4405 = vadd.f32 0.0, %v4404
        %v4406 = vpop.f32.mrf.mxu0
        %4407 = vmatprep.mubr.bf16.mxu0 0
        %4408 = vmatmul.mubr.bf16.gmra.mxu0 %v4354
        %v4409 = vpop.f32.mrf.mxu0
        %v4410 = vadd.f32 0.0, %v4409
        %v4411 = vpop.f32.mrf.mxu0
        %v4412 = vpop.f32.mrf.mxu0
        %v4413 = vadd.f32 0.0, %v4412
        %v4414 = vpop.f32.mrf.mxu0
        %4415 = vmatprep.mubr.bf16.mxu0 0
        %4416 = vmatmul.mubr.bf16.gmra.mxu0 %v4357
        %v4417 = vpop.f32.mrf.mxu0
        %v4418 = vadd.f32 0.0, %v4417
        %v4419 = vpop.f32.mrf.mxu0
        %v4420 = vpop.f32.mrf.mxu0
        %v4421 = vadd.f32 0.0, %v4420
        %v4422 = vpop.f32.mrf.mxu0
        %4423 = vdwg.mxu0
        %4424 = vrot.lane.b32.xlu0 %v3677, 64
        %v4425 = vpop.permute.xlu0 %4424
        %4426 = vrot.lane.b32.xlu0 %v3678, 64
        %v4427 = vpop.permute.xlu0 %4426
        %4428 = vrot.lane.b32.xlu0 %v3679, 64
        %v4429 = vpop.permute.xlu0 %4428
        %4430 = vrot.lane.b32.xlu0 %v3680, 64
        %v4431 = vpop.permute.xlu0 %4430
        %v4437 = vsel %vm2964, %v4331, 0
        %v4440 = vsel %vm2964, %v4332, 0
        %v4443 = vsel %vm2964, %v4333, 0
        %v4446 = vsel %vm2964, %v4334, 0
        %4448 = vmatprep.subr.bf16.mxu0 0
        %4449 = vmatpush1.bf16.msra.mxu0 0
        %4450 = vmatprep.subr.bf16.mxu0 0
        %4451 = vmatpush1.bf16.msra.mxu0 0
        %4452 = vmatprep.subr.bf16.mxu0 0
        %4453 = vmatpush1.bf16.msra.mxu0 0
        %4454 = vmatprep.subr.bf16.mxu0 0
        %4455 = vmatpush1.bf16.msra.mxu0 0
        %4456 = vmatprep.subr.bf16.mxu0 0
        %4457 = vmatpush1.bf16.msra.mxu0 %v4431
        %4458 = vmatprep.subr.bf16.mxu0 0
        %4459 = vmatpush1.bf16.msra.mxu0 %v4429
        %4460 = vmatprep.subr.bf16.mxu0 0
        %4461 = vmatpush1.bf16.msra.mxu0 %v4427
        %4462 = vmatprep.subr.bf16.mxu0 0
        %4463 = vmatpush1.bf16.msra.mxu0 %v4425
        %4464 = vmatprep.subr.bf16.mxu0 0
        %4465 = vmatpush2.bf16.msra.mxu0 0
        %4466 = vmatprep.subr.bf16.mxu0 0
        %4467 = vmatpush2.bf16.msra.mxu0 0
        %4468 = vmatprep.subr.bf16.mxu0 0
        %4469 = vmatpush2.bf16.msra.mxu0 0
        %4470 = vmatprep.subr.bf16.mxu0 0
        %4471 = vmatpush2.bf16.msra.mxu0 0
        %4472 = vmatprep.subr.bf16.mxu0 0
        %4473 = vmatpush2.bf16.msra.mxu0 0
        %4474 = vmatprep.subr.bf16.mxu0 0
        %4475 = vmatpush2.bf16.msra.mxu0 0
        %4476 = vmatprep.subr.bf16.mxu0 0
        %4477 = vmatpush2.bf16.msra.mxu0 0
        %4478 = vmatprep.subr.bf16.mxu0 0
        %4479 = vmatpush2.bf16.msra.mxu0 0
        %4480 = vmatprep.mubr.bf16.mxu0 0
        %4481 = vmatmul.mubr.bf16.gmra.mxu0 %v4437
        %v4482 = vpop.f32.mrf.mxu0
        %v4483 = vadd.f32 0.0, %v4482
        %v4484 = vpop.f32.mrf.mxu0
        %v4485 = vpop.f32.mrf.mxu0
        %v4486 = vadd.f32 0.0, %v4485
        %v4487 = vpop.f32.mrf.mxu0
        %4488 = vmatprep.mubr.bf16.mxu0 0
        %4489 = vmatmul.mubr.bf16.gmra.mxu0 %v4440
        %v4490 = vpop.f32.mrf.mxu0
        %v4491 = vadd.f32 0.0, %v4490
        %v4492 = vpop.f32.mrf.mxu0
        %v4493 = vpop.f32.mrf.mxu0
        %v4494 = vadd.f32 0.0, %v4493
        %v4495 = vpop.f32.mrf.mxu0
        %4496 = vmatprep.mubr.bf16.mxu0 0
        %4497 = vmatmul.mubr.bf16.gmra.mxu0 %v4443
        %v4498 = vpop.f32.mrf.mxu0
        %v4499 = vadd.f32 0.0, %v4498
        %v4500 = vpop.f32.mrf.mxu0
        %v4501 = vpop.f32.mrf.mxu0
        %v4502 = vadd.f32 0.0, %v4501
        %v4503 = vpop.f32.mrf.mxu0
        %4504 = vmatprep.mubr.bf16.mxu0 0
        %4505 = vmatmul.mubr.bf16.gmra.mxu0 %v4446
        %v4506 = vpop.f32.mrf.mxu0
        %v4507 = vadd.f32 0.0, %v4506
        %v4508 = vpop.f32.mrf.mxu0
        %v4509 = vpop.f32.mrf.mxu0
        %v4510 = vadd.f32 0.0, %v4509
        %v4511 = vpop.f32.mrf.mxu0
        %4512 = vdwg.mxu0
        %v4513 = vadd.f32 %v3821, %v4394
        %v4514 = vadd.f32 %v3824, %v4397
        %v4515 = vadd.f32 %v3829, %v4402
        %v4516 = vadd.f32 %v3832, %v4405
        %v4517 = vadd.f32 %v3837, %v4410
        %v4518 = vadd.f32 %v3840, %v4413
        %v4519 = vadd.f32 %v3845, %v4418
        %v4520 = vadd.f32 %v3848, %v4421
        %v4521 = vadd.f32 %v3902, %v4483
        %v4522 = vadd.f32 %v3905, %v4486
        %v4523 = vadd.f32 %v3910, %v4491
        %v4524 = vadd.f32 %v3913, %v4494
        %v4525 = vadd.f32 %v3918, %v4499
        %v4526 = vadd.f32 %v3921, %v4502
        %v4527 = vadd.f32 %v3926, %v4507
        %v4528 = vadd.f32 %v3929, %v4510
        %s4529 = scalar_lea.vmem %s8, 192
        %v4530 = vld [vmem:[%s4529] sm:$0xff]
        %v4531 = vld [vmem:[%s4529 + $0x8] sm:$0xff]
        %v4532 = vld [vmem:[%s4529 + $0x10] sm:$0xff]
        %v4533 = vld [vmem:[%s4529 + $0x18] sm:$0xff]
        %v4534 = vld [vmem:[%s4529 + $0x20] sm:$0xff]
        %v4535 = vld [vmem:[%s4529 + $0x28] sm:$0xff]
        %v4536 = vld [vmem:[%s4529 + $0x30] sm:$0xff]
        %v4537 = vld [vmem:[%s4529 + $0x38] sm:$0xff]
        %4538 = vrot.lane.b32.xlu0 %v2721, 104
        %v4539 = vpop.permute.xlu0 %4538
        %4540 = vrot.lane.b32.xlu0 %v2722, 104
        %v4541 = vpop.permute.xlu0 %4540
        %4542 = vrot.lane.b32.xlu0 %v2723, 104
        %v4543 = vpop.permute.xlu0 %4542
        %4544 = vrot.lane.b32.xlu0 %v2724, 104
        %v4545 = vpop.permute.xlu0 %4544
        %4546 = vrot.lane.b32.xlu0 %v2741, 104
        %v4547 = vpop.permute.xlu0 %4546
        %4548 = vrot.lane.b32.xlu0 %v2742, 104
        %v4549 = vpop.permute.xlu0 %4548
        %4550 = vrot.lane.b32.xlu0 %v2743, 104
        %v4551 = vpop.permute.xlu0 %4550
        %4552 = vrot.lane.b32.xlu0 %v2744, 104
        %v4553 = vpop.permute.xlu0 %4552
        %v4555 = vsel %vm2745, %v4539, 0
        %v4558 = vsel %vm2745, %v4541, 0
        %v4561 = vsel %vm2745, %v4543, 0
        %v4564 = vsel %vm2745, %v4545, 0
        %v4567 = vsel %vm2745, %v4547, 0
        %v4570 = vsel %vm2745, %v4549, 0
        %v4573 = vsel %vm2745, %v4551, 0
        %v4576 = vsel %vm2745, %v4553, 0
        %4578 = vmatprep.subr.bf16.mxu0 0
        %4579 = vmatpush1.bf16.xpose.msra.mxu0 0
        %4580 = vmatprep.subr.bf16.mxu0 0
        %4581 = vmatpush1.bf16.xpose.msra.mxu0 0
        %4582 = vmatprep.subr.bf16.mxu0 0
        %4583 = vmatpush1.bf16.xpose.msra.mxu0 0
        %4584 = vmatprep.subr.bf16.mxu0 0
        %4585 = vmatpush1.bf16.xpose.msra.mxu0 0
        %4586 = vmatprep.subr.bf16.mxu0 0
        %4587 = vmatpush1.bf16.xpose.msra.mxu0 %v4576
        %4588 = vmatprep.subr.bf16.mxu0 0
        %4589 = vmatpush1.bf16.xpose.msra.mxu0 %v4573
        %4590 = vmatprep.subr.bf16.mxu0 0
        %4591 = vmatpush1.bf16.xpose.msra.mxu0 %v4570
        %4592 = vmatprep.subr.bf16.mxu0 0
        %4593 = vmatpush1.bf16.xpose.msra.mxu0 %v4567
        %4594 = vmatprep.subr.bf16.mxu0 0
        %4595 = vmatpush2.bf16.xpose.msra.mxu0 0
        %4596 = vmatprep.subr.bf16.mxu0 0
        %4597 = vmatpush2.bf16.xpose.msra.mxu0 0
        %4598 = vmatprep.subr.bf16.mxu0 0
        %4599 = vmatpush2.bf16.xpose.msra.mxu0 0
        %4600 = vmatprep.subr.bf16.mxu0 0
        %4601 = vmatpush2.bf16.xpose.msra.mxu0 0
        %4602 = vmatprep.subr.bf16.mxu0 0
        %4603 = vmatpush2.bf16.xpose.msra.mxu0 0
        %4604 = vmatprep.subr.bf16.mxu0 0
        %4605 = vmatpush2.bf16.xpose.msra.mxu0 0
        %4606 = vmatprep.subr.bf16.mxu0 0
        %4607 = vmatpush2.bf16.xpose.msra.mxu0 0
        %4608 = vmatprep.subr.bf16.mxu0 0
        %4609 = vmatpush2.bf16.xpose.msra.mxu0 0
        %4610 = vmatprep.mubr.bf16.mxu0 0
        %4611 = vmatmul.mubr.bf16.gmra.mxu0 %v4555
        %v4612 = vpop.f32.mrf.mxu0
        %v4613 = vadd.f32 %v4530, %v4612
        %v4614 = vpop.f32.mrf.mxu0
        %v4615 = vpop.f32.mrf.mxu0
        %v4616 = vadd.f32 %v4531, %v4615
        %v4617 = vpop.f32.mrf.mxu0
        %4618 = vmatprep.mubr.bf16.mxu0 0
        %4619 = vmatmul.mubr.bf16.gmra.mxu0 %v4558
        %v4620 = vpop.f32.mrf.mxu0
        %v4621 = vadd.f32 %v4532, %v4620
        %v4622 = vpop.f32.mrf.mxu0
        %v4623 = vpop.f32.mrf.mxu0
        %v4624 = vadd.f32 %v4533, %v4623
        %v4625 = vpop.f32.mrf.mxu0
        %4626 = vmatprep.mubr.bf16.mxu0 0
        %4627 = vmatmul.mubr.bf16.gmra.mxu0 %v4561
        %v4628 = vpop.f32.mrf.mxu0
        %v4629 = vadd.f32 %v4534, %v4628
        %v4630 = vpop.f32.mrf.mxu0
        %v4631 = vpop.f32.mrf.mxu0
        %v4632 = vadd.f32 %v4535, %v4631
        %v4633 = vpop.f32.mrf.mxu0
        %4634 = vmatprep.mubr.bf16.mxu0 0
        %4635 = vmatmul.mubr.bf16.gmra.mxu0 %v4564
        %v4636 = vpop.f32.mrf.mxu0
        %v4637 = vadd.f32 %v4536, %v4636
        %v4638 = vpop.f32.mrf.mxu0
        %v4639 = vpop.f32.mrf.mxu0
        %v4640 = vadd.f32 %v4537, %v4639
        %v4641 = vpop.f32.mrf.mxu0
        %4642 = vdwg.mxu0
        %4643 = vrot.lane.b32.xlu0 %v2851, 104
        %v4644 = vpop.permute.xlu0 %4643
        %4645 = vrot.lane.b32.xlu0 %v2852, 104
        %v4646 = vpop.permute.xlu0 %4645
        %4647 = vrot.lane.b32.xlu0 %v2853, 104
        %v4648 = vpop.permute.xlu0 %4647
        %4649 = vrot.lane.b32.xlu0 %v2854, 104
        %v4650 = vpop.permute.xlu0 %4649
        %4651 = vrot.lane.b32.xlu0 %v2871, 104
        %v4652 = vpop.permute.xlu0 %4651
        %4653 = vrot.lane.b32.xlu0 %v2872, 104
        %v4654 = vpop.permute.xlu0 %4653
        %4655 = vrot.lane.b32.xlu0 %v2873, 104
        %v4656 = vpop.permute.xlu0 %4655
        %4657 = vrot.lane.b32.xlu0 %v2874, 104
        %v4658 = vpop.permute.xlu0 %4657
        %v4660 = vsel %vm2745, %v4644, 0
        %v4663 = vsel %vm2745, %v4646, 0
        %v4666 = vsel %vm2745, %v4648, 0
        %v4669 = vsel %vm2745, %v4650, 0
        %v4672 = vsel %vm2745, %v4652, 0
        %v4675 = vsel %vm2745, %v4654, 0
        %v4678 = vsel %vm2745, %v4656, 0
        %v4681 = vsel %vm2745, %v4658, 0
        %4683 = vmatprep.subr.bf16.mxu0 0
        %4684 = vmatpush1.bf16.xpose.msra.mxu0 0
        %4685 = vmatprep.subr.bf16.mxu0 0
        %4686 = vmatpush1.bf16.xpose.msra.mxu0 0
        %4687 = vmatprep.subr.bf16.mxu0 0
        %4688 = vmatpush1.bf16.xpose.msra.mxu0 0
        %4689 = vmatprep.subr.bf16.mxu0 0
        %4690 = vmatpush1.bf16.xpose.msra.mxu0 0
        %4691 = vmatprep.subr.bf16.mxu0 0
        %4692 = vmatpush1.bf16.xpose.msra.mxu0 %v4681
        %4693 = vmatprep.subr.bf16.mxu0 0
        %4694 = vmatpush1.bf16.xpose.msra.mxu0 %v4678
        %4695 = vmatprep.subr.bf16.mxu0 0
        %4696 = vmatpush1.bf16.xpose.msra.mxu0 %v4675
        %4697 = vmatprep.subr.bf16.mxu0 0
        %4698 = vmatpush1.bf16.xpose.msra.mxu0 %v4672
        %4699 = vmatprep.subr.bf16.mxu0 0
        %4700 = vmatpush2.bf16.xpose.msra.mxu0 0
        %4701 = vmatprep.subr.bf16.mxu0 0
        %4702 = vmatpush2.bf16.xpose.msra.mxu0 0
        %4703 = vmatprep.subr.bf16.mxu0 0
        %4704 = vmatpush2.bf16.xpose.msra.mxu0 0
        %4705 = vmatprep.subr.bf16.mxu0 0
        %4706 = vmatpush2.bf16.xpose.msra.mxu0 0
        %4707 = vmatprep.subr.bf16.mxu0 0
        %4708 = vmatpush2.bf16.xpose.msra.mxu0 0
        %4709 = vmatprep.subr.bf16.mxu0 0
        %4710 = vmatpush2.bf16.xpose.msra.mxu0 0
        %4711 = vmatprep.subr.bf16.mxu0 0
        %4712 = vmatpush2.bf16.xpose.msra.mxu0 0
        %4713 = vmatprep.subr.bf16.mxu0 0
        %4714 = vmatpush2.bf16.xpose.msra.mxu0 0
        %4715 = vmatprep.mubr.bf16.mxu0 0
        %4716 = vmatmul.mubr.bf16.gmra.mxu0 %v4660
        %v4717 = vpop.f32.mrf.mxu0
        %v4718 = vadd.f32 %v4530, %v4717
        %v4719 = vpop.f32.mrf.mxu0
        %v4720 = vpop.f32.mrf.mxu0
        %v4721 = vadd.f32 %v4531, %v4720
        %v4722 = vpop.f32.mrf.mxu0
        %4723 = vmatprep.mubr.bf16.mxu0 0
        %4724 = vmatmul.mubr.bf16.gmra.mxu0 %v4663
        %v4725 = vpop.f32.mrf.mxu0
        %v4726 = vadd.f32 %v4532, %v4725
        %v4727 = vpop.f32.mrf.mxu0
        %v4728 = vpop.f32.mrf.mxu0
        %v4729 = vadd.f32 %v4533, %v4728
        %v4730 = vpop.f32.mrf.mxu0
        %4731 = vmatprep.mubr.bf16.mxu0 0
        %4732 = vmatmul.mubr.bf16.gmra.mxu0 %v4666
        %v4733 = vpop.f32.mrf.mxu0
        %v4734 = vadd.f32 %v4534, %v4733
        %v4735 = vpop.f32.mrf.mxu0
        %v4736 = vpop.f32.mrf.mxu0
        %v4737 = vadd.f32 %v4535, %v4736
        %v4738 = vpop.f32.mrf.mxu0
        %4739 = vmatprep.mubr.bf16.mxu0 0
        %4740 = vmatmul.mubr.bf16.gmra.mxu0 %v4669
        %v4741 = vpop.f32.mrf.mxu0
        %v4742 = vadd.f32 %v4536, %v4741
        %v4743 = vpop.f32.mrf.mxu0
        %v4744 = vpop.f32.mrf.mxu0
        %v4745 = vadd.f32 %v4537, %v4744
        %v4746 = vpop.f32.mrf.mxu0
        %4747 = vdwg.mxu0
        %v4748 = vsel %vm2964, %v4613, -inf
        %4749 = vmax.xlane.f32.xlu0 %v4748
        %v4750 = vpop.xlane.xlu0 %4749
        %v4751 = vsel %vm2964, %v4616, -inf
        %4752 = vmax.xlane.f32.xlu0 %v4751
        %v4753 = vpop.xlane.xlu0 %4752
        %v4754 = vsel %vm2964, %v4621, -inf
        %4755 = vmax.xlane.f32.xlu0 %v4754
        %v4756 = vpop.xlane.xlu0 %4755
        %v4757 = vsel %vm2964, %v4624, -inf
        %4758 = vmax.xlane.f32.xlu0 %v4757
        %v4759 = vpop.xlane.xlu0 %4758
        %v4760 = vsel %vm2964, %v4629, -inf
        %4761 = vmax.xlane.f32.xlu0 %v4760
        %v4762 = vpop.xlane.xlu0 %4761
        %v4763 = vsel %vm2964, %v4632, -inf
        %4764 = vmax.xlane.f32.xlu0 %v4763
        %v4765 = vpop.xlane.xlu0 %4764
        %v4766 = vsel %vm2964, %v4637, -inf
        %4767 = vmax.xlane.f32.xlu0 %v4766
        %v4768 = vpop.xlane.xlu0 %4767
        %v4769 = vsel %vm2964, %v4640, -inf
        %4770 = vmax.xlane.f32.xlu0 %v4769
        %v4771 = vpop.xlane.xlu0 %4770
        %v4772 = vsel %vm2964, %v4718, -inf
        %4773 = vmax.xlane.f32.xlu0 %v4772
        %v4774 = vpop.xlane.xlu0 %4773
        %v4775 = vsel %vm2964, %v4721, -inf
        %4776 = vmax.xlane.f32.xlu0 %v4775
        %v4777 = vpop.xlane.xlu0 %4776
        %v4778 = vsel %vm2964, %v4726, -inf
        %4779 = vmax.xlane.f32.xlu0 %v4778
        %v4780 = vpop.xlane.xlu0 %4779
        %v4781 = vsel %vm2964, %v4729, -inf
        %4782 = vmax.xlane.f32.xlu0 %v4781
        %v4783 = vpop.xlane.xlu0 %4782
        %v4784 = vsel %vm2964, %v4734, -inf
        %4785 = vmax.xlane.f32.xlu0 %v4784
        %v4786 = vpop.xlane.xlu0 %4785
        %v4787 = vsel %vm2964, %v4737, -inf
        %4788 = vmax.xlane.f32.xlu0 %v4787
        %v4789 = vpop.xlane.xlu0 %4788
        %v4790 = vsel %vm2964, %v4742, -inf
        %4791 = vmax.xlane.f32.xlu0 %v4790
        %v4792 = vpop.xlane.xlu0 %4791
        %v4793 = vsel %vm2964, %v4745, -inf
        %4794 = vmax.xlane.f32.xlu0 %v4793
        %v4795 = vpop.xlane.xlu0 %4794
        %v4796 = vsub.f32 %v4613, %v4750
        %v4797 = vsub.f32 %v4616, %v4753
        %v4798 = vsub.f32 %v4621, %v4756
        %v4799 = vsub.f32 %v4624, %v4759
        %v4800 = vsub.f32 %v4629, %v4762
        %v4801 = vsub.f32 %v4632, %v4765
        %v4802 = vsub.f32 %v4637, %v4768
        %v4803 = vsub.f32 %v4640, %v4771
        %v4804 = vsub.f32 %v4718, %v4774
        %v4805 = vsub.f32 %v4721, %v4777
        %v4806 = vsub.f32 %v4726, %v4780
        %v4807 = vsub.f32 %v4729, %v4783
        %v4808 = vsub.f32 %v4734, %v4786
        %v4809 = vsub.f32 %v4737, %v4789
        %v4810 = vsub.f32 %v4742, %v4792
        %v4811 = vsub.f32 %v4745, %v4795
        %v4812 = vmul.f32 %v4796, 1.442695
        %v4813 = vpow.pop %v4812
        %v4814 = vmul.f32 %v4797, 1.442695
        %v4815 = vpow.pop %v4814
        %v4816 = vmul.f32 %v4798, 1.442695
        %v4817 = vpow.pop %v4816
        %v4818 = vmul.f32 %v4799, 1.442695
        %v4819 = vpow.pop %v4818
        %v4820 = vmul.f32 %v4800, 1.442695
        %v4821 = vpow.pop %v4820
        %v4822 = vmul.f32 %v4801, 1.442695
        %v4823 = vpow.pop %v4822
        %v4824 = vmul.f32 %v4802, 1.442695
        %v4825 = vpow.pop %v4824
        %v4826 = vmul.f32 %v4803, 1.442695
        %v4827 = vpow.pop %v4826
        %v4828 = vmul.f32 %v4804, 1.442695
        %v4829 = vpow.pop %v4828
        %v4830 = vmul.f32 %v4805, 1.442695
        %v4831 = vpow.pop %v4830
        %v4832 = vmul.f32 %v4806, 1.442695
        %v4833 = vpow.pop %v4832
        %v4834 = vmul.f32 %v4807, 1.442695
        %v4835 = vpow.pop %v4834
        %v4836 = vmul.f32 %v4808, 1.442695
        %v4837 = vpow.pop %v4836
        %v4838 = vmul.f32 %v4809, 1.442695
        %v4839 = vpow.pop %v4838
        %v4840 = vmul.f32 %v4810, 1.442695
        %v4841 = vpow.pop %v4840
        %v4842 = vmul.f32 %v4811, 1.442695
        %v4843 = vpow.pop %v4842
        %v4844 = vsel %vm2964, %v4813, 0.0
        %4845 = vadd.xlane.f32.xlu0 %v4844
        %v4846 = vpop.xlane.xlu0 %4845
        %v4847 = vsel %vm2964, %v4815, 0.0
        %4848 = vadd.xlane.f32.xlu0 %v4847
        %v4849 = vpop.xlane.xlu0 %4848
        %v4850 = vsel %vm2964, %v4817, 0.0
        %4851 = vadd.xlane.f32.xlu0 %v4850
        %v4852 = vpop.xlane.xlu0 %4851
        %v4853 = vsel %vm2964, %v4819, 0.0
        %4854 = vadd.xlane.f32.xlu0 %v4853
        %v4855 = vpop.xlane.xlu0 %4854
        %v4856 = vsel %vm2964, %v4821, 0.0
        %4857 = vadd.xlane.f32.xlu0 %v4856
        %v4858 = vpop.xlane.xlu0 %4857
        %v4859 = vsel %vm2964, %v4823, 0.0
        %4860 = vadd.xlane.f32.xlu0 %v4859
        %v4861 = vpop.xlane.xlu0 %4860
        %v4862 = vsel %vm2964, %v4825, 0.0
        %4863 = vadd.xlane.f32.xlu0 %v4862
        %v4864 = vpop.xlane.xlu0 %4863
        %v4865 = vsel %vm2964, %v4827, 0.0
        %4866 = vadd.xlane.f32.xlu0 %v4865
        %v4867 = vpop.xlane.xlu0 %4866
        %v4868 = vsel %vm2964, %v4829, 0.0
        %4869 = vadd.xlane.f32.xlu0 %v4868
        %v4870 = vpop.xlane.xlu0 %4869
        %v4871 = vsel %vm2964, %v4831, 0.0
        %4872 = vadd.xlane.f32.xlu0 %v4871
        %v4873 = vpop.xlane.xlu0 %4872
        %v4874 = vsel %vm2964, %v4833, 0.0
        %4875 = vadd.xlane.f32.xlu0 %v4874
        %v4876 = vpop.xlane.xlu0 %4875
        %v4877 = vsel %vm2964, %v4835, 0.0
        %4878 = vadd.xlane.f32.xlu0 %v4877
        %v4879 = vpop.xlane.xlu0 %4878
        %v4880 = vsel %vm2964, %v4837, 0.0
        %4881 = vadd.xlane.f32.xlu0 %v4880
        %v4882 = vpop.xlane.xlu0 %4881
        %v4883 = vsel %vm2964, %v4839, 0.0
        %4884 = vadd.xlane.f32.xlu0 %v4883
        %v4885 = vpop.xlane.xlu0 %4884
        %v4886 = vsel %vm2964, %v4841, 0.0
        %4887 = vadd.xlane.f32.xlu0 %v4886
        %v4888 = vpop.xlane.xlu0 %4887
        %v4889 = vsel %vm2964, %v4843, 0.0
        %4890 = vadd.xlane.f32.xlu0 %v4889
        %v4891 = vpop.xlane.xlu0 %4890
        %v4892 = vrcp.pop %v4846
        %v4893 = vrcp.pop %v4849
        %v4894 = vrcp.pop %v4852
        %v4895 = vrcp.pop %v4855
        %v4896 = vrcp.pop %v4858
        %v4897 = vrcp.pop %v4861
        %v4898 = vrcp.pop %v4864
        %v4899 = vrcp.pop %v4867
        %v4900 = vrcp.pop %v4870
        %v4901 = vrcp.pop %v4873
        %v4902 = vrcp.pop %v4876
        %v4903 = vrcp.pop %v4879
        %v4904 = vrcp.pop %v4882
        %v4905 = vrcp.pop %v4885
        %v4906 = vrcp.pop %v4888
        %v4907 = vrcp.pop %v4891
        %v4908 = vmul.f32 %v4813, %v4892
        %v4909 = vmul.f32 %v4815, %v4893
        %v4910 = vmul.f32 %v4817, %v4894
        %v4911 = vmul.f32 %v4819, %v4895
        %v4912 = vmul.f32 %v4821, %v4896
        %v4913 = vmul.f32 %v4823, %v4897
        %v4914 = vmul.f32 %v4825, %v4898
        %v4915 = vmul.f32 %v4827, %v4899
        %v4916 = vmul.f32 %v4829, %v4900
        %v4917 = vmul.f32 %v4831, %v4901
        %v4918 = vmul.f32 %v4833, %v4902
        %v4919 = vmul.f32 %v4835, %v4903
        %v4920 = vmul.f32 %v4837, %v4904
        %v4921 = vmul.f32 %v4839, %v4905
        %v4922 = vmul.f32 %v4841, %v4906
        %v4923 = vmul.f32 %v4843, %v4907
        %v4924 = vpack.c.bf16 %v4909, %v4908
        %v4925 = vpack.c.bf16 %v4911, %v4910
        %v4926 = vpack.c.bf16 %v4913, %v4912
        %v4927 = vpack.c.bf16 %v4915, %v4914
        %v4928 = vpack.c.bf16 %v4917, %v4916
        %v4929 = vpack.c.bf16 %v4919, %v4918
        %v4930 = vpack.c.bf16 %v4921, %v4920
        %v4931 = vpack.c.bf16 %v4923, %v4922
        %4932 = vrot.lane.b32.xlu0 %v3568, 32
        %v4933 = vpop.permute.xlu0 %4932
        %4934 = vrot.lane.b32.xlu0 %v3569, 32
        %v4935 = vpop.permute.xlu0 %4934
        %4936 = vrot.lane.b32.xlu0 %v3570, 32
        %v4937 = vpop.permute.xlu0 %4936
        %4938 = vrot.lane.b32.xlu0 %v3571, 32
        %v4939 = vpop.permute.xlu0 %4938
        %v4945 = vsel %vm2964, %v4924, 0
        %v4948 = vsel %vm2964, %v4925, 0
        %v4951 = vsel %vm2964, %v4926, 0
        %v4954 = vsel %vm2964, %v4927, 0
        %4956 = vmatprep.subr.bf16.mxu0 0
        %4957 = vmatpush1.bf16.msra.mxu0 0
        %4958 = vmatprep.subr.bf16.mxu0 0
        %4959 = vmatpush1.bf16.msra.mxu0 0
        %4960 = vmatprep.subr.bf16.mxu0 0
        %4961 = vmatpush1.bf16.msra.mxu0 0
        %4962 = vmatprep.subr.bf16.mxu0 0
        %4963 = vmatpush1.bf16.msra.mxu0 0
        %4964 = vmatprep.subr.bf16.mxu0 0
        %4965 = vmatpush1.bf16.msra.mxu0 %v4939
        %4966 = vmatprep.subr.bf16.mxu0 0
        %4967 = vmatpush1.bf16.msra.mxu0 %v4937
        %4968 = vmatprep.subr.bf16.mxu0 0
        %4969 = vmatpush1.bf16.msra.mxu0 %v4935
        %4970 = vmatprep.subr.bf16.mxu0 0
        %4971 = vmatpush1.bf16.msra.mxu0 %v4933
        %4972 = vmatprep.subr.bf16.mxu0 0
        %4973 = vmatpush2.bf16.msra.mxu0 0
        %4974 = vmatprep.subr.bf16.mxu0 0
        %4975 = vmatpush2.bf16.msra.mxu0 0
        %4976 = vmatprep.subr.bf16.mxu0 0
        %4977 = vmatpush2.bf16.msra.mxu0 0
        %4978 = vmatprep.subr.bf16.mxu0 0
        %4979 = vmatpush2.bf16.msra.mxu0 0
        %4980 = vmatprep.subr.bf16.mxu0 0
        %4981 = vmatpush2.bf16.msra.mxu0 0
        %4982 = vmatprep.subr.bf16.mxu0 0
        %4983 = vmatpush2.bf16.msra.mxu0 0
        %4984 = vmatprep.subr.bf16.mxu0 0
        %4985 = vmatpush2.bf16.msra.mxu0 0
        %4986 = vmatprep.subr.bf16.mxu0 0
        %4987 = vmatpush2.bf16.msra.mxu0 0
        %4988 = vmatprep.mubr.bf16.mxu0 0
        %4989 = vmatmul.mubr.bf16.gmra.mxu0 %v4945
        %v4990 = vpop.f32.mrf.mxu0
        %v4991 = vadd.f32 0.0, %v4990
        %v4992 = vpop.f32.mrf.mxu0
        %v4993 = vpop.f32.mrf.mxu0
        %v4994 = vadd.f32 0.0, %v4993
        %v4995 = vpop.f32.mrf.mxu0
        %4996 = vmatprep.mubr.bf16.mxu0 0
        %4997 = vmatmul.mubr.bf16.gmra.mxu0 %v4948
        %v4998 = vpop.f32.mrf.mxu0
        %v4999 = vadd.f32 0.0, %v4998
        %v5000 = vpop.f32.mrf.mxu0
        %v5001 = vpop.f32.mrf.mxu0
        %v5002 = vadd.f32 0.0, %v5001
        %v5003 = vpop.f32.mrf.mxu0
        %5004 = vmatprep.mubr.bf16.mxu0 0
        %5005 = vmatmul.mubr.bf16.gmra.mxu0 %v4951
        %v5006 = vpop.f32.mrf.mxu0
        %v5007 = vadd.f32 0.0, %v5006
        %v5008 = vpop.f32.mrf.mxu0
        %v5009 = vpop.f32.mrf.mxu0
        %v5010 = vadd.f32 0.0, %v5009
        %v5011 = vpop.f32.mrf.mxu0
        %5012 = vmatprep.mubr.bf16.mxu0 0
        %5013 = vmatmul.mubr.bf16.gmra.mxu0 %v4954
        %v5014 = vpop.f32.mrf.mxu0
        %v5015 = vadd.f32 0.0, %v5014
        %v5016 = vpop.f32.mrf.mxu0
        %v5017 = vpop.f32.mrf.mxu0
        %v5018 = vadd.f32 0.0, %v5017
        %v5019 = vpop.f32.mrf.mxu0
        %5020 = vdwg.mxu0
        %5021 = vrot.lane.b32.xlu0 %v3677, 32
        %v5022 = vpop.permute.xlu0 %5021
        %5023 = vrot.lane.b32.xlu0 %v3678, 32
        %v5024 = vpop.permute.xlu0 %5023
        %5025 = vrot.lane.b32.xlu0 %v3679, 32
        %v5026 = vpop.permute.xlu0 %5025
        %5027 = vrot.lane.b32.xlu0 %v3680, 32
        %v5028 = vpop.permute.xlu0 %5027
        %v5034 = vsel %vm2964, %v4928, 0
        %v5037 = vsel %vm2964, %v4929, 0
        %v5040 = vsel %vm2964, %v4930, 0
        %v5043 = vsel %vm2964, %v4931, 0
        %5045 = vmatprep.subr.bf16.mxu0 0
        %5046 = vmatpush1.bf16.msra.mxu0 0
        %5047 = vmatprep.subr.bf16.mxu0 0
        %5048 = vmatpush1.bf16.msra.mxu0 0
        %5049 = vmatprep.subr.bf16.mxu0 0
        %5050 = vmatpush1.bf16.msra.mxu0 0
        %5051 = vmatprep.subr.bf16.mxu0 0
        %5052 = vmatpush1.bf16.msra.mxu0 0
        %5053 = vmatprep.subr.bf16.mxu0 0
        %5054 = vmatpush1.bf16.msra.mxu0 %v5028
        %5055 = vmatprep.subr.bf16.mxu0 0
        %5056 = vmatpush1.bf16.msra.mxu0 %v5026
        %5057 = vmatprep.subr.bf16.mxu0 0
        %5058 = vmatpush1.bf16.msra.mxu0 %v5024
        %5059 = vmatprep.subr.bf16.mxu0 0
        %5060 = vmatpush1.bf16.msra.mxu0 %v5022
        %5061 = vmatprep.subr.bf16.mxu0 0
        %5062 = vmatpush2.bf16.msra.mxu0 0
        %5063 = vmatprep.subr.bf16.mxu0 0
        %5064 = vmatpush2.bf16.msra.mxu0 0
        %5065 = vmatprep.subr.bf16.mxu0 0
        %5066 = vmatpush2.bf16.msra.mxu0 0
        %5067 = vmatprep.subr.bf16.mxu0 0
        %5068 = vmatpush2.bf16.msra.mxu0 0
        %5069 = vmatprep.subr.bf16.mxu0 0
        %5070 = vmatpush2.bf16.msra.mxu0 0
        %5071 = vmatprep.subr.bf16.mxu0 0
        %5072 = vmatpush2.bf16.msra.mxu0 0
        %5073 = vmatprep.subr.bf16.mxu0 0
        %5074 = vmatpush2.bf16.msra.mxu0 0
        %5075 = vmatprep.subr.bf16.mxu0 0
        %5076 = vmatpush2.bf16.msra.mxu0 0
        %5077 = vmatprep.mubr.bf16.mxu0 0
        %5078 = vmatmul.mubr.bf16.gmra.mxu0 %v5034
        %v5079 = vpop.f32.mrf.mxu0
        %v5080 = vadd.f32 0.0, %v5079
        %v5081 = vpop.f32.mrf.mxu0
        %v5082 = vpop.f32.mrf.mxu0
        %v5083 = vadd.f32 0.0, %v5082
        %v5084 = vpop.f32.mrf.mxu0
        %5085 = vmatprep.mubr.bf16.mxu0 0
        %5086 = vmatmul.mubr.bf16.gmra.mxu0 %v5037
        %v5087 = vpop.f32.mrf.mxu0
        %v5088 = vadd.f32 0.0, %v5087
        %v5089 = vpop.f32.mrf.mxu0
        %v5090 = vpop.f32.mrf.mxu0
        %v5091 = vadd.f32 0.0, %v5090
        %v5092 = vpop.f32.mrf.mxu0
        %5093 = vmatprep.mubr.bf16.mxu0 0
        %5094 = vmatmul.mubr.bf16.gmra.mxu0 %v5040
        %v5095 = vpop.f32.mrf.mxu0
        %v5096 = vadd.f32 0.0, %v5095
        %v5097 = vpop.f32.mrf.mxu0
        %v5098 = vpop.f32.mrf.mxu0
        %v5099 = vadd.f32 0.0, %v5098
        %v5100 = vpop.f32.mrf.mxu0
        %5101 = vmatprep.mubr.bf16.mxu0 0
        %5102 = vmatmul.mubr.bf16.gmra.mxu0 %v5043
        %v5103 = vpop.f32.mrf.mxu0
        %v5104 = vadd.f32 0.0, %v5103
        %v5105 = vpop.f32.mrf.mxu0
        %v5106 = vpop.f32.mrf.mxu0
        %v5107 = vadd.f32 0.0, %v5106
        %v5108 = vpop.f32.mrf.mxu0
        %5109 = vdwg.mxu0
        %v5110 = vadd.f32 %v4513, %v4991
        %v5111 = vadd.f32 %v4514, %v4994
        %v5112 = vadd.f32 %v4515, %v4999
        %v5113 = vadd.f32 %v4516, %v5002
        %v5114 = vadd.f32 %v4517, %v5007
        %v5115 = vadd.f32 %v4518, %v5010
        %v5116 = vadd.f32 %v4519, %v5015
        %v5117 = vadd.f32 %v4520, %v5018
        %v5118 = vadd.f32 %v4521, %v5080
        %v5119 = vadd.f32 %v4522, %v5083
        %v5120 = vadd.f32 %v4523, %v5088
        %v5121 = vadd.f32 %v4524, %v5091
        %v5122 = vadd.f32 %v4525, %v5096
        %v5123 = vadd.f32 %v4526, %v5099
        %v5124 = vadd.f32 %v4527, %v5104
        %v5125 = vadd.f32 %v4528, %v5107
        %v5126 = vld [vmem:[%s7] sm:$0x1]
        %v5128 = vlaneseq
        %v5129 = vshrl.u32 %v5128, 7
        %v5130 = vsub.s32 0, %v5129
        %v5131 = vrot.slane %v5126, %v5130
        %v5133 = vadd.f32 %v5110, %v5131
        %v5134 = vadd.f32 %v5111, %v5131
        %v5135 = vadd.f32 %v5112, %v5131
        %v5136 = vadd.f32 %v5113, %v5131
        %v5137 = vadd.f32 %v5114, %v5131
        %v5138 = vadd.f32 %v5115, %v5131
        %v5139 = vadd.f32 %v5116, %v5131
        %v5140 = vadd.f32 %v5117, %v5131
        %v5141 = vadd.f32 %v5118, %v5131
        %v5142 = vadd.f32 %v5119, %v5131
        %v5143 = vadd.f32 %v5120, %v5131
        %v5144 = vadd.f32 %v5121, %v5131
        %v5145 = vadd.f32 %v5122, %v5131
        %v5146 = vadd.f32 %v5123, %v5131
        %v5147 = vadd.f32 %v5124, %v5131
        %v5148 = vadd.f32 %v5125, %v5131
        %s5149 = scalar_lea.vmem %s356, %s2640
        %5150 = vst.msk [vmem:[%s5149] sm:$0xff] %vm574, %v5133
        %5151 = vst.msk [vmem:[%s5149 + $0x8] sm:$0xff] %vm574, %v5134
        %5152 = vst.msk [vmem:[%s5149 + $0x10] sm:$0xff] %vm574, %v5135
        %5153 = vst.msk [vmem:[%s5149 + $0x18] sm:$0xff] %vm574, %v5136
        %5154 = vst.msk [vmem:[%s5149 + $0x20] sm:$0xff] %vm574, %v5137
        %5155 = vst.msk [vmem:[%s5149 + $0x28] sm:$0xff] %vm574, %v5138
        %5156 = vst.msk [vmem:[%s5149 + $0x30] sm:$0xff] %vm574, %v5139
        %5157 = vst.msk [vmem:[%s5149 + $0x38] sm:$0xff] %vm574, %v5140
        %5158 = vst.msk [vmem:[%s5149 + $0x40] sm:$0xff] %vm574, %v5141
        %5159 = vst.msk [vmem:[%s5149 + $0x48] sm:$0xff] %vm574, %v5142
        %5160 = vst.msk [vmem:[%s5149 + $0x50] sm:$0xff] %vm574, %v5143
        %5161 = vst.msk [vmem:[%s5149 + $0x58] sm:$0xff] %vm574, %v5144
        %5162 = vst.msk [vmem:[%s5149 + $0x60] sm:$0xff] %vm574, %v5145
        %5163 = vst.msk [vmem:[%s5149 + $0x68] sm:$0xff] %vm574, %v5146
        %5164 = vst.msk [vmem:[%s5149 + $0x70] sm:$0xff] %vm574, %v5147
        %5165 = vst.msk [vmem:[%s5149 + $0x78] sm:$0xff] %vm574, %v5148
      $region61: #{tpu_custom_call.1} parent=55 // loop_footer
        %s2639 = sadd.s32 1, %s2635
      $region62: #{tpu_custom_call.1} parent=55 // loop_footer_branch
        %2634 = sbr.rel target = $region58
      $region63: #{tpu_custom_call.1} parent=55 // loop_exit
        _
      %s5166 = smul.u32 64, %s20
      %p5167 = scmp.lt.s32.totalorder %s5166, 255
      %s5168 = scalar_select %p5167, %s5166, 255
      %s5169 = smul.addr %s5168, 8
      %s5170 = scalar_lea.vmem %s9, %s5169
      // Predicated region
      $region64: #{tpu_custom_call.1} parent=55 // pred_check
        %p5171 = pneg %p237
      $region65: #{tpu_custom_call.1} parent=55 // pred_check_branch
        %5173 = sbr.rel (%p5171) target = $region67
      $region66: #{tpu_custom_call.1} parent=55 // pred_region
        %s5174 = smul.u32 64, %s20
      $region67: #{tpu_custom_call.1} parent=55 // pred_fallthru
        _
    $region56: #{tpu_custom_call.1} parent=5 // pred_fallthru
      _
    %p5175 = scmp.le.s32.totalorder 2, %s15
    // Predicated region
    $region68: #{tpu_custom_call.1} parent=5 // pred_check
      %p5176 = pneg %p5175
    $region69: #{tpu_custom_call.1} parent=5 // pred_check_branch
      %5178 = sbr.rel (%p5176) target = $region71
    $region70: #{tpu_custom_call.1} parent=5 // pred_region
      %s5179 = ssub.s32 %s15, 2
      // Predicated region
      $region72: #{tpu_custom_call.1} parent=70 // pred_check
        %p5180 = pneg %p243
      $region73: #{tpu_custom_call.1} parent=70 // pred_check_branch
        %5182 = sbr.rel (%p5180) target = $region75
      $region74: #{tpu_custom_call.1} parent=70 // pred_region
        %s5183 = smul.u32 64, %s21
        %p5184 = scmp.lt.s32.totalorder %s5183, 255
        %s5185 = scalar_select %p5184, %s5183, 255
        %s5186 = smul.addr %s5185, 8
        %s5187 = scalar_lea.vmem %s9, %s5186
      $region75: #{tpu_custom_call.1} parent=70 // pred_fallthru
        _
    $region71: #{tpu_custom_call.1} parent=5 // pred_fallthru
      _
  $region6: #{tpu_custom_call.1} parent=0 // loop_footer
    %s19 = sadd.s32 1, %s15
  $region7: #{tpu_custom_call.1} parent=0 // loop_footer_branch
    %14 = sbr.rel target = $region3
  $region8: #{tpu_custom_call.1} parent=0 // loop_exit
    _

</llo_original>
